<compile_context>
chip_gen: v5e
topology: v5e:2x2
jax: 0.10.0
libtpu: 0.0.40
codegen_flags: <defaults>
</compile_context>

<pallas_src>
import functools

import numpy as np
import jax
import jax.numpy as jnp
from jax.experimental import pallas as pl
from jax.experimental.pallas import tpu as pltpu

_LANES = 128      # TPU vreg lane width / padded MLP width
N_CLASSES = 10    # nn.Linear(84, 10)
DILATION = 2      # hardcoded in the module


# ---------------------------------------------------------------------------
# Fused kernel: conv1 -> ReLU -> conv2 -> ReLU -> fc1 -> ReLU -> fc2 -> ReLU -> fc3
# ---------------------------------------------------------------------------
def _fused_kernel(x_ref, c1w_ref, c1b_ref, c2w_ref, c2b_ref,
                  fc1w_ref, fc1b_ref, fc2w_ref, fc2b_ref, fc3w_ref, fc3b_ref,
                  o_ref, a1_ref, *, dil):
    """x_ref   : (tb, Hin, Win*Cin)  f32  -- lane-dense (w, c) minor dim
    c1w_ref : (k, Win*Cin,  Wo1*C1) f32  banded width-conv weights (per ky tap)
    c2w_ref : (k, Wo1*C1,   Wo2*C2) f32
    c*b_ref : (1, Wo*Co)            f32  biases tiled over w
    fc1w_ref: (Ho2, Wo2*C2, 128)    bf16 (per conv2 output row h)
    fc2w/fc3w: (128, 128)           bf16 ; fc*b: (1, 128) f32
    o_ref   : (tb, 128)             f32  lane-dense logits (pad sliced outside)
    a1_ref  : (tb, Ho1, Wo1*C1)     f32  VMEM scratch for conv1 activations
    """
    tb = x_ref.shape[0]
    wc = x_ref.shape[2]
    k = c1w_ref.shape[0]
    lanes1 = c1w_ref.shape[2]
    lanes2 = c2w_ref.shape[2]
    h1 = a1_ref.shape[1]
    h2 = fc1w_ref.shape[0]
    nout = fc1w_ref.shape[2]

    # ---- conv1 + bias + ReLU: one banded matmul per ky tap (K=wc, N=lanes1).
    acc1 = jnp.zeros((tb * h1, lanes1), jnp.float32)
    for ky in range(k):
        tap = x_ref[:, ky * dil:ky * dil + h1, :].reshape(tb * h1, wc)
        acc1 = acc1 + jnp.dot(tap, c1w_ref[ky],
                              preferred_element_type=jnp.float32)
    a1_ref[...] = jnp.maximum(acc1 + c1b_ref[...], 0.0).reshape(tb, h1, lanes1)

    # ---- conv2 + bias + ReLU, contracted row-by-row straight into fc1.
    hacc = jnp.zeros((tb, nout), jnp.float32)
    for h in range(h2):
        racc = jnp.zeros((tb, lanes2), jnp.float32)
        for ky in range(k):
            racc = racc + jnp.dot(a1_ref[:, h + ky * dil, :], c2w_ref[ky],
                                  preferred_element_type=jnp.float32)
        row = jnp.maximum(racc + c2b_ref[...], 0.0)        # conv2 row h, lanes=(w,c)
        hacc = hacc + jnp.dot(row.astype(jnp.bfloat16), fc1w_ref[h],
                              preferred_element_type=jnp.float32)

    # ---- fc1 bias/ReLU -> fc2 -> ReLU -> fc3 (all lane-dense, 128 wide).
    z = jnp.maximum(hacc + fc1b_ref[...], 0.0)
    z = jnp.dot(z.astype(jnp.bfloat16), fc2w_ref[...],
                preferred_element_type=jnp.float32)
    z = jnp.maximum(z + fc2b_ref[...], 0.0)
    o_ref[...] = jnp.dot(z.astype(jnp.bfloat16), fc3w_ref[...],
                         preferred_element_type=jnp.float32) + fc3b_ref[...]


# ---------------------------------------------------------------------------
# pallas_call wrapper
# ---------------------------------------------------------------------------
def _fused_forward(x3, p, *, dil):
    n, hin, wc = x3.shape
    c1w, c1b = p["conv1_w"], p["conv1_b"]
    c2w, c2b = p["conv2_w"], p["conv2_b"]
    fc1w, fc1b = p["fc1_w"], p["fc1_b"]
    fc2w, fc2b = p["fc2_w"], p["fc2_b"]
    fc3w, fc3b = p["fc3_w"], p["fc3_b"]

    k = c1w.shape[0]
    lanes1 = c1w.shape[2]
    lanes2 = c2w.shape[2]
    h1 = hin - dil * (k - 1)
    h2 = fc1w.shape[0]
    nout = fc3w.shape[1]

    # Full batch when it fits a 128-row MXU tile, otherwise 128-row tiles.
    # Either choice keeps the out BlockSpec's second-to-last dim legal
    # (== full dim, or a multiple of 8).
    tb = n if n <= 128 else 128
    grid = (pl.cdiv(n, tb),)

    flops = 2 * n * (k * h1 * wc * lanes1          # conv1 banded matmuls
                     + h2 * k * lanes1 * lanes2    # conv2 banded matmuls
                     + h2 * lanes2 * nout          # fc1
                     + 2 * nout * nout)            # fc2 + fc3
    bytes_accessed = (4 * x3.size
                      + 4 * (c1w.size + c1b.size + c2w.size + c2b.size
                             + fc1b.size + fc2b.size + fc3b.size)
                      + 2 * (fc1w.size + fc2w.size + fc3w.size)
                      + 4 * n * nout)

    kernel = functools.partial(_fused_kernel, dil=dil)
    return pl.pallas_call(
        kernel,
        out_shape=jax.ShapeDtypeStruct((n, nout), jnp.float32),
        grid_spec=pltpu.PrefetchScalarGridSpec(
            num_scalar_prefetch=0,
            grid=grid,
            in_specs=[
                pl.BlockSpec((tb, hin, wc), lambda i: (i, 0, 0)),
                pl.BlockSpec(c1w.shape, lambda i: (0, 0, 0)),   # weights resident
                pl.BlockSpec(c1b.shape, lambda i: (0, 0)),
                pl.BlockSpec(c2w.shape, lambda i: (0, 0, 0)),
                pl.BlockSpec(c2b.shape, lambda i: (0, 0)),
                pl.BlockSpec(fc1w.shape, lambda i: (0, 0, 0)),
                pl.BlockSpec(fc1b.shape, lambda i: (0, 0)),
                pl.BlockSpec(fc2w.shape, lambda i: (0, 0)),
                pl.BlockSpec(fc2b.shape, lambda i: (0, 0)),
                pl.BlockSpec(fc3w.shape, lambda i: (0, 0)),
                pl.BlockSpec(fc3b.shape, lambda i: (0, 0)),
            ],
            out_specs=pl.BlockSpec((tb, nout), lambda i: (i, 0)),
            scratch_shapes=[pltpu.VMEM((tb, h1, lanes1), jnp.float32)],
        ),
        compiler_params=pltpu.CompilerParams(
            dimension_semantics=("parallel",),
            vmem_limit_bytes=32 * 1024 * 1024),
        cost_estimate=pl.CostEstimate(flops=int(flops), transcendentals=0,
                                      bytes_accessed=int(bytes_accessed)),
    )(x3, c1w, c1b, c2w, c2b, fc1w, fc1b, fc2w, fc2b, fc3w, fc3b)


@jax.jit
def dilated_cnn_forward(x_nchw, params):
    """Forward pass matching DilatedCNN.forward (params in packed layout)."""
    n, cin, hin, win = x_nchw.shape
    # NCHW -> (N, H, W*C): one tiny one-off XLA transpose; lanes = (w, c).
    x3 = jnp.transpose(x_nchw, (0, 2, 3, 1)).reshape(n, hin, win * cin)
    logits = _fused_forward(x3, params, dil=DILATION)
    return logits[:, :N_CLASSES]                    # drop the 128-lane padding


# ---------------------------------------------------------------------------
# Parameter init (PyTorch-style) + one-time packing for the kernel
# ---------------------------------------------------------------------------
def init_params(key, nin, kernel_size):
    """PyTorch-style shapes/layouts: conv OIHW, linear (in, out), uniform init."""
    def uni(k, shape, fan_in):
        bound = 1.0 / jnp.sqrt(jnp.float32(fan_in))
        return jax.random.uniform(k, shape, jnp.float32, -bound, bound)

    ks = jax.random.split(key, 10)
    k1 = kernel_size
    return {
        "conv1_w": uni(ks[0], (6, nin, k1, k1), nin * k1 * k1),
        "conv1_b": uni(ks[1], (6,), nin * k1 * k1),
        "conv2_w": uni(ks[2], (16, 6, 3, 3), 6 * 3 * 3),
        "conv2_b": uni(ks[3], (16,), 6 * 3 * 3),
        "fc1_w": uni(ks[4], (2304, 120), 2304),     # rows in torch NCHW-flatten order
        "fc1_b": uni(ks[5], (1, 120), 2304),
        "fc2_w": uni(ks[6], (120, 84), 120),
        "fc2_b": uni(ks[7], (1, 84), 120),
        "fc3_w": uni(ks[8], (84, 10), 84),
        "fc3_b": uni(ks[9], (1, 10), 84),
    }


def _banded_conv_weight(w_oihw, win, dil):
    """OIHW conv weight -> (K, Win*Cin, Wout*Cout) banded matrices.

    Folds the width convolution into one matmul per ky tap: for output lane
    (wo, co), input lane (wi, ci) is nonzero iff wi == wo + dil*kx.
    """
    w = np.asarray(w_oihw, np.float32)
    cout, cin, k, _ = w.shape
    wout = win - dil * (k - 1)
    band = np.zeros((k, win * cin, wout * cout), np.float32)
    for ky in range(k):
        for kx in range(k):
            blk = w[:, :, ky, kx].T                       # (cin, cout)
            for wo in range(wout):
                wi = wo + dil * kx
                band[ky, wi * cin:(wi + 1) * cin,
                     wo * cout:(wo + 1) * cout] = blk
    return jnp.asarray(band)


def prepare_params(raw, *, hin=20, win=20, dilation=DILATION):
    """One-time layout / dtype packing for the fused kernel (zero per-step cost)."""
    cout1, cin, k1, _ = raw["conv1_w"].shape
    cout2, _, k2, _ = raw["conv2_w"].shape
    wout1 = win - dilation * (k1 - 1)
    wout2 = wout1 - dilation * (k2 - 1)
    h2 = (hin - dilation * (k1 - 1)) - dilation * (k2 - 1)

    c1w = _banded_conv_weight(raw["conv1_w"], win, dilation)     # (k1, win*cin, wout1*6)
    c2w = _banded_conv_weight(raw["conv2_w"], wout1, dilation)   # (k2, wout1*6, wout2*16)
    c1b = jnp.tile(raw["conv1_b"], wout1).reshape(1, -1)         # lane = w*6 + c
    c2b = jnp.tile(raw["conv2_b"], wout2).reshape(1, -1)         # lane = w*16 + c

    # fc1: torch-flatten rows (c*144 + h*12 + w) -> per-h blocks with lane
    # order (w*16 + c) matching the kernel's conv2 row layout; pad 120 -> 128.
    fc1 = raw["fc1_w"].reshape(cout2, h2, wout2, -1)             # [c, h, w, j]
    fc1 = jnp.transpose(fc1, (1, 2, 0, 3)).reshape(h2, wout2 * cout2, -1)
    fc1 = jnp.pad(fc1, ((0, 0), (0, 0), (0, _LANES - fc1.shape[-1])))
    fc1_b = jnp.pad(raw["fc1_b"], ((0, 0), (0, _LANES - raw["fc1_b"].shape[1])))

    # fc2 / fc3: zero-pad both K and N to 128 (zero rows/cols are exact no-ops).
    fc2 = jnp.pad(raw["fc2_w"], ((0, _LANES - raw["fc2_w"].shape[0]),
                                 (0, _LANES - raw["fc2_w"].shape[1])))
    fc2_b = jnp.pad(raw["fc2_b"], ((0, 0), (0, _LANES - raw["fc2_b"].shape[1])))
    fc3 = jnp.pad(raw["fc3_w"], ((0, _LANES - raw["fc3_w"].shape[0]),
                                 (0, _LANES - raw["fc3_w"].shape[1])))
    fc3_b = jnp.pad(raw["fc3_b"], ((0, 0), (0, _LANES - raw["fc3_b"].shape[1])))

    return {
        "conv1_w": c1w, "conv1_b": c1b,
        "conv2_w": c2w, "conv2_b": c2b,
        # fc weights in bf16 (f32 accumulation in-kernel); biases stay f32.
        "fc1_w": fc1.astype(jnp.bfloat16), "fc1_b": fc1_b,
        "fc2_w": fc2.astype(jnp.bfloat16), "fc2_b": fc2_b,
        "fc3_w": fc3.astype(jnp.bfloat16), "fc3_b": fc3_b,
    }


# ---------------------------------------------------------------------------
# Pure-JAX f32 reference (validates conv packing + fc1 row permutation)
# ---------------------------------------------------------------------------
def _reference_forward(x_nchw, raw):
    dn = ("NCHW", "OIHW", "NCHW")
    y = jax.lax.conv_general_dilated(x_nchw, raw["conv1_w"], (1, 1), "VALID",
                                     rhs_dilation=(2, 2), dimension_numbers=dn)
    y = jax.nn.relu(y + raw["conv1_b"][None, :, None, None])
    y = jax.lax.conv_general_dilated(y, raw["conv2_w"], (1, 1), "VALID",
                                     rhs_dilation=(2, 2), dimension_numbers=dn)
    y = jax.nn.relu(y + raw["conv2_b"][None, :, None, None])
    f = y.reshape(y.shape[0], -1)                    # torch x.view(-1, 2304)
    f = jax.nn.relu(f @ raw["fc1_w"] + raw["fc1_b"])
    f = jax.nn.relu(f @ raw["fc2_w"] + raw["fc2_b"])
    return f @ raw["fc3_w"] + raw["fc3_b"]


if __name__ == "__main__":
    key = jax.random.PRNGKey(0)
    k_params, k_x = jax.random.split(key)

    nin, kernel_size = 3, 3
    # 20x20 input -> conv1(d=2,k=3): 16x16x6 -> conv2(d=2,k=3): 12x12x16
    # -> flatten 2304 -> 120 -> 84 -> 10   (20x20 is forced by Linear(2304, .))
    x = jax.random.normal(k_x, (2, nin, 20, 20), jnp.float32)   # NCHW (PyTorch)

    raw = init_params(k_params, nin, kernel_size)
    params = prepare_params(raw)

    out = jax.block_until_ready(dilated_cnn_forward(x, params))
    assert out.shape == (2, N_CLASSES), out.shape
    assert out.dtype == jnp.float32
    assert bool(jnp.all(jnp.isfinite(out)))

    ref = _reference_forward(x, raw)
    err = float(jnp.max(jnp.abs(out - ref)))
    assert err < 5e-2, f"max abs err vs f32 reference: {err}"

    print("KERNEL_OK")
</pallas_src>

<mosaic_0001>
module attributes {stable_mosaic.version = 11 : i64} {
  func.func @_fused_kernel(%arg0: i32, %arg1: memref<2x20x60xf32, #tpu.memory_space<vmem>>, %arg2: memref<3x60x96xf32, #tpu.memory_space<vmem>>, %arg3: memref<1x96xf32, #tpu.memory_space<vmem>>, %arg4: memref<3x96x192xf32, #tpu.memory_space<vmem>>, %arg5: memref<1x192xf32, #tpu.memory_space<vmem>>, %arg6: memref<12x192x128xbf16, #tpu.memory_space<vmem>>, %arg7: memref<1x128xf32, #tpu.memory_space<vmem>>, %arg8: memref<128x128xbf16, #tpu.memory_space<vmem>>, %arg9: memref<1x128xf32, #tpu.memory_space<vmem>>, %arg10: memref<128x128xbf16, #tpu.memory_space<vmem>>, %arg11: memref<1x128xf32, #tpu.memory_space<vmem>>, %arg12: memref<2x128xf32, #tpu.memory_space<vmem>>, %arg13: memref<2x16x96xf32, #tpu.memory_space<vmem>>) attributes {dimension_semantics = [#tpu.dimension_semantics<parallel>], iteration_bounds = array<i64: 1>, scalar_prefetch = 0 : i64, scratch_operands = 1 : i64, tpu.core_type = #tpu.core_type<tc>, window_params = [{transform_indices = @transform_0, window_bounds = array<i64: 2, 20, 60>}, {pipeline_mode = #tpu.pipeline_mode<synchronous>, transform_indices = @transform_1, window_bounds = array<i64: 3, 60, 96>}, {pipeline_mode = #tpu.pipeline_mode<synchronous>, transform_indices = @transform_2, window_bounds = array<i64: 1, 96>}, {pipeline_mode = #tpu.pipeline_mode<synchronous>, transform_indices = @transform_3, window_bounds = array<i64: 3, 96, 192>}, {pipeline_mode = #tpu.pipeline_mode<synchronous>, transform_indices = @transform_4, window_bounds = array<i64: 1, 192>}, {pipeline_mode = #tpu.pipeline_mode<synchronous>, transform_indices = @transform_5, window_bounds = array<i64: 12, 192, 128>}, {pipeline_mode = #tpu.pipeline_mode<synchronous>, transform_indices = @transform_6, window_bounds = array<i64: 1, 128>}, {pipeline_mode = #tpu.pipeline_mode<synchronous>, transform_indices = @transform_7, window_bounds = array<i64: 128, 128>}, {pipeline_mode = #tpu.pipeline_mode<synchronous>, transform_indices = @transform_8, window_bounds = array<i64: 1, 128>}, {pipeline_mode = #tpu.pipeline_mode<synchronous>, transform_indices = @transform_9, window_bounds = array<i64: 128, 128>}, {pipeline_mode = #tpu.pipeline_mode<synchronous>, transform_indices = @transform_10, window_bounds = array<i64: 1, 128>}, {transform_indices = @transform_11, window_bounds = array<i64: 2, 128>}]} {
    %cst = arith.constant 0.000000e+00 : f32
    %0 = vector.broadcast %cst : f32 to vector<32x96xf32>
    %c0 = arith.constant 0 : index
    %c0_0 = arith.constant 0 : index
    %c0_1 = arith.constant 0 : index
    %1 = vector.load %arg1[%c0, %c0_0, %c0_1] : memref<2x20x60xf32, #tpu.memory_space<vmem>>, vector<2x16x60xf32>
    %2 = vector.shape_cast %1 : vector<2x16x60xf32> to vector<32x60xf32>
    %c0_2 = arith.constant 0 : index
    %c0_3 = arith.constant 0 : index
    %c0_4 = arith.constant 0 : index
    %3 = vector.load %arg2[%c0_2, %c0_3, %c0_4] : memref<3x60x96xf32, #tpu.memory_space<vmem>>, vector<1x60x96xf32>
    %4 = vector.shape_cast %3 : vector<1x60x96xf32> to vector<60x96xf32>
    %cst_5 = arith.constant dense<0.000000e+00> : vector<32x96xf32>
    %5 = tpu.matmul %2, %4, %cst_5 {dimension_numbers = #tpu.dot_dimension_numbers<[1], [0], [0], [1], [0, 0, 1, 1], [], []>} : vector<32x60xf32>, vector<60x96xf32>, vector<32x96xf32> -> vector<32x96xf32>
    %6 = arith.addf %0, %5 : vector<32x96xf32>
    %c0_6 = arith.constant 0 : index
    %c2 = arith.constant 2 : index
    %c0_7 = arith.constant 0 : index
    %7 = vector.load %arg1[%c0_6, %c2, %c0_7] : memref<2x20x60xf32, #tpu.memory_space<vmem>>, vector<2x16x60xf32>
    %8 = vector.shape_cast %7 : vector<2x16x60xf32> to vector<32x60xf32>
    %c1 = arith.constant 1 : index
    %c0_8 = arith.constant 0 : index
    %c0_9 = arith.constant 0 : index
    %9 = vector.load %arg2[%c1, %c0_8, %c0_9] : memref<3x60x96xf32, #tpu.memory_space<vmem>>, vector<1x60x96xf32>
    %10 = vector.shape_cast %9 : vector<1x60x96xf32> to vector<60x96xf32>
    %cst_10 = arith.constant dense<0.000000e+00> : vector<32x96xf32>
    %11 = tpu.matmul %8, %10, %cst_10 {dimension_numbers = #tpu.dot_dimension_numbers<[1], [0], [0], [1], [0, 0, 1, 1], [], []>} : vector<32x60xf32>, vector<60x96xf32>, vector<32x96xf32> -> vector<32x96xf32>
    %12 = arith.addf %6, %11 : vector<32x96xf32>
    %c0_11 = arith.constant 0 : index
    %c4 = arith.constant 4 : index
    %c0_12 = arith.constant 0 : index
    %13 = vector.load %arg1[%c0_11, %c4, %c0_12] : memref<2x20x60xf32, #tpu.memory_space<vmem>>, vector<2x16x60xf32>
    %14 = vector.shape_cast %13 : vector<2x16x60xf32> to vector<32x60xf32>
    %c2_13 = arith.constant 2 : index
    %c0_14 = arith.constant 0 : index
    %c0_15 = arith.constant 0 : index
    %15 = vector.load %arg2[%c2_13, %c0_14, %c0_15] : memref<3x60x96xf32, #tpu.memory_space<vmem>>, vector<1x60x96xf32>
    %16 = vector.shape_cast %15 : vector<1x60x96xf32> to vector<60x96xf32>
    %cst_16 = arith.constant dense<0.000000e+00> : vector<32x96xf32>
    %17 = tpu.matmul %14, %16, %cst_16 {dimension_numbers = #tpu.dot_dimension_numbers<[1], [0], [0], [1], [0, 0, 1, 1], [], []>} : vector<32x60xf32>, vector<60x96xf32>, vector<32x96xf32> -> vector<32x96xf32>
    %18 = arith.addf %12, %17 : vector<32x96xf32>
    %c0_17 = arith.constant 0 : index
    %c0_18 = arith.constant 0 : index
    %19 = vector.load %arg3[%c0_17, %c0_18] : memref<1x96xf32, #tpu.memory_space<vmem>>, vector<1x96xf32>
    %20 = vector.broadcast %19 : vector<1x96xf32> to vector<32x96xf32>
    %21 = arith.addf %18, %20 : vector<32x96xf32>
    %cst_19 = arith.constant 0.000000e+00 : f32
    %22 = vector.broadcast %cst_19 : f32 to vector<32x96xf32>
    %23 = arith.maximumf %21, %22 : vector<32x96xf32>
    %24 = vector.shape_cast %23 : vector<32x96xf32> to vector<2x16x96xf32>
    %c0_20 = arith.constant 0 : index
    %c0_21 = arith.constant 0 : index
    %c0_22 = arith.constant 0 : index
    %25 = vector.load %arg13[%c0_20, %c0_21, %c0_22] : memref<2x16x96xf32, #tpu.memory_space<vmem>>, vector<2x16x96xf32>
    tpu.vector_store %arg13[%c0_20, %c0_21, %c0_22], %24 {strides = array<i32>} : memref<2x16x96xf32, #tpu.memory_space<vmem>>, vector<2x16x96xf32>,
    %cst_23 = arith.constant 0.000000e+00 : f32
    %26 = vector.broadcast %cst_23 : f32 to vector<2x128xf32>
    %cst_24 = arith.constant 0.000000e+00 : f32
    %27 = vector.broadcast %cst_24 : f32 to vector<2x192xf32>
    %c0_25 = arith.constant 0 : index
    %c0_26 = arith.constant 0 : index
    %c0_27 = arith.constant 0 : index
    %28 = vector.load %arg13[%c0_25, %c0_26, %c0_27] : memref<2x16x96xf32, #tpu.memory_space<vmem>>, vector<2x1x96xf32>
    %29 = vector.shape_cast %28 : vector<2x1x96xf32> to vector<2x96xf32>
    %c0_28 = arith.constant 0 : index
    %c0_29 = arith.constant 0 : index
    %c0_30 = arith.constant 0 : index
    %30 = vector.load %arg4[%c0_28, %c0_29, %c0_30] : memref<3x96x192xf32, #tpu.memory_space<vmem>>, vector<1x96x192xf32>
    %31 = vector.shape_cast %30 : vector<1x96x192xf32> to vector<96x192xf32>
    %cst_31 = arith.constant dense<0.000000e+00> : vector<2x192xf32>
    %32 = tpu.matmul %29, %31, %cst_31 {dimension_numbers = #tpu.dot_dimension_numbers<[1], [0], [0], [1], [0, 0, 1, 1], [], []>} : vector<2x96xf32>, vector<96x192xf32>, vector<2x192xf32> -> vector<2x192xf32>
    %33 = arith.addf %27, %32 : vector<2x192xf32>
    %c0_32 = arith.constant 0 : index
    %c2_33 = arith.constant 2 : index
    %c0_34 = arith.constant 0 : index
    %34 = vector.load %arg13[%c0_32, %c2_33, %c0_34] : memref<2x16x96xf32, #tpu.memory_space<vmem>>, vector<2x1x96xf32>
    %35 = vector.shape_cast %34 : vector<2x1x96xf32> to vector<2x96xf32>
    %c1_35 = arith.constant 1 : index
    %c0_36 = arith.constant 0 : index
    %c0_37 = arith.constant 0 : index
    %36 = vector.load %arg4[%c1_35, %c0_36, %c0_37] : memref<3x96x192xf32, #tpu.memory_space<vmem>>, vector<1x96x192xf32>
    %37 = vector.shape_cast %36 : vector<1x96x192xf32> to vector<96x192xf32>
    %cst_38 = arith.constant dense<0.000000e+00> : vector<2x192xf32>
    %38 = tpu.matmul %35, %37, %cst_38 {dimension_numbers = #tpu.dot_dimension_numbers<[1], [0], [0], [1], [0, 0, 1, 1], [], []>} : vector<2x96xf32>, vector<96x192xf32>, vector<2x192xf32> -> vector<2x192xf32>
    %39 = arith.addf %33, %38 : vector<2x192xf32>
    %c0_39 = arith.constant 0 : index
    %c4_40 = arith.constant 4 : index
    %c0_41 = arith.constant 0 : index
    %40 = vector.load %arg13[%c0_39, %c4_40, %c0_41] : memref<2x16x96xf32, #tpu.memory_space<vmem>>, vector<2x1x96xf32>
    %41 = vector.shape_cast %40 : vector<2x1x96xf32> to vector<2x96xf32>
    %c2_42 = arith.constant 2 : index
    %c0_43 = arith.constant 0 : index
    %c0_44 = arith.constant 0 : index
    %42 = vector.load %arg4[%c2_42, %c0_43, %c0_44] : memref<3x96x192xf32, #tpu.memory_space<vmem>>, vector<1x96x192xf32>
    %43 = vector.shape_cast %42 : vector<1x96x192xf32> to vector<96x192xf32>
    %cst_45 = arith.constant dense<0.000000e+00> : vector<2x192xf32>
    %44 = tpu.matmul %41, %43, %cst_45 {dimension_numbers = #tpu.dot_dimension_numbers<[1], [0], [0], [1], [0, 0, 1, 1], [], []>} : vector<2x96xf32>, vector<96x192xf32>, vector<2x192xf32> -> vector<2x192xf32>
    %45 = arith.addf %39, %44 : vector<2x192xf32>
    %c0_46 = arith.constant 0 : index
    %c0_47 = arith.constant 0 : index
    %46 = vector.load %arg5[%c0_46, %c0_47] : memref<1x192xf32, #tpu.memory_space<vmem>>, vector<1x192xf32>
    %47 = vector.broadcast %46 : vector<1x192xf32> to vector<2x192xf32>
    %48 = arith.addf %45, %47 : vector<2x192xf32>
    %cst_48 = arith.constant 0.000000e+00 : f32
    %49 = vector.broadcast %cst_48 : f32 to vector<2x192xf32>
    %50 = arith.maximumf %48, %49 : vector<2x192xf32>
    %51 = arith.truncf %50 : vector<2x192xf32> to vector<2x192xbf16>
    %c0_49 = arith.constant 0 : index
    %c0_50 = arith.constant 0 : index
    %c0_51 = arith.constant 0 : index
    %52 = vector.load %arg6[%c0_49, %c0_50, %c0_51] : memref<12x192x128xbf16, #tpu.memory_space<vmem>>, vector<1x192x128xbf16>
    %53 = vector.shape_cast %52 : vector<1x192x128xbf16> to vector<192x128xbf16>
    %cst_52 = arith.constant dense<0.000000e+00> : vector<2x128xf32>
    %54 = tpu.matmul %51, %53, %cst_52 {dimension_numbers = #tpu.dot_dimension_numbers<[1], [0], [0], [1], [0, 0, 1, 1], [], []>} : vector<2x192xbf16>, vector<192x128xbf16>, vector<2x128xf32> -> vector<2x128xf32>
    %55 = arith.addf %26, %54 : vector<2x128xf32>
    %cst_53 = arith.constant 0.000000e+00 : f32
    %56 = vector.broadcast %cst_53 : f32 to vector<2x192xf32>
    %c0_54 = arith.constant 0 : index
    %c1_55 = arith.constant 1 : index
    %c0_56 = arith.constant 0 : index
    %57 = vector.load %arg13[%c0_54, %c1_55, %c0_56] : memref<2x16x96xf32, #tpu.memory_space<vmem>>, vector<2x1x96xf32>
    %58 = vector.shape_cast %57 : vector<2x1x96xf32> to vector<2x96xf32>
    %c0_57 = arith.constant 0 : index
    %c0_58 = arith.constant 0 : index
    %c0_59 = arith.constant 0 : index
    %59 = vector.load %arg4[%c0_57, %c0_58, %c0_59] : memref<3x96x192xf32, #tpu.memory_space<vmem>>, vector<1x96x192xf32>
    %60 = vector.shape_cast %59 : vector<1x96x192xf32> to vector<96x192xf32>
    %cst_60 = arith.constant dense<0.000000e+00> : vector<2x192xf32>
    %61 = tpu.matmul %58, %60, %cst_60 {dimension_numbers = #tpu.dot_dimension_numbers<[1], [0], [0], [1], [0, 0, 1, 1], [], []>} : vector<2x96xf32>, vector<96x192xf32>, vector<2x192xf32> -> vector<2x192xf32>
    %62 = arith.addf %56, %61 : vector<2x192xf32>
    %c0_61 = arith.constant 0 : index
    %c3 = arith.constant 3 : index
    %c0_62 = arith.constant 0 : index
    %63 = vector.load %arg13[%c0_61, %c3, %c0_62] : memref<2x16x96xf32, #tpu.memory_space<vmem>>, vector<2x1x96xf32>
    %64 = vector.shape_cast %63 : vector<2x1x96xf32> to vector<2x96xf32>
    %c1_63 = arith.constant 1 : index
    %c0_64 = arith.constant 0 : index
    %c0_65 = arith.constant 0 : index
    %65 = vector.load %arg4[%c1_63, %c0_64, %c0_65] : memref<3x96x192xf32, #tpu.memory_space<vmem>>, vector<1x96x192xf32>
    %66 = vector.shape_cast %65 : vector<1x96x192xf32> to vector<96x192xf32>
    %cst_66 = arith.constant dense<0.000000e+00> : vector<2x192xf32>
    %67 = tpu.matmul %64, %66, %cst_66 {dimension_numbers = #tpu.dot_dimension_numbers<[1], [0], [0], [1], [0, 0, 1, 1], [], []>} : vector<2x96xf32>, vector<96x192xf32>, vector<2x192xf32> -> vector<2x192xf32>
    %68 = arith.addf %62, %67 : vector<2x192xf32>
    %c0_67 = arith.constant 0 : index
    %c5 = arith.constant 5 : index
    %c0_68 = arith.constant 0 : index
    %69 = vector.load %arg13[%c0_67, %c5, %c0_68] : memref<2x16x96xf32, #tpu.memory_space<vmem>>, vector<2x1x96xf32>
    %70 = vector.shape_cast %69 : vector<2x1x96xf32> to vector<2x96xf32>
    %c2_69 = arith.constant 2 : index
    %c0_70 = arith.constant 0 : index
    %c0_71 = arith.constant 0 : index
    %71 = vector.load %arg4[%c2_69, %c0_70, %c0_71] : memref<3x96x192xf32, #tpu.memory_space<vmem>>, vector<1x96x192xf32>
    %72 = vector.shape_cast %71 : vector<1x96x192xf32> to vector<96x192xf32>
    %cst_72 = arith.constant dense<0.000000e+00> : vector<2x192xf32>
    %73 = tpu.matmul %70, %72, %cst_72 {dimension_numbers = #tpu.dot_dimension_numbers<[1], [0], [0], [1], [0, 0, 1, 1], [], []>} : vector<2x96xf32>, vector<96x192xf32>, vector<2x192xf32> -> vector<2x192xf32>
    %74 = arith.addf %68, %73 : vector<2x192xf32>
    %c0_73 = arith.constant 0 : index
    %c0_74 = arith.constant 0 : index
    %75 = vector.load %arg5[%c0_73, %c0_74] : memref<1x192xf32, #tpu.memory_space<vmem>>, vector<1x192xf32>
    %76 = vector.broadcast %75 : vector<1x192xf32> to vector<2x192xf32>
    %77 = arith.addf %74, %76 : vector<2x192xf32>
    %cst_75 = arith.constant 0.000000e+00 : f32
    %78 = vector.broadcast %cst_75 : f32 to vector<2x192xf32>
    %79 = arith.maximumf %77, %78 : vector<2x192xf32>
    %80 = arith.truncf %79 : vector<2x192xf32> to vector<2x192xbf16>
    %c1_76 = arith.constant 1 : index
    %c0_77 = arith.constant 0 : index
    %c0_78 = arith.constant 0 : index
    %81 = vector.load %arg6[%c1_76, %c0_77, %c0_78] : memref<12x192x128xbf16, #tpu.memory_space<vmem>>, vector<1x192x128xbf16>
    %82 = vector.shape_cast %81 : vector<1x192x128xbf16> to vector<192x128xbf16>
    %cst_79 = arith.constant dense<0.000000e+00> : vector<2x128xf32>
    %83 = tpu.matmul %80, %82, %cst_79 {dimension_numbers = #tpu.dot_dimension_numbers<[1], [0], [0], [1], [0, 0, 1, 1], [], []>} : vector<2x192xbf16>, vector<192x128xbf16>, vector<2x128xf32> -> vector<2x128xf32>
    %84 = arith.addf %55, %83 : vector<2x128xf32>
    %cst_80 = arith.constant 0.000000e+00 : f32
    %85 = vector.broadcast %cst_80 : f32 to vector<2x192xf32>
    %c0_81 = arith.constant 0 : index
    %c2_82 = arith.constant 2 : index
    %c0_83 = arith.constant 0 : index
    %86 = vector.load %arg13[%c0_81, %c2_82, %c0_83] : memref<2x16x96xf32, #tpu.memory_space<vmem>>, vector<2x1x96xf32>
    %87 = vector.shape_cast %86 : vector<2x1x96xf32> to vector<2x96xf32>
    %c0_84 = arith.constant 0 : index
    %c0_85 = arith.constant 0 : index
    %c0_86 = arith.constant 0 : index
    %88 = vector.load %arg4[%c0_84, %c0_85, %c0_86] : memref<3x96x192xf32, #tpu.memory_space<vmem>>, vector<1x96x192xf32>
    %89 = vector.shape_cast %88 : vector<1x96x192xf32> to vector<96x192xf32>
    %cst_87 = arith.constant dense<0.000000e+00> : vector<2x192xf32>
    %90 = tpu.matmul %87, %89, %cst_87 {dimension_numbers = #tpu.dot_dimension_numbers<[1], [0], [0], [1], [0, 0, 1, 1], [], []>} : vector<2x96xf32>, vector<96x192xf32>, vector<2x192xf32> -> vector<2x192xf32>
    %91 = arith.addf %85, %90 : vector<2x192xf32>
    %c0_88 = arith.constant 0 : index
    %c4_89 = arith.constant 4 : index
    %c0_90 = arith.constant 0 : index
    %92 = vector.load %arg13[%c0_88, %c4_89, %c0_90] : memref<2x16x96xf32, #tpu.memory_space<vmem>>, vector<2x1x96xf32>
    %93 = vector.shape_cast %92 : vector<2x1x96xf32> to vector<2x96xf32>
    %c1_91 = arith.constant 1 : index
    %c0_92 = arith.constant 0 : index
    %c0_93 = arith.constant 0 : index
    %94 = vector.load %arg4[%c1_91, %c0_92, %c0_93] : memref<3x96x192xf32, #tpu.memory_space<vmem>>, vector<1x96x192xf32>
    %95 = vector.shape_cast %94 : vector<1x96x192xf32> to vector<96x192xf32>
    %cst_94 = arith.constant dense<0.000000e+00> : vector<2x192xf32>
    %96 = tpu.matmul %93, %95, %cst_94 {dimension_numbers = #tpu.dot_dimension_numbers<[1], [0], [0], [1], [0, 0, 1, 1], [], []>} : vector<2x96xf32>, vector<96x192xf32>, vector<2x192xf32> -> vector<2x192xf32>
    %97 = arith.addf %91, %96 : vector<2x192xf32>
    %c0_95 = arith.constant 0 : index
    %c6 = arith.constant 6 : index
    %c0_96 = arith.constant 0 : index
    %98 = vector.load %arg13[%c0_95, %c6, %c0_96] : memref<2x16x96xf32, #tpu.memory_space<vmem>>, vector<2x1x96xf32>
    %99 = vector.shape_cast %98 : vector<2x1x96xf32> to vector<2x96xf32>
    %c2_97 = arith.constant 2 : index
    %c0_98 = arith.constant 0 : index
    %c0_99 = arith.constant 0 : index
    %100 = vector.load %arg4[%c2_97, %c0_98, %c0_99] : memref<3x96x192xf32, #tpu.memory_space<vmem>>, vector<1x96x192xf32>
    %101 = vector.shape_cast %100 : vector<1x96x192xf32> to vector<96x192xf32>
    %cst_100 = arith.constant dense<0.000000e+00> : vector<2x192xf32>
    %102 = tpu.matmul %99, %101, %cst_100 {dimension_numbers = #tpu.dot_dimension_numbers<[1], [0], [0], [1], [0, 0, 1, 1], [], []>} : vector<2x96xf32>, vector<96x192xf32>, vector<2x192xf32> -> vector<2x192xf32>
    %103 = arith.addf %97, %102 : vector<2x192xf32>
    %c0_101 = arith.constant 0 : index
    %c0_102 = arith.constant 0 : index
    %104 = vector.load %arg5[%c0_101, %c0_102] : memref<1x192xf32, #tpu.memory_space<vmem>>, vector<1x192xf32>
    %105 = vector.broadcast %104 : vector<1x192xf32> to vector<2x192xf32>
    %106 = arith.addf %103, %105 : vector<2x192xf32>
    %cst_103 = arith.constant 0.000000e+00 : f32
    %107 = vector.broadcast %cst_103 : f32 to vector<2x192xf32>
    %108 = arith.maximumf %106, %107 : vector<2x192xf32>
    %109 = arith.truncf %108 : vector<2x192xf32> to vector<2x192xbf16>
    %c2_104 = arith.constant 2 : index
    %c0_105 = arith.constant 0 : index
    %c0_106 = arith.constant 0 : index
    %110 = vector.load %arg6[%c2_104, %c0_105, %c0_106] : memref<12x192x128xbf16, #tpu.memory_space<vmem>>, vector<1x192x128xbf16>
    %111 = vector.shape_cast %110 : vector<1x192x128xbf16> to vector<192x128xbf16>
    %cst_107 = arith.constant dense<0.000000e+00> : vector<2x128xf32>
    %112 = tpu.matmul %109, %111, %cst_107 {dimension_numbers = #tpu.dot_dimension_numbers<[1], [0], [0], [1], [0, 0, 1, 1], [], []>} : vector<2x192xbf16>, vector<192x128xbf16>, vector<2x128xf32> -> vector<2x128xf32>
    %113 = arith.addf %84, %112 : vector<2x128xf32>
    %cst_108 = arith.constant 0.000000e+00 : f32
    %114 = vector.broadcast %cst_108 : f32 to vector<2x192xf32>
    %c0_109 = arith.constant 0 : index
    %c3_110 = arith.constant 3 : index
    %c0_111 = arith.constant 0 : index
    %115 = vector.load %arg13[%c0_109, %c3_110, %c0_111] : memref<2x16x96xf32, #tpu.memory_space<vmem>>, vector<2x1x96xf32>
    %116 = vector.shape_cast %115 : vector<2x1x96xf32> to vector<2x96xf32>
    %c0_112 = arith.constant 0 : index
    %c0_113 = arith.constant 0 : index
    %c0_114 = arith.constant 0 : index
    %117 = vector.load %arg4[%c0_112, %c0_113, %c0_114] : memref<3x96x192xf32, #tpu.memory_space<vmem>>, vector<1x96x192xf32>
    %118 = vector.shape_cast %117 : vector<1x96x192xf32> to vector<96x192xf32>
    %cst_115 = arith.constant dense<0.000000e+00> : vector<2x192xf32>
    %119 = tpu.matmul %116, %118, %cst_115 {dimension_numbers = #tpu.dot_dimension_numbers<[1], [0], [0], [1], [0, 0, 1, 1], [], []>} : vector<2x96xf32>, vector<96x192xf32>, vector<2x192xf32> -> vector<2x192xf32>
    %120 = arith.addf %114, %119 : vector<2x192xf32>
    %c0_116 = arith.constant 0 : index
    %c5_117 = arith.constant 5 : index
    %c0_118 = arith.constant 0 : index
    %121 = vector.load %arg13[%c0_116, %c5_117, %c0_118] : memref<2x16x96xf32, #tpu.memory_space<vmem>>, vector<2x1x96xf32>
    %122 = vector.shape_cast %121 : vector<2x1x96xf32> to vector<2x96xf32>
    %c1_119 = arith.constant 1 : index
    %c0_120 = arith.constant 0 : index
    %c0_121 = arith.constant 0 : index
    %123 = vector.load %arg4[%c1_119, %c0_120, %c0_121] : memref<3x96x192xf32, #tpu.memory_space<vmem>>, vector<1x96x192xf32>
    %124 = vector.shape_cast %123 : vector<1x96x192xf32> to vector<96x192xf32>
    %cst_122 = arith.constant dense<0.000000e+00> : vector<2x192xf32>
    %125 = tpu.matmul %122, %124, %cst_122 {dimension_numbers = #tpu.dot_dimension_numbers<[1], [0], [0], [1], [0, 0, 1, 1], [], []>} : vector<2x96xf32>, vector<96x192xf32>, vector<2x192xf32> -> vector<2x192xf32>
    %126 = arith.addf %120, %125 : vector<2x192xf32>
    %c0_123 = arith.constant 0 : index
    %c7 = arith.constant 7 : index
    %c0_124 = arith.constant 0 : index
    %127 = vector.load %arg13[%c0_123, %c7, %c0_124] : memref<2x16x96xf32, #tpu.memory_space<vmem>>, vector<2x1x96xf32>
    %128 = vector.shape_cast %127 : vector<2x1x96xf32> to vector<2x96xf32>
    %c2_125 = arith.constant 2 : index
    %c0_126 = arith.constant 0 : index
    %c0_127 = arith.constant 0 : index
    %129 = vector.load %arg4[%c2_125, %c0_126, %c0_127] : memref<3x96x192xf32, #tpu.memory_space<vmem>>, vector<1x96x192xf32>
    %130 = vector.shape_cast %129 : vector<1x96x192xf32> to vector<96x192xf32>
    %cst_128 = arith.constant dense<0.000000e+00> : vector<2x192xf32>
    %131 = tpu.matmul %128, %130, %cst_128 {dimension_numbers = #tpu.dot_dimension_numbers<[1], [0], [0], [1], [0, 0, 1, 1], [], []>} : vector<2x96xf32>, vector<96x192xf32>, vector<2x192xf32> -> vector<2x192xf32>
    %132 = arith.addf %126, %131 : vector<2x192xf32>
    %c0_129 = arith.constant 0 : index
    %c0_130 = arith.constant 0 : index
    %133 = vector.load %arg5[%c0_129, %c0_130] : memref<1x192xf32, #tpu.memory_space<vmem>>, vector<1x192xf32>
    %134 = vector.broadcast %133 : vector<1x192xf32> to vector<2x192xf32>
    %135 = arith.addf %132, %134 : vector<2x192xf32>
    %cst_131 = arith.constant 0.000000e+00 : f32
    %136 = vector.broadcast %cst_131 : f32 to vector<2x192xf32>
    %137 = arith.maximumf %135, %136 : vector<2x192xf32>
    %138 = arith.truncf %137 : vector<2x192xf32> to vector<2x192xbf16>
    %c3_132 = arith.constant 3 : index
    %c0_133 = arith.constant 0 : index
    %c0_134 = arith.constant 0 : index
    %139 = vector.load %arg6[%c3_132, %c0_133, %c0_134] : memref<12x192x128xbf16, #tpu.memory_space<vmem>>, vector<1x192x128xbf16>
    %140 = vector.shape_cast %139 : vector<1x192x128xbf16> to vector<192x128xbf16>
    %cst_135 = arith.constant dense<0.000000e+00> : vector<2x128xf32>
    %141 = tpu.matmul %138, %140, %cst_135 {dimension_numbers = #tpu.dot_dimension_numbers<[1], [0], [0], [1], [0, 0, 1, 1], [], []>} : vector<2x192xbf16>, vector<192x128xbf16>, vector<2x128xf32> -> vector<2x128xf32>
    %142 = arith.addf %113, %141 : vector<2x128xf32>
    %cst_136 = arith.constant 0.000000e+00 : f32
    %143 = vector.broadcast %cst_136 : f32 to vector<2x192xf32>
    %c0_137 = arith.constant 0 : index
    %c4_138 = arith.constant 4 : index
    %c0_139 = arith.constant 0 : index
    %144 = vector.load %arg13[%c0_137, %c4_138, %c0_139] : memref<2x16x96xf32, #tpu.memory_space<vmem>>, vector<2x1x96xf32>
    %145 = vector.shape_cast %144 : vector<2x1x96xf32> to vector<2x96xf32>
    %c0_140 = arith.constant 0 : index
    %c0_141 = arith.constant 0 : index
    %c0_142 = arith.constant 0 : index
    %146 = vector.load %arg4[%c0_140, %c0_141, %c0_142] : memref<3x96x192xf32, #tpu.memory_space<vmem>>, vector<1x96x192xf32>
    %147 = vector.shape_cast %146 : vector<1x96x192xf32> to vector<96x192xf32>
    %cst_143 = arith.constant dense<0.000000e+00> : vector<2x192xf32>
    %148 = tpu.matmul %145, %147, %cst_143 {dimension_numbers = #tpu.dot_dimension_numbers<[1], [0], [0], [1], [0, 0, 1, 1], [], []>} : vector<2x96xf32>, vector<96x192xf32>, vector<2x192xf32> -> vector<2x192xf32>
    %149 = arith.addf %143, %148 : vector<2x192xf32>
    %c0_144 = arith.constant 0 : index
    %c6_145 = arith.constant 6 : index
    %c0_146 = arith.constant 0 : index
    %150 = vector.load %arg13[%c0_144, %c6_145, %c0_146] : memref<2x16x96xf32, #tpu.memory_space<vmem>>, vector<2x1x96xf32>
    %151 = vector.shape_cast %150 : vector<2x1x96xf32> to vector<2x96xf32>
    %c1_147 = arith.constant 1 : index
    %c0_148 = arith.constant 0 : index
    %c0_149 = arith.constant 0 : index
    %152 = vector.load %arg4[%c1_147, %c0_148, %c0_149] : memref<3x96x192xf32, #tpu.memory_space<vmem>>, vector<1x96x192xf32>
    %153 = vector.shape_cast %152 : vector<1x96x192xf32> to vector<96x192xf32>
    %cst_150 = arith.constant dense<0.000000e+00> : vector<2x192xf32>
    %154 = tpu.matmul %151, %153, %cst_150 {dimension_numbers = #tpu.dot_dimension_numbers<[1], [0], [0], [1], [0, 0, 1, 1], [], []>} : vector<2x96xf32>, vector<96x192xf32>, vector<2x192xf32> -> vector<2x192xf32>
    %155 = arith.addf %149, %154 : vector<2x192xf32>
    %c0_151 = arith.constant 0 : index
    %c8 = arith.constant 8 : index
    %c0_152 = arith.constant 0 : index
    %156 = vector.load %arg13[%c0_151, %c8, %c0_152] : memref<2x16x96xf32, #tpu.memory_space<vmem>>, vector<2x1x96xf32>
    %157 = vector.shape_cast %156 : vector<2x1x96xf32> to vector<2x96xf32>
    %c2_153 = arith.constant 2 : index
    %c0_154 = arith.constant 0 : index
    %c0_155 = arith.constant 0 : index
    %158 = vector.load %arg4[%c2_153, %c0_154, %c0_155] : memref<3x96x192xf32, #tpu.memory_space<vmem>>, vector<1x96x192xf32>
    %159 = vector.shape_cast %158 : vector<1x96x192xf32> to vector<96x192xf32>
    %cst_156 = arith.constant dense<0.000000e+00> : vector<2x192xf32>
    %160 = tpu.matmul %157, %159, %cst_156 {dimension_numbers = #tpu.dot_dimension_numbers<[1], [0], [0], [1], [0, 0, 1, 1], [], []>} : vector<2x96xf32>, vector<96x192xf32>, vector<2x192xf32> -> vector<2x192xf32>
    %161 = arith.addf %155, %160 : vector<2x192xf32>
    %c0_157 = arith.constant 0 : index
    %c0_158 = arith.constant 0 : index
    %162 = vector.load %arg5[%c0_157, %c0_158] : memref<1x192xf32, #tpu.memory_space<vmem>>, vector<1x192xf32>
    %163 = vector.broadcast %162 : vector<1x192xf32> to vector<2x192xf32>
    %164 = arith.addf %161, %163 : vector<2x192xf32>
    %cst_159 = arith.constant 0.000000e+00 : f32
    %165 = vector.broadcast %cst_159 : f32 to vector<2x192xf32>
    %166 = arith.maximumf %164, %165 : vector<2x192xf32>
    %167 = arith.truncf %166 : vector<2x192xf32> to vector<2x192xbf16>
    %c4_160 = arith.constant 4 : index
    %c0_161 = arith.constant 0 : index
    %c0_162 = arith.constant 0 : index
    %168 = vector.load %arg6[%c4_160, %c0_161, %c0_162] : memref<12x192x128xbf16, #tpu.memory_space<vmem>>, vector<1x192x128xbf16>
    %169 = vector.shape_cast %168 : vector<1x192x128xbf16> to vector<192x128xbf16>
    %cst_163 = arith.constant dense<0.000000e+00> : vector<2x128xf32>
    %170 = tpu.matmul %167, %169, %cst_163 {dimension_numbers = #tpu.dot_dimension_numbers<[1], [0], [0], [1], [0, 0, 1, 1], [], []>} : vector<2x192xbf16>, vector<192x128xbf16>, vector<2x128xf32> -> vector<2x128xf32>
    %171 = arith.addf %142, %170 : vector<2x128xf32>
    %cst_164 = arith.constant 0.000000e+00 : f32
    %172 = vector.broadcast %cst_164 : f32 to vector<2x192xf32>
    %c0_165 = arith.constant 0 : index
    %c5_166 = arith.constant 5 : index
    %c0_167 = arith.constant 0 : index
    %173 = vector.load %arg13[%c0_165, %c5_166, %c0_167] : memref<2x16x96xf32, #tpu.memory_space<vmem>>, vector<2x1x96xf32>
    %174 = vector.shape_cast %173 : vector<2x1x96xf32> to vector<2x96xf32>
    %c0_168 = arith.constant 0 : index
    %c0_169 = arith.constant 0 : index
    %c0_170 = arith.constant 0 : index
    %175 = vector.load %arg4[%c0_168, %c0_169, %c0_170] : memref<3x96x192xf32, #tpu.memory_space<vmem>>, vector<1x96x192xf32>
    %176 = vector.shape_cast %175 : vector<1x96x192xf32> to vector<96x192xf32>
    %cst_171 = arith.constant dense<0.000000e+00> : vector<2x192xf32>
    %177 = tpu.matmul %174, %176, %cst_171 {dimension_numbers = #tpu.dot_dimension_numbers<[1], [0], [0], [1], [0, 0, 1, 1], [], []>} : vector<2x96xf32>, vector<96x192xf32>, vector<2x192xf32> -> vector<2x192xf32>
    %178 = arith.addf %172, %177 : vector<2x192xf32>
    %c0_172 = arith.constant 0 : index
    %c7_173 = arith.constant 7 : index
    %c0_174 = arith.constant 0 : index
    %179 = vector.load %arg13[%c0_172, %c7_173, %c0_174] : memref<2x16x96xf32, #tpu.memory_space<vmem>>, vector<2x1x96xf32>
    %180 = vector.shape_cast %179 : vector<2x1x96xf32> to vector<2x96xf32>
    %c1_175 = arith.constant 1 : index
    %c0_176 = arith.constant 0 : index
    %c0_177 = arith.constant 0 : index
    %181 = vector.load %arg4[%c1_175, %c0_176, %c0_177] : memref<3x96x192xf32, #tpu.memory_space<vmem>>, vector<1x96x192xf32>
    %182 = vector.shape_cast %181 : vector<1x96x192xf32> to vector<96x192xf32>
    %cst_178 = arith.constant dense<0.000000e+00> : vector<2x192xf32>
    %183 = tpu.matmul %180, %182, %cst_178 {dimension_numbers = #tpu.dot_dimension_numbers<[1], [0], [0], [1], [0, 0, 1, 1], [], []>} : vector<2x96xf32>, vector<96x192xf32>, vector<2x192xf32> -> vector<2x192xf32>
    %184 = arith.addf %178, %183 : vector<2x192xf32>
    %c0_179 = arith.constant 0 : index
    %c9 = arith.constant 9 : index
    %c0_180 = arith.constant 0 : index
    %185 = vector.load %arg13[%c0_179, %c9, %c0_180] : memref<2x16x96xf32, #tpu.memory_space<vmem>>, vector<2x1x96xf32>
    %186 = vector.shape_cast %185 : vector<2x1x96xf32> to vector<2x96xf32>
    %c2_181 = arith.constant 2 : index
    %c0_182 = arith.constant 0 : index
    %c0_183 = arith.constant 0 : index
    %187 = vector.load %arg4[%c2_181, %c0_182, %c0_183] : memref<3x96x192xf32, #tpu.memory_space<vmem>>, vector<1x96x192xf32>
    %188 = vector.shape_cast %187 : vector<1x96x192xf32> to vector<96x192xf32>
    %cst_184 = arith.constant dense<0.000000e+00> : vector<2x192xf32>
    %189 = tpu.matmul %186, %188, %cst_184 {dimension_numbers = #tpu.dot_dimension_numbers<[1], [0], [0], [1], [0, 0, 1, 1], [], []>} : vector<2x96xf32>, vector<96x192xf32>, vector<2x192xf32> -> vector<2x192xf32>
    %190 = arith.addf %184, %189 : vector<2x192xf32>
    %c0_185 = arith.constant 0 : index
    %c0_186 = arith.constant 0 : index
    %191 = vector.load %arg5[%c0_185, %c0_186] : memref<1x192xf32, #tpu.memory_space<vmem>>, vector<1x192xf32>
    %192 = vector.broadcast %191 : vector<1x192xf32> to vector<2x192xf32>
    %193 = arith.addf %190, %192 : vector<2x192xf32>
    %cst_187 = arith.constant 0.000000e+00 : f32
    %194 = vector.broadcast %cst_187 : f32 to vector<2x192xf32>
    %195 = arith.maximumf %193, %194 : vector<2x192xf32>
    %196 = arith.truncf %195 : vector<2x192xf32> to vector<2x192xbf16>
    %c5_188 = arith.constant 5 : index
    %c0_189 = arith.constant 0 : index
    %c0_190 = arith.constant 0 : index
    %197 = vector.load %arg6[%c5_188, %c0_189, %c0_190] : memref<12x192x128xbf16, #tpu.memory_space<vmem>>, vector<1x192x128xbf16>
    %198 = vector.shape_cast %197 : vector<1x192x128xbf16> to vector<192x128xbf16>
    %cst_191 = arith.constant dense<0.000000e+00> : vector<2x128xf32>
    %199 = tpu.matmul %196, %198, %cst_191 {dimension_numbers = #tpu.dot_dimension_numbers<[1], [0], [0], [1], [0, 0, 1, 1], [], []>} : vector<2x192xbf16>, vector<192x128xbf16>, vector<2x128xf32> -> vector<2x128xf32>
    %200 = arith.addf %171, %199 : vector<2x128xf32>
    %cst_192 = arith.constant 0.000000e+00 : f32
    %201 = vector.broadcast %cst_192 : f32 to vector<2x192xf32>
    %c0_193 = arith.constant 0 : index
    %c6_194 = arith.constant 6 : index
    %c0_195 = arith.constant 0 : index
    %202 = vector.load %arg13[%c0_193, %c6_194, %c0_195] : memref<2x16x96xf32, #tpu.memory_space<vmem>>, vector<2x1x96xf32>
    %203 = vector.shape_cast %202 : vector<2x1x96xf32> to vector<2x96xf32>
    %c0_196 = arith.constant 0 : index
    %c0_197 = arith.constant 0 : index
    %c0_198 = arith.constant 0 : index
    %204 = vector.load %arg4[%c0_196, %c0_197, %c0_198] : memref<3x96x192xf32, #tpu.memory_space<vmem>>, vector<1x96x192xf32>
    %205 = vector.shape_cast %204 : vector<1x96x192xf32> to vector<96x192xf32>
    %cst_199 = arith.constant dense<0.000000e+00> : vector<2x192xf32>
    %206 = tpu.matmul %203, %205, %cst_199 {dimension_numbers = #tpu.dot_dimension_numbers<[1], [0], [0], [1], [0, 0, 1, 1], [], []>} : vector<2x96xf32>, vector<96x192xf32>, vector<2x192xf32> -> vector<2x192xf32>
    %207 = arith.addf %201, %206 : vector<2x192xf32>
    %c0_200 = arith.constant 0 : index
    %c8_201 = arith.constant 8 : index
    %c0_202 = arith.constant 0 : index
    %208 = vector.load %arg13[%c0_200, %c8_201, %c0_202] : memref<2x16x96xf32, #tpu.memory_space<vmem>>, vector<2x1x96xf32>
    %209 = vector.shape_cast %208 : vector<2x1x96xf32> to vector<2x96xf32>
    %c1_203 = arith.constant 1 : index
    %c0_204 = arith.constant 0 : index
    %c0_205 = arith.constant 0 : index
    %210 = vector.load %arg4[%c1_203, %c0_204, %c0_205] : memref<3x96x192xf32, #tpu.memory_space<vmem>>, vector<1x96x192xf32>
    %211 = vector.shape_cast %210 : vector<1x96x192xf32> to vector<96x192xf32>
    %cst_206 = arith.constant dense<0.000000e+00> : vector<2x192xf32>
    %212 = tpu.matmul %209, %211, %cst_206 {dimension_numbers = #tpu.dot_dimension_numbers<[1], [0], [0], [1], [0, 0, 1, 1], [], []>} : vector<2x96xf32>, vector<96x192xf32>, vector<2x192xf32> -> vector<2x192xf32>
    %213 = arith.addf %207, %212 : vector<2x192xf32>
    %c0_207 = arith.constant 0 : index
    %c10 = arith.constant 10 : index
    %c0_208 = arith.constant 0 : index
    %214 = vector.load %arg13[%c0_207, %c10, %c0_208] : memref<2x16x96xf32, #tpu.memory_space<vmem>>, vector<2x1x96xf32>
    %215 = vector.shape_cast %214 : vector<2x1x96xf32> to vector<2x96xf32>
    %c2_209 = arith.constant 2 : index
    %c0_210 = arith.constant 0 : index
    %c0_211 = arith.constant 0 : index
    %216 = vector.load %arg4[%c2_209, %c0_210, %c0_211] : memref<3x96x192xf32, #tpu.memory_space<vmem>>, vector<1x96x192xf32>
    %217 = vector.shape_cast %216 : vector<1x96x192xf32> to vector<96x192xf32>
    %cst_212 = arith.constant dense<0.000000e+00> : vector<2x192xf32>
    %218 = tpu.matmul %215, %217, %cst_212 {dimension_numbers = #tpu.dot_dimension_numbers<[1], [0], [0], [1], [0, 0, 1, 1], [], []>} : vector<2x96xf32>, vector<96x192xf32>, vector<2x192xf32> -> vector<2x192xf32>
    %219 = arith.addf %213, %218 : vector<2x192xf32>
    %c0_213 = arith.constant 0 : index
    %c0_214 = arith.constant 0 : index
    %220 = vector.load %arg5[%c0_213, %c0_214] : memref<1x192xf32, #tpu.memory_space<vmem>>, vector<1x192xf32>
    %221 = vector.broadcast %220 : vector<1x192xf32> to vector<2x192xf32>
    %222 = arith.addf %219, %221 : vector<2x192xf32>
    %cst_215 = arith.constant 0.000000e+00 : f32
    %223 = vector.broadcast %cst_215 : f32 to vector<2x192xf32>
    %224 = arith.maximumf %222, %223 : vector<2x192xf32>
    %225 = arith.truncf %224 : vector<2x192xf32> to vector<2x192xbf16>
    %c6_216 = arith.constant 6 : index
    %c0_217 = arith.constant 0 : index
    %c0_218 = arith.constant 0 : index
    %226 = vector.load %arg6[%c6_216, %c0_217, %c0_218] : memref<12x192x128xbf16, #tpu.memory_space<vmem>>, vector<1x192x128xbf16>
    %227 = vector.shape_cast %226 : vector<1x192x128xbf16> to vector<192x128xbf16>
    %cst_219 = arith.constant dense<0.000000e+00> : vector<2x128xf32>
    %228 = tpu.matmul %225, %227, %cst_219 {dimension_numbers = #tpu.dot_dimension_numbers<[1], [0], [0], [1], [0, 0, 1, 1], [], []>} : vector<2x192xbf16>, vector<192x128xbf16>, vector<2x128xf32> -> vector<2x128xf32>
    %229 = arith.addf %200, %228 : vector<2x128xf32>
    %cst_220 = arith.constant 0.000000e+00 : f32
    %230 = vector.broadcast %cst_220 : f32 to vector<2x192xf32>
    %c0_221 = arith.constant 0 : index
    %c7_222 = arith.constant 7 : index
    %c0_223 = arith.constant 0 : index
    %231 = vector.load %arg13[%c0_221, %c7_222, %c0_223] : memref<2x16x96xf32, #tpu.memory_space<vmem>>, vector<2x1x96xf32>
    %232 = vector.shape_cast %231 : vector<2x1x96xf32> to vector<2x96xf32>
    %c0_224 = arith.constant 0 : index
    %c0_225 = arith.constant 0 : index
    %c0_226 = arith.constant 0 : index
    %233 = vector.load %arg4[%c0_224, %c0_225, %c0_226] : memref<3x96x192xf32, #tpu.memory_space<vmem>>, vector<1x96x192xf32>
    %234 = vector.shape_cast %233 : vector<1x96x192xf32> to vector<96x192xf32>
    %cst_227 = arith.constant dense<0.000000e+00> : vector<2x192xf32>
    %235 = tpu.matmul %232, %234, %cst_227 {dimension_numbers = #tpu.dot_dimension_numbers<[1], [0], [0], [1], [0, 0, 1, 1], [], []>} : vector<2x96xf32>, vector<96x192xf32>, vector<2x192xf32> -> vector<2x192xf32>
    %236 = arith.addf %230, %235 : vector<2x192xf32>
    %c0_228 = arith.constant 0 : index
    %c9_229 = arith.constant 9 : index
    %c0_230 = arith.constant 0 : index
    %237 = vector.load %arg13[%c0_228, %c9_229, %c0_230] : memref<2x16x96xf32, #tpu.memory_space<vmem>>, vector<2x1x96xf32>
    %238 = vector.shape_cast %237 : vector<2x1x96xf32> to vector<2x96xf32>
    %c1_231 = arith.constant 1 : index
    %c0_232 = arith.constant 0 : index
    %c0_233 = arith.constant 0 : index
    %239 = vector.load %arg4[%c1_231, %c0_232, %c0_233] : memref<3x96x192xf32, #tpu.memory_space<vmem>>, vector<1x96x192xf32>
    %240 = vector.shape_cast %239 : vector<1x96x192xf32> to vector<96x192xf32>
    %cst_234 = arith.constant dense<0.000000e+00> : vector<2x192xf32>
    %241 = tpu.matmul %238, %240, %cst_234 {dimension_numbers = #tpu.dot_dimension_numbers<[1], [0], [0], [1], [0, 0, 1, 1], [], []>} : vector<2x96xf32>, vector<96x192xf32>, vector<2x192xf32> -> vector<2x192xf32>
    %242 = arith.addf %236, %241 : vector<2x192xf32>
    %c0_235 = arith.constant 0 : index
    %c11 = arith.constant 11 : index
    %c0_236 = arith.constant 0 : index
    %243 = vector.load %arg13[%c0_235, %c11, %c0_236] : memref<2x16x96xf32, #tpu.memory_space<vmem>>, vector<2x1x96xf32>
    %244 = vector.shape_cast %243 : vector<2x1x96xf32> to vector<2x96xf32>
    %c2_237 = arith.constant 2 : index
    %c0_238 = arith.constant 0 : index
    %c0_239 = arith.constant 0 : index
    %245 = vector.load %arg4[%c2_237, %c0_238, %c0_239] : memref<3x96x192xf32, #tpu.memory_space<vmem>>, vector<1x96x192xf32>
    %246 = vector.shape_cast %245 : vector<1x96x192xf32> to vector<96x192xf32>
    %cst_240 = arith.constant dense<0.000000e+00> : vector<2x192xf32>
    %247 = tpu.matmul %244, %246, %cst_240 {dimension_numbers = #tpu.dot_dimension_numbers<[1], [0], [0], [1], [0, 0, 1, 1], [], []>} : vector<2x96xf32>, vector<96x192xf32>, vector<2x192xf32> -> vector<2x192xf32>
    %248 = arith.addf %242, %247 : vector<2x192xf32>
    %c0_241 = arith.constant 0 : index
    %c0_242 = arith.constant 0 : index
    %249 = vector.load %arg5[%c0_241, %c0_242] : memref<1x192xf32, #tpu.memory_space<vmem>>, vector<1x192xf32>
    %250 = vector.broadcast %249 : vector<1x192xf32> to vector<2x192xf32>
    %251 = arith.addf %248, %250 : vector<2x192xf32>
    %cst_243 = arith.constant 0.000000e+00 : f32
    %252 = vector.broadcast %cst_243 : f32 to vector<2x192xf32>
    %253 = arith.maximumf %251, %252 : vector<2x192xf32>
    %254 = arith.truncf %253 : vector<2x192xf32> to vector<2x192xbf16>
    %c7_244 = arith.constant 7 : index
    %c0_245 = arith.constant 0 : index
    %c0_246 = arith.constant 0 : index
    %255 = vector.load %arg6[%c7_244, %c0_245, %c0_246] : memref<12x192x128xbf16, #tpu.memory_space<vmem>>, vector<1x192x128xbf16>
    %256 = vector.shape_cast %255 : vector<1x192x128xbf16> to vector<192x128xbf16>
    %cst_247 = arith.constant dense<0.000000e+00> : vector<2x128xf32>
    %257 = tpu.matmul %254, %256, %cst_247 {dimension_numbers = #tpu.dot_dimension_numbers<[1], [0], [0], [1], [0, 0, 1, 1], [], []>} : vector<2x192xbf16>, vector<192x128xbf16>, vector<2x128xf32> -> vector<2x128xf32>
    %258 = arith.addf %229, %257 : vector<2x128xf32>
    %cst_248 = arith.constant 0.000000e+00 : f32
    %259 = vector.broadcast %cst_248 : f32 to vector<2x192xf32>
    %c0_249 = arith.constant 0 : index
    %c8_250 = arith.constant 8 : index
    %c0_251 = arith.constant 0 : index
    %260 = vector.load %arg13[%c0_249, %c8_250, %c0_251] : memref<2x16x96xf32, #tpu.memory_space<vmem>>, vector<2x1x96xf32>
    %261 = vector.shape_cast %260 : vector<2x1x96xf32> to vector<2x96xf32>
    %c0_252 = arith.constant 0 : index
    %c0_253 = arith.constant 0 : index
    %c0_254 = arith.constant 0 : index
    %262 = vector.load %arg4[%c0_252, %c0_253, %c0_254] : memref<3x96x192xf32, #tpu.memory_space<vmem>>, vector<1x96x192xf32>
    %263 = vector.shape_cast %262 : vector<1x96x192xf32> to vector<96x192xf32>
    %cst_255 = arith.constant dense<0.000000e+00> : vector<2x192xf32>
    %264 = tpu.matmul %261, %263, %cst_255 {dimension_numbers = #tpu.dot_dimension_numbers<[1], [0], [0], [1], [0, 0, 1, 1], [], []>} : vector<2x96xf32>, vector<96x192xf32>, vector<2x192xf32> -> vector<2x192xf32>
    %265 = arith.addf %259, %264 : vector<2x192xf32>
    %c0_256 = arith.constant 0 : index
    %c10_257 = arith.constant 10 : index
    %c0_258 = arith.constant 0 : index
    %266 = vector.load %arg13[%c0_256, %c10_257, %c0_258] : memref<2x16x96xf32, #tpu.memory_space<vmem>>, vector<2x1x96xf32>
    %267 = vector.shape_cast %266 : vector<2x1x96xf32> to vector<2x96xf32>
    %c1_259 = arith.constant 1 : index
    %c0_260 = arith.constant 0 : index
    %c0_261 = arith.constant 0 : index
    %268 = vector.load %arg4[%c1_259, %c0_260, %c0_261] : memref<3x96x192xf32, #tpu.memory_space<vmem>>, vector<1x96x192xf32>
    %269 = vector.shape_cast %268 : vector<1x96x192xf32> to vector<96x192xf32>
    %cst_262 = arith.constant dense<0.000000e+00> : vector<2x192xf32>
    %270 = tpu.matmul %267, %269, %cst_262 {dimension_numbers = #tpu.dot_dimension_numbers<[1], [0], [0], [1], [0, 0, 1, 1], [], []>} : vector<2x96xf32>, vector<96x192xf32>, vector<2x192xf32> -> vector<2x192xf32>
    %271 = arith.addf %265, %270 : vector<2x192xf32>
    %c0_263 = arith.constant 0 : index
    %c12 = arith.constant 12 : index
    %c0_264 = arith.constant 0 : index
    %272 = vector.load %arg13[%c0_263, %c12, %c0_264] : memref<2x16x96xf32, #tpu.memory_space<vmem>>, vector<2x1x96xf32>
    %273 = vector.shape_cast %272 : vector<2x1x96xf32> to vector<2x96xf32>
    %c2_265 = arith.constant 2 : index
    %c0_266 = arith.constant 0 : index
    %c0_267 = arith.constant 0 : index
    %274 = vector.load %arg4[%c2_265, %c0_266, %c0_267] : memref<3x96x192xf32, #tpu.memory_space<vmem>>, vector<1x96x192xf32>
    %275 = vector.shape_cast %274 : vector<1x96x192xf32> to vector<96x192xf32>
    %cst_268 = arith.constant dense<0.000000e+00> : vector<2x192xf32>
    %276 = tpu.matmul %273, %275, %cst_268 {dimension_numbers = #tpu.dot_dimension_numbers<[1], [0], [0], [1], [0, 0, 1, 1], [], []>} : vector<2x96xf32>, vector<96x192xf32>, vector<2x192xf32> -> vector<2x192xf32>
    %277 = arith.addf %271, %276 : vector<2x192xf32>
    %c0_269 = arith.constant 0 : index
    %c0_270 = arith.constant 0 : index
    %278 = vector.load %arg5[%c0_269, %c0_270] : memref<1x192xf32, #tpu.memory_space<vmem>>, vector<1x192xf32>
    %279 = vector.broadcast %278 : vector<1x192xf32> to vector<2x192xf32>
    %280 = arith.addf %277, %279 : vector<2x192xf32>
    %cst_271 = arith.constant 0.000000e+00 : f32
    %281 = vector.broadcast %cst_271 : f32 to vector<2x192xf32>
    %282 = arith.maximumf %280, %281 : vector<2x192xf32>
    %283 = arith.truncf %282 : vector<2x192xf32> to vector<2x192xbf16>
    %c8_272 = arith.constant 8 : index
    %c0_273 = arith.constant 0 : index
    %c0_274 = arith.constant 0 : index
    %284 = vector.load %arg6[%c8_272, %c0_273, %c0_274] : memref<12x192x128xbf16, #tpu.memory_space<vmem>>, vector<1x192x128xbf16>
    %285 = vector.shape_cast %284 : vector<1x192x128xbf16> to vector<192x128xbf16>
    %cst_275 = arith.constant dense<0.000000e+00> : vector<2x128xf32>
    %286 = tpu.matmul %283, %285, %cst_275 {dimension_numbers = #tpu.dot_dimension_numbers<[1], [0], [0], [1], [0, 0, 1, 1], [], []>} : vector<2x192xbf16>, vector<192x128xbf16>, vector<2x128xf32> -> vector<2x128xf32>
    %287 = arith.addf %258, %286 : vector<2x128xf32>
    %cst_276 = arith.constant 0.000000e+00 : f32
    %288 = vector.broadcast %cst_276 : f32 to vector<2x192xf32>
    %c0_277 = arith.constant 0 : index
    %c9_278 = arith.constant 9 : index
    %c0_279 = arith.constant 0 : index
    %289 = vector.load %arg13[%c0_277, %c9_278, %c0_279] : memref<2x16x96xf32, #tpu.memory_space<vmem>>, vector<2x1x96xf32>
    %290 = vector.shape_cast %289 : vector<2x1x96xf32> to vector<2x96xf32>
    %c0_280 = arith.constant 0 : index
    %c0_281 = arith.constant 0 : index
    %c0_282 = arith.constant 0 : index
    %291 = vector.load %arg4[%c0_280, %c0_281, %c0_282] : memref<3x96x192xf32, #tpu.memory_space<vmem>>, vector<1x96x192xf32>
    %292 = vector.shape_cast %291 : vector<1x96x192xf32> to vector<96x192xf32>
    %cst_283 = arith.constant dense<0.000000e+00> : vector<2x192xf32>
    %293 = tpu.matmul %290, %292, %cst_283 {dimension_numbers = #tpu.dot_dimension_numbers<[1], [0], [0], [1], [0, 0, 1, 1], [], []>} : vector<2x96xf32>, vector<96x192xf32>, vector<2x192xf32> -> vector<2x192xf32>
    %294 = arith.addf %288, %293 : vector<2x192xf32>
    %c0_284 = arith.constant 0 : index
    %c11_285 = arith.constant 11 : index
    %c0_286 = arith.constant 0 : index
    %295 = vector.load %arg13[%c0_284, %c11_285, %c0_286] : memref<2x16x96xf32, #tpu.memory_space<vmem>>, vector<2x1x96xf32>
    %296 = vector.shape_cast %295 : vector<2x1x96xf32> to vector<2x96xf32>
    %c1_287 = arith.constant 1 : index
    %c0_288 = arith.constant 0 : index
    %c0_289 = arith.constant 0 : index
    %297 = vector.load %arg4[%c1_287, %c0_288, %c0_289] : memref<3x96x192xf32, #tpu.memory_space<vmem>>, vector<1x96x192xf32>
    %298 = vector.shape_cast %297 : vector<1x96x192xf32> to vector<96x192xf32>
    %cst_290 = arith.constant dense<0.000000e+00> : vector<2x192xf32>
    %299 = tpu.matmul %296, %298, %cst_290 {dimension_numbers = #tpu.dot_dimension_numbers<[1], [0], [0], [1], [0, 0, 1, 1], [], []>} : vector<2x96xf32>, vector<96x192xf32>, vector<2x192xf32> -> vector<2x192xf32>
    %300 = arith.addf %294, %299 : vector<2x192xf32>
    %c0_291 = arith.constant 0 : index
    %c13 = arith.constant 13 : index
    %c0_292 = arith.constant 0 : index
    %301 = vector.load %arg13[%c0_291, %c13, %c0_292] : memref<2x16x96xf32, #tpu.memory_space<vmem>>, vector<2x1x96xf32>
    %302 = vector.shape_cast %301 : vector<2x1x96xf32> to vector<2x96xf32>
    %c2_293 = arith.constant 2 : index
    %c0_294 = arith.constant 0 : index
    %c0_295 = arith.constant 0 : index
    %303 = vector.load %arg4[%c2_293, %c0_294, %c0_295] : memref<3x96x192xf32, #tpu.memory_space<vmem>>, vector<1x96x192xf32>
    %304 = vector.shape_cast %303 : vector<1x96x192xf32> to vector<96x192xf32>
    %cst_296 = arith.constant dense<0.000000e+00> : vector<2x192xf32>
    %305 = tpu.matmul %302, %304, %cst_296 {dimension_numbers = #tpu.dot_dimension_numbers<[1], [0], [0], [1], [0, 0, 1, 1], [], []>} : vector<2x96xf32>, vector<96x192xf32>, vector<2x192xf32> -> vector<2x192xf32>
    %306 = arith.addf %300, %305 : vector<2x192xf32>
    %c0_297 = arith.constant 0 : index
    %c0_298 = arith.constant 0 : index
    %307 = vector.load %arg5[%c0_297, %c0_298] : memref<1x192xf32, #tpu.memory_space<vmem>>, vector<1x192xf32>
    %308 = vector.broadcast %307 : vector<1x192xf32> to vector<2x192xf32>
    %309 = arith.addf %306, %308 : vector<2x192xf32>
    %cst_299 = arith.constant 0.000000e+00 : f32
    %310 = vector.broadcast %cst_299 : f32 to vector<2x192xf32>
    %311 = arith.maximumf %309, %310 : vector<2x192xf32>
    %312 = arith.truncf %311 : vector<2x192xf32> to vector<2x192xbf16>
    %c9_300 = arith.constant 9 : index
    %c0_301 = arith.constant 0 : index
    %c0_302 = arith.constant 0 : index
    %313 = vector.load %arg6[%c9_300, %c0_301, %c0_302] : memref<12x192x128xbf16, #tpu.memory_space<vmem>>, vector<1x192x128xbf16>
    %314 = vector.shape_cast %313 : vector<1x192x128xbf16> to vector<192x128xbf16>
    %cst_303 = arith.constant dense<0.000000e+00> : vector<2x128xf32>
    %315 = tpu.matmul %312, %314, %cst_303 {dimension_numbers = #tpu.dot_dimension_numbers<[1], [0], [0], [1], [0, 0, 1, 1], [], []>} : vector<2x192xbf16>, vector<192x128xbf16>, vector<2x128xf32> -> vector<2x128xf32>
    %316 = arith.addf %287, %315 : vector<2x128xf32>
    %cst_304 = arith.constant 0.000000e+00 : f32
    %317 = vector.broadcast %cst_304 : f32 to vector<2x192xf32>
    %c0_305 = arith.constant 0 : index
    %c10_306 = arith.constant 10 : index
    %c0_307 = arith.constant 0 : index
    %318 = vector.load %arg13[%c0_305, %c10_306, %c0_307] : memref<2x16x96xf32, #tpu.memory_space<vmem>>, vector<2x1x96xf32>
    %319 = vector.shape_cast %318 : vector<2x1x96xf32> to vector<2x96xf32>
    %c0_308 = arith.constant 0 : index
    %c0_309 = arith.constant 0 : index
    %c0_310 = arith.constant 0 : index
    %320 = vector.load %arg4[%c0_308, %c0_309, %c0_310] : memref<3x96x192xf32, #tpu.memory_space<vmem>>, vector<1x96x192xf32>
    %321 = vector.shape_cast %320 : vector<1x96x192xf32> to vector<96x192xf32>
    %cst_311 = arith.constant dense<0.000000e+00> : vector<2x192xf32>
    %322 = tpu.matmul %319, %321, %cst_311 {dimension_numbers = #tpu.dot_dimension_numbers<[1], [0], [0], [1], [0, 0, 1, 1], [], []>} : vector<2x96xf32>, vector<96x192xf32>, vector<2x192xf32> -> vector<2x192xf32>
    %323 = arith.addf %317, %322 : vector<2x192xf32>
    %c0_312 = arith.constant 0 : index
    %c12_313 = arith.constant 12 : index
    %c0_314 = arith.constant 0 : index
    %324 = vector.load %arg13[%c0_312, %c12_313, %c0_314] : memref<2x16x96xf32, #tpu.memory_space<vmem>>, vector<2x1x96xf32>
    %325 = vector.shape_cast %324 : vector<2x1x96xf32> to vector<2x96xf32>
    %c1_315 = arith.constant 1 : index
    %c0_316 = arith.constant 0 : index
    %c0_317 = arith.constant 0 : index
    %326 = vector.load %arg4[%c1_315, %c0_316, %c0_317] : memref<3x96x192xf32, #tpu.memory_space<vmem>>, vector<1x96x192xf32>
    %327 = vector.shape_cast %326 : vector<1x96x192xf32> to vector<96x192xf32>
    %cst_318 = arith.constant dense<0.000000e+00> : vector<2x192xf32>
    %328 = tpu.matmul %325, %327, %cst_318 {dimension_numbers = #tpu.dot_dimension_numbers<[1], [0], [0], [1], [0, 0, 1, 1], [], []>} : vector<2x96xf32>, vector<96x192xf32>, vector<2x192xf32> -> vector<2x192xf32>
    %329 = arith.addf %323, %328 : vector<2x192xf32>
    %c0_319 = arith.constant 0 : index
    %c14 = arith.constant 14 : index
    %c0_320 = arith.constant 0 : index
    %330 = vector.load %arg13[%c0_319, %c14, %c0_320] : memref<2x16x96xf32, #tpu.memory_space<vmem>>, vector<2x1x96xf32>
    %331 = vector.shape_cast %330 : vector<2x1x96xf32> to vector<2x96xf32>
    %c2_321 = arith.constant 2 : index
    %c0_322 = arith.constant 0 : index
    %c0_323 = arith.constant 0 : index
    %332 = vector.load %arg4[%c2_321, %c0_322, %c0_323] : memref<3x96x192xf32, #tpu.memory_space<vmem>>, vector<1x96x192xf32>
    %333 = vector.shape_cast %332 : vector<1x96x192xf32> to vector<96x192xf32>
    %cst_324 = arith.constant dense<0.000000e+00> : vector<2x192xf32>
    %334 = tpu.matmul %331, %333, %cst_324 {dimension_numbers = #tpu.dot_dimension_numbers<[1], [0], [0], [1], [0, 0, 1, 1], [], []>} : vector<2x96xf32>, vector<96x192xf32>, vector<2x192xf32> -> vector<2x192xf32>
    %335 = arith.addf %329, %334 : vector<2x192xf32>
    %c0_325 = arith.constant 0 : index
    %c0_326 = arith.constant 0 : index
    %336 = vector.load %arg5[%c0_325, %c0_326] : memref<1x192xf32, #tpu.memory_space<vmem>>, vector<1x192xf32>
    %337 = vector.broadcast %336 : vector<1x192xf32> to vector<2x192xf32>
    %338 = arith.addf %335, %337 : vector<2x192xf32>
    %cst_327 = arith.constant 0.000000e+00 : f32
    %339 = vector.broadcast %cst_327 : f32 to vector<2x192xf32>
    %340 = arith.maximumf %338, %339 : vector<2x192xf32>
    %341 = arith.truncf %340 : vector<2x192xf32> to vector<2x192xbf16>
    %c10_328 = arith.constant 10 : index
    %c0_329 = arith.constant 0 : index
    %c0_330 = arith.constant 0 : index
    %342 = vector.load %arg6[%c10_328, %c0_329, %c0_330] : memref<12x192x128xbf16, #tpu.memory_space<vmem>>, vector<1x192x128xbf16>
    %343 = vector.shape_cast %342 : vector<1x192x128xbf16> to vector<192x128xbf16>
    %cst_331 = arith.constant dense<0.000000e+00> : vector<2x128xf32>
    %344 = tpu.matmul %341, %343, %cst_331 {dimension_numbers = #tpu.dot_dimension_numbers<[1], [0], [0], [1], [0, 0, 1, 1], [], []>} : vector<2x192xbf16>, vector<192x128xbf16>, vector<2x128xf32> -> vector<2x128xf32>
    %345 = arith.addf %316, %344 : vector<2x128xf32>
    %cst_332 = arith.constant 0.000000e+00 : f32
    %346 = vector.broadcast %cst_332 : f32 to vector<2x192xf32>
    %c0_333 = arith.constant 0 : index
    %c11_334 = arith.constant 11 : index
    %c0_335 = arith.constant 0 : index
    %347 = vector.load %arg13[%c0_333, %c11_334, %c0_335] : memref<2x16x96xf32, #tpu.memory_space<vmem>>, vector<2x1x96xf32>
    %348 = vector.shape_cast %347 : vector<2x1x96xf32> to vector<2x96xf32>
    %c0_336 = arith.constant 0 : index
    %c0_337 = arith.constant 0 : index
    %c0_338 = arith.constant 0 : index
    %349 = vector.load %arg4[%c0_336, %c0_337, %c0_338] : memref<3x96x192xf32, #tpu.memory_space<vmem>>, vector<1x96x192xf32>
    %350 = vector.shape_cast %349 : vector<1x96x192xf32> to vector<96x192xf32>
    %cst_339 = arith.constant dense<0.000000e+00> : vector<2x192xf32>
    %351 = tpu.matmul %348, %350, %cst_339 {dimension_numbers = #tpu.dot_dimension_numbers<[1], [0], [0], [1], [0, 0, 1, 1], [], []>} : vector<2x96xf32>, vector<96x192xf32>, vector<2x192xf32> -> vector<2x192xf32>
    %352 = arith.addf %346, %351 : vector<2x192xf32>
    %c0_340 = arith.constant 0 : index
    %c13_341 = arith.constant 13 : index
    %c0_342 = arith.constant 0 : index
    %353 = vector.load %arg13[%c0_340, %c13_341, %c0_342] : memref<2x16x96xf32, #tpu.memory_space<vmem>>, vector<2x1x96xf32>
    %354 = vector.shape_cast %353 : vector<2x1x96xf32> to vector<2x96xf32>
    %c1_343 = arith.constant 1 : index
    %c0_344 = arith.constant 0 : index
    %c0_345 = arith.constant 0 : index
    %355 = vector.load %arg4[%c1_343, %c0_344, %c0_345] : memref<3x96x192xf32, #tpu.memory_space<vmem>>, vector<1x96x192xf32>
    %356 = vector.shape_cast %355 : vector<1x96x192xf32> to vector<96x192xf32>
    %cst_346 = arith.constant dense<0.000000e+00> : vector<2x192xf32>
    %357 = tpu.matmul %354, %356, %cst_346 {dimension_numbers = #tpu.dot_dimension_numbers<[1], [0], [0], [1], [0, 0, 1, 1], [], []>} : vector<2x96xf32>, vector<96x192xf32>, vector<2x192xf32> -> vector<2x192xf32>
    %358 = arith.addf %352, %357 : vector<2x192xf32>
    %c0_347 = arith.constant 0 : index
    %c15 = arith.constant 15 : index
    %c0_348 = arith.constant 0 : index
    %359 = vector.load %arg13[%c0_347, %c15, %c0_348] : memref<2x16x96xf32, #tpu.memory_space<vmem>>, vector<2x1x96xf32>
    %360 = vector.shape_cast %359 : vector<2x1x96xf32> to vector<2x96xf32>
    %c2_349 = arith.constant 2 : index
    %c0_350 = arith.constant 0 : index
    %c0_351 = arith.constant 0 : index
    %361 = vector.load %arg4[%c2_349, %c0_350, %c0_351] : memref<3x96x192xf32, #tpu.memory_space<vmem>>, vector<1x96x192xf32>
    %362 = vector.shape_cast %361 : vector<1x96x192xf32> to vector<96x192xf32>
    %cst_352 = arith.constant dense<0.000000e+00> : vector<2x192xf32>
    %363 = tpu.matmul %360, %362, %cst_352 {dimension_numbers = #tpu.dot_dimension_numbers<[1], [0], [0], [1], [0, 0, 1, 1], [], []>} : vector<2x96xf32>, vector<96x192xf32>, vector<2x192xf32> -> vector<2x192xf32>
    %364 = arith.addf %358, %363 : vector<2x192xf32>
    %c0_353 = arith.constant 0 : index
    %c0_354 = arith.constant 0 : index
    %365 = vector.load %arg5[%c0_353, %c0_354] : memref<1x192xf32, #tpu.memory_space<vmem>>, vector<1x192xf32>
    %366 = vector.broadcast %365 : vector<1x192xf32> to vector<2x192xf32>
    %367 = arith.addf %364, %366 : vector<2x192xf32>
    %cst_355 = arith.constant 0.000000e+00 : f32
    %368 = vector.broadcast %cst_355 : f32 to vector<2x192xf32>
    %369 = arith.maximumf %367, %368 : vector<2x192xf32>
    %370 = arith.truncf %369 : vector<2x192xf32> to vector<2x192xbf16>
    %c11_356 = arith.constant 11 : index
    %c0_357 = arith.constant 0 : index
    %c0_358 = arith.constant 0 : index
    %371 = vector.load %arg6[%c11_356, %c0_357, %c0_358] : memref<12x192x128xbf16, #tpu.memory_space<vmem>>, vector<1x192x128xbf16>
    %372 = vector.shape_cast %371 : vector<1x192x128xbf16> to vector<192x128xbf16>
    %cst_359 = arith.constant dense<0.000000e+00> : vector<2x128xf32>
    %373 = tpu.matmul %370, %372, %cst_359 {dimension_numbers = #tpu.dot_dimension_numbers<[1], [0], [0], [1], [0, 0, 1, 1], [], []>} : vector<2x192xbf16>, vector<192x128xbf16>, vector<2x128xf32> -> vector<2x128xf32>
    %374 = arith.addf %345, %373 : vector<2x128xf32>
    %c0_360 = arith.constant 0 : index
    %c0_361 = arith.constant 0 : index
    %375 = vector.load %arg7[%c0_360, %c0_361] : memref<1x128xf32, #tpu.memory_space<vmem>>, vector<1x128xf32>
    %376 = vector.broadcast %375 : vector<1x128xf32> to vector<2x128xf32>
    %377 = arith.addf %374, %376 : vector<2x128xf32>
    %cst_362 = arith.constant 0.000000e+00 : f32
    %378 = vector.broadcast %cst_362 : f32 to vector<2x128xf32>
    %379 = arith.maximumf %377, %378 : vector<2x128xf32>
    %380 = arith.truncf %379 : vector<2x128xf32> to vector<2x128xbf16>
    %c0_363 = arith.constant 0 : index
    %c0_364 = arith.constant 0 : index
    %381 = vector.load %arg8[%c0_363, %c0_364] : memref<128x128xbf16, #tpu.memory_space<vmem>>, vector<128x128xbf16>
    %cst_365 = arith.constant dense<0.000000e+00> : vector<2x128xf32>
    %382 = tpu.matmul %380, %381, %cst_365 {dimension_numbers = #tpu.dot_dimension_numbers<[1], [0], [0], [1], [0, 0, 1, 1], [], []>} : vector<2x128xbf16>, vector<128x128xbf16>, vector<2x128xf32> -> vector<2x128xf32>
    %c0_366 = arith.constant 0 : index
    %c0_367 = arith.constant 0 : index
    %383 = vector.load %arg9[%c0_366, %c0_367] : memref<1x128xf32, #tpu.memory_space<vmem>>, vector<1x128xf32>
    %384 = vector.broadcast %383 : vector<1x128xf32> to vector<2x128xf32>
    %385 = arith.addf %382, %384 : vector<2x128xf32>
    %cst_368 = arith.constant 0.000000e+00 : f32
    %386 = vector.broadcast %cst_368 : f32 to vector<2x128xf32>
    %387 = arith.maximumf %385, %386 : vector<2x128xf32>
    %388 = arith.truncf %387 : vector<2x128xf32> to vector<2x128xbf16>
    %c0_369 = arith.constant 0 : index
    %c0_370 = arith.constant 0 : index
    %389 = vector.load %arg10[%c0_369, %c0_370] : memref<128x128xbf16, #tpu.memory_space<vmem>>, vector<128x128xbf16>
    %cst_371 = arith.constant dense<0.000000e+00> : vector<2x128xf32>
    %390 = tpu.matmul %388, %389, %cst_371 {dimension_numbers = #tpu.dot_dimension_numbers<[1], [0], [0], [1], [0, 0, 1, 1], [], []>} : vector<2x128xbf16>, vector<128x128xbf16>, vector<2x128xf32> -> vector<2x128xf32>
    %c0_372 = arith.constant 0 : index
    %c0_373 = arith.constant 0 : index
    %391 = vector.load %arg11[%c0_372, %c0_373] : memref<1x128xf32, #tpu.memory_space<vmem>>, vector<1x128xf32>
    %392 = vector.broadcast %391 : vector<1x128xf32> to vector<2x128xf32>
    %393 = arith.addf %390, %392 : vector<2x128xf32>
    %c0_374 = arith.constant 0 : index
    %c0_375 = arith.constant 0 : index
    %394 = vector.load %arg12[%c0_374, %c0_375] : memref<2x128xf32, #tpu.memory_space<vmem>>, vector<2x128xf32>
    tpu.vector_store %arg12[%c0_374, %c0_375], %393 {strides = array<i32>} : memref<2x128xf32, #tpu.memory_space<vmem>>, vector<2x128xf32>,
    return
  }
  func.func @transform_0(%arg0: i32) -> (i32, i32, i32) {
    %c0_i32 = arith.constant 0 : i32
    %c0_i32_0 = arith.constant 0 : i32
    %c0_i32_1 = arith.constant 0 : i32
    return %arg0, %c0_i32, %c0_i32_0 : i32, i32, i32
  }
  func.func @transform_1(%arg0: i32) -> (i32, i32, i32) {
    %c0_i32 = arith.constant 0 : i32
    %c0_i32_0 = arith.constant 0 : i32
    %c0_i32_1 = arith.constant 0 : i32
    %c0_i32_2 = arith.constant 0 : i32
    return %c0_i32, %c0_i32_0, %c0_i32_1 : i32, i32, i32
  }
  func.func @transform_2(%arg0: i32) -> (i32, i32) {
    %c0_i32 = arith.constant 0 : i32
    %c0_i32_0 = arith.constant 0 : i32
    %c0_i32_1 = arith.constant 0 : i32
    return %c0_i32, %c0_i32_0 : i32, i32
  }
  func.func @transform_3(%arg0: i32) -> (i32, i32, i32) {
    %c0_i32 = arith.constant 0 : i32
    %c0_i32_0 = arith.constant 0 : i32
    %c0_i32_1 = arith.constant 0 : i32
    %c0_i32_2 = arith.constant 0 : i32
    return %c0_i32, %c0_i32_0, %c0_i32_1 : i32, i32, i32
  }
  func.func @transform_4(%arg0: i32) -> (i32, i32) {
    %c0_i32 = arith.constant 0 : i32
    %c0_i32_0 = arith.constant 0 : i32
    %c0_i32_1 = arith.constant 0 : i32
    return %c0_i32, %c0_i32_0 : i32, i32
  }
  func.func @transform_5(%arg0: i32) -> (i32, i32, i32) {
    %c0_i32 = arith.constant 0 : i32
    %c0_i32_0 = arith.constant 0 : i32
    %c0_i32_1 = arith.constant 0 : i32
    %c0_i32_2 = arith.constant 0 : i32
    return %c0_i32, %c0_i32_0, %c0_i32_1 : i32, i32, i32
  }
  func.func @transform_6(%arg0: i32) -> (i32, i32) {
    %c0_i32 = arith.constant 0 : i32
    %c0_i32_0 = arith.constant 0 : i32
    %c0_i32_1 = arith.constant 0 : i32
    return %c0_i32, %c0_i32_0 : i32, i32
  }
  func.func @transform_7(%arg0: i32) -> (i32, i32) {
    %c0_i32 = arith.constant 0 : i32
    %c0_i32_0 = arith.constant 0 : i32
    %c0_i32_1 = arith.constant 0 : i32
    return %c0_i32, %c0_i32_0 : i32, i32
  }
  func.func @transform_8(%arg0: i32) -> (i32, i32) {
    %c0_i32 = arith.constant 0 : i32
    %c0_i32_0 = arith.constant 0 : i32
    %c0_i32_1 = arith.constant 0 : i32
    return %c0_i32, %c0_i32_0 : i32, i32
  }
  func.func @transform_9(%arg0: i32) -> (i32, i32) {
    %c0_i32 = arith.constant 0 : i32
    %c0_i32_0 = arith.constant 0 : i32
    %c0_i32_1 = arith.constant 0 : i32
    return %c0_i32, %c0_i32_0 : i32, i32
  }
  func.func @transform_10(%arg0: i32) -> (i32, i32) {
    %c0_i32 = arith.constant 0 : i32
    %c0_i32_0 = arith.constant 0 : i32
    %c0_i32_1 = arith.constant 0 : i32
    return %c0_i32, %c0_i32_0 : i32, i32
  }
  func.func @transform_11(%arg0: i32) -> (i32, i32) {
    %c0_i32 = arith.constant 0 : i32
    %c0_i32_0 = arith.constant 0 : i32
    return %arg0, %c0_i32 : i32, i32
  }
}

</mosaic_0001>

<llo_original>
// kernel: dilated_cnn_forward.1
$region0: #{dilated_cnn_forward.1}
  #allocation0 [shape = 'u32[]', space=smem, size = 0x4, offset = 0x4, fixed_abs, tag = 'smem constant byte address 0x4 - core index']
  #allocation1 [shape = 'u32[72,128]{1,0:T(1,128)}', space=vmem, size = 0x9000, scoped, tag = 'internal scratch']
  #allocation2 [shape = 'f32[2,16,96]{2,1,0:T(8,128)}', space=vmem, size = 0x4000, scoped, tag = 'scratch operand']
  %s0 = inlined_call_operand.vmem [shape: f32[2,20,60], index: 0, kind: input, shape index: {}]
  %s1 = inlined_call_operand.vmem [shape: f32[3,60,96], index: 1, kind: input, shape index: {}]
  %s2 = inlined_call_operand.vmem [shape: f32[1,96], index: 2, kind: input, shape index: {}]
  %s3 = inlined_call_operand.hbm [shape: f32[3,96,192], index: 3, kind: input, shape index: {}]
  %s4 = inlined_call_operand.vmem [shape: f32[1,192], index: 4, kind: input, shape index: {}]
  %s5 = inlined_call_operand.hbm [shape: bf16[12,192,128], index: 5, kind: input, shape index: {}]
  %s6 = inlined_call_operand.vmem [shape: f32[1,128], index: 6, kind: input, shape index: {}]
  %s7 = inlined_call_operand.vmem [shape: bf16[128,128], index: 7, kind: input, shape index: {}]
  %s8 = inlined_call_operand.vmem [shape: f32[1,128], index: 8, kind: input, shape index: {}]
  %s9 = inlined_call_operand.vmem [shape: bf16[128,128], index: 9, kind: input, shape index: {}]
  %s10 = inlined_call_operand.vmem [shape: f32[1,128], index: 10, kind: input, shape index: {}]
  %s11 = inlined_call_operand.hbm [shape: f32[2,128], index: 11, kind: output, shape index: {}]
  %s12 = sld [smem:[#allocation0]]
  $region62: #{dilated_cnn_forward.1} parent=0
    _
  %s14 = ssub.s32 1, %s12
  %s15 = scalar_select 0, %s14, %s12
  $region1: #{dilated_cnn_forward.1} parent=0
    #allocation3 [shape = 'u8[294912]{0}', space=vmem, size = 0x48000, scoped, tag = 'input window, operand 3, single buffered']
    #allocation4 [shape = 's32[1]{0}', space=sflag, size = 0x4, scoped, tag = 'scoped memory for dilated_cnn_forward.1']
    #allocation5 [shape = 's32[1]{0}', space=sflag, size = 0x4, scoped, tag = 'scoped memory for dilated_cnn_forward.1']
    #allocation6 [shape = 'u8[589824]{0}', space=vmem, size = 0x90000, scoped, tag = 'input window, operand 5, single buffered']
    #allocation7 [shape = 's32[1]{0}', space=sflag, size = 0x4, scoped, tag = 'scoped memory for dilated_cnn_forward.1']
    #allocation8 [shape = 'u8[1024]{0}', space=vmem, size = 0x400, scoped, tag = 'output window, operand 0, single buffered']
    %16 = vsyncpa [#allocation4], 0
    %17 = vsyncpa [#allocation7], 0
    %18 = vsyncpa [#allocation5], 0
    // Predicated region
    $region2: #{dilated_cnn_forward.1} parent=1 // pred_check
      _
    $region3: #{dilated_cnn_forward.1} parent=1 // pred_check_branch
      %20 = sbr.rel (0) target = $region5
    $region4: #{dilated_cnn_forward.1} parent=1 // pred_region
      _
    $region5: #{dilated_cnn_forward.1} parent=1 // pred_fallthru
      _
    // Predicated region
    $region6: #{dilated_cnn_forward.1} parent=1 // pred_check
      _
    $region7: #{dilated_cnn_forward.1} parent=1 // pred_check_branch
      %22 = sbr.rel (0) target = $region9
    $region8: #{dilated_cnn_forward.1} parent=1 // pred_region
      _
    $region9: #{dilated_cnn_forward.1} parent=1 // pred_fallthru
      _
    // Predicated region
    $region10: #{dilated_cnn_forward.1} parent=1 // pred_check
      _
    $region11: #{dilated_cnn_forward.1} parent=1 // pred_check_branch
      %24 = sbr.rel (0) target = $region13
    $region12: #{dilated_cnn_forward.1} parent=1 // pred_region
      _
    $region13: #{dilated_cnn_forward.1} parent=1 // pred_fallthru
      _
    // Predicated region
    $region14: #{dilated_cnn_forward.1} parent=1 // pred_check
      _
    $region15: #{dilated_cnn_forward.1} parent=1 // pred_check_branch
      %26 = sbr.rel (0) target = $region17
    $region16: #{dilated_cnn_forward.1} parent=1 // pred_region
      %28 = vsyncadd [#allocation4], 0
      %s29 = sshll.u32 %s3, 4
      %s30 = int_to_ptr.hbm [resolvable:$true] %s29
      %s31 = sshll.u32 [#allocation3], 4
      %s32 = int_to_ptr.vmem [resolvable:$true] %s31
      %37 = dma.hbm_to_vmem [thread:$0]  %s30, 9216, %s32, [#allocation4], 256, 256, 16
    $region17: #{dilated_cnn_forward.1} parent=1 // pred_fallthru
      _
    // Predicated region
    $region18: #{dilated_cnn_forward.1} parent=1 // pred_check
      _
    $region19: #{dilated_cnn_forward.1} parent=1 // pred_check_branch
      %39 = sbr.rel (0) target = $region21
    $region20: #{dilated_cnn_forward.1} parent=1 // pred_region
      _
    $region21: #{dilated_cnn_forward.1} parent=1 // pred_fallthru
      _
    // Predicated region
    $region22: #{dilated_cnn_forward.1} parent=1 // pred_check
      _
    $region23: #{dilated_cnn_forward.1} parent=1 // pred_check_branch
      %41 = sbr.rel (0) target = $region25
    $region24: #{dilated_cnn_forward.1} parent=1 // pred_region
      %43 = vsyncadd [#allocation7], 0
      %s44 = sshll.u32 %s5, 4
      %s45 = int_to_ptr.hbm [resolvable:$true] %s44
      %s46 = sshll.u32 [#allocation6], 4
      %s47 = int_to_ptr.vmem [resolvable:$true] %s46
      %52 = dma.hbm_to_vmem [thread:$0]  %s45, 18432, %s47, [#allocation7], 64, 64, 4
    $region25: #{dilated_cnn_forward.1} parent=1 // pred_fallthru
      _
    // Predicated region
    $region26: #{dilated_cnn_forward.1} parent=1 // pred_check
      _
    $region27: #{dilated_cnn_forward.1} parent=1 // pred_check_branch
      %54 = sbr.rel (0) target = $region29
    $region28: #{dilated_cnn_forward.1} parent=1 // pred_region
      _
    $region29: #{dilated_cnn_forward.1} parent=1 // pred_fallthru
      _
    // Predicated region
    $region30: #{dilated_cnn_forward.1} parent=1 // pred_check
      _
    $region31: #{dilated_cnn_forward.1} parent=1 // pred_check_branch
      %56 = sbr.rel (0) target = $region33
    $region32: #{dilated_cnn_forward.1} parent=1 // pred_region
      _
    $region33: #{dilated_cnn_forward.1} parent=1 // pred_fallthru
      _
    // Predicated region
    $region34: #{dilated_cnn_forward.1} parent=1 // pred_check
      _
    $region35: #{dilated_cnn_forward.1} parent=1 // pred_check_branch
      %58 = sbr.rel (0) target = $region37
    $region36: #{dilated_cnn_forward.1} parent=1 // pred_region
      _
    $region37: #{dilated_cnn_forward.1} parent=1 // pred_fallthru
      _
    // Predicated region
    $region38: #{dilated_cnn_forward.1} parent=1 // pred_check
      _
    $region39: #{dilated_cnn_forward.1} parent=1 // pred_check_branch
      %60 = sbr.rel (0) target = $region41
    $region40: #{dilated_cnn_forward.1} parent=1 // pred_region
      _
    $region41: #{dilated_cnn_forward.1} parent=1 // pred_fallthru
      _
    // Predicated region
    $region42: #{dilated_cnn_forward.1} parent=1 // pred_check
      _
    $region43: #{dilated_cnn_forward.1} parent=1 // pred_check_branch
      %62 = sbr.rel (0) target = $region45
    $region44: #{dilated_cnn_forward.1} parent=1 // pred_region
      _
    $region45: #{dilated_cnn_forward.1} parent=1 // pred_fallthru
      _
    // Predicated region
    $region46: #{dilated_cnn_forward.1} parent=1 // pred_check
      _
    $region47: #{dilated_cnn_forward.1} parent=1 // pred_check_branch
      %64 = sbr.rel (0) target = $region49
    $region48: #{dilated_cnn_forward.1} parent=1 // pred_region
      %66 = dma.done [#allocation4], 9216
    $region49: #{dilated_cnn_forward.1} parent=1 // pred_fallthru
      _
    // Predicated region
    $region50: #{dilated_cnn_forward.1} parent=1 // pred_check
      _
    $region51: #{dilated_cnn_forward.1} parent=1 // pred_check_branch
      %68 = sbr.rel (0) target = $region53
    $region52: #{dilated_cnn_forward.1} parent=1 // pred_region
      %70 = dma.done [#allocation7], 18432
    $region53: #{dilated_cnn_forward.1} parent=1 // pred_fallthru
      _
    %v72 = vld [vmem:[%s0] sm:$0xff]
    %v73 = vld [vmem:[%s0 + $0x8] sm:$0xff]
    %v74 = vld [vmem:[%s0 + $0x18] sm:$0xff]
    %v75 = vld [vmem:[%s0 + $0x20] sm:$0xff]
    %v76 = vld [vmem:[%s1] sm:$0xff]
    %v77 = vld [vmem:[%s1 + $0x8] sm:$0xff]
    %v78 = vld [vmem:[%s1 + $0x10] sm:$0xff]
    %v79 = vld [vmem:[%s1 + $0x18] sm:$0xff]
    %v80 = vld [vmem:[%s1 + $0x20] sm:$0xff]
    %v81 = vld [vmem:[%s1 + $0x28] sm:$0xff]
    %v82 = vld [vmem:[%s1 + $0x30] sm:$0xff]
    %v83 = vld [vmem:[%s1 + $0x38] sm:$0xf]
    %v84 = vld [vmem:[%s0 + $0x2] sm:$0xff]
    %v85 = vld [vmem:[%s0 + $0xa] sm:$0xff]
    %v86 = vld [vmem:[%s0 + $0x1a] sm:$0xff]
    %v87 = vld [vmem:[%s0 + $0x22] sm:$0xff]
    %s88 = scalar_lea.vmem %s1, 64
    %v89 = vld [vmem:[%s88] sm:$0xff]
    %v90 = vld [vmem:[%s88 + $0x8] sm:$0xff]
    %v91 = vld [vmem:[%s88 + $0x10] sm:$0xff]
    %v92 = vld [vmem:[%s88 + $0x18] sm:$0xff]
    %v93 = vld [vmem:[%s88 + $0x20] sm:$0xff]
    %v94 = vld [vmem:[%s88 + $0x28] sm:$0xff]
    %v95 = vld [vmem:[%s88 + $0x30] sm:$0xff]
    %v96 = vld [vmem:[%s88 + $0x38] sm:$0xf]
    %vm97 = vcmask 490496
    %v99 = vsel %vm97, %v84, 0
    %v102 = vsel %vm97, %v85, 0
    %v105 = vsel %vm97, %v86, 0
    %v108 = vsel %vm97, %v87, 0
    %vm110 = vcmask 1043456
    %v112 = vsel %vm110, %v96, 0
    %114 = vmatpush.msra.mxu0 0.0
    %115 = vmatpush.msra.mxu0 0.0
    %116 = vmatpush.msra.mxu0 0.0
    %117 = vmatpush.msra.mxu0 0.0
    %118 = vmatpush.msra.mxu0 0.0
    %119 = vmatpush.msra.mxu0 0.0
    %120 = vmatpush.msra.mxu0 0.0
    %121 = vmatpush.msra.mxu0 0.0
    %122 = vmatpush.msra.mxu0 %v112
    %123 = vmatpush.msra.mxu0 %v95
    %124 = vmatpush.msra.mxu0 %v94
    %125 = vmatpush.msra.mxu0 %v93
    %126 = vmatpush.msra.mxu0 %v92
    %127 = vmatpush.msra.mxu0 %v91
    %128 = vmatpush.msra.mxu0 %v90
    %129 = vmatpush.msra.mxu0 %v89
    %130 = vmatmul.f32.gmra.mxu0 %v99
    %v131 = vpop.f32.mrf.mxu0
    %v132 = vadd.f32 0.0, %v131
    %133 = vmatmul.f32.gmra.mxu0 %v102
    %v134 = vpop.f32.mrf.mxu0
    %v135 = vadd.f32 0.0, %v134
    %136 = vmatmul.f32.gmra.mxu0 %v105
    %v137 = vpop.f32.mrf.mxu0
    %v138 = vadd.f32 0.0, %v137
    %139 = vmatmul.f32.gmra.mxu0 %v108
    %v140 = vpop.f32.mrf.mxu0
    %v141 = vadd.f32 0.0, %v140
    %142 = vdwg.mxu0
    %v144 = vsel %vm97, %v72, 0
    %v147 = vsel %vm97, %v73, 0
    %v150 = vsel %vm97, %v74, 0
    %v153 = vsel %vm97, %v75, 0
    %v156 = vsel %vm110, %v83, 0
    %158 = vmatpush.msra.mxu0 0.0
    %159 = vmatpush.msra.mxu0 0.0
    %160 = vmatpush.msra.mxu0 0.0
    %161 = vmatpush.msra.mxu0 0.0
    %162 = vmatpush.msra.mxu0 0.0
    %163 = vmatpush.msra.mxu0 0.0
    %164 = vmatpush.msra.mxu0 0.0
    %165 = vmatpush.msra.mxu0 0.0
    %166 = vmatpush.msra.mxu0 %v156
    %167 = vmatpush.msra.mxu0 %v82
    %168 = vmatpush.msra.mxu0 %v81
    %169 = vmatpush.msra.mxu0 %v80
    %170 = vmatpush.msra.mxu0 %v79
    %171 = vmatpush.msra.mxu0 %v78
    %172 = vmatpush.msra.mxu0 %v77
    %173 = vmatpush.msra.mxu0 %v76
    %174 = vmatmul.f32.gmra.mxu0 %v144
    %v175 = vpop.f32.mrf.mxu0
    %v176 = vadd.f32 %v132, %v175
    %177 = vmatmul.f32.gmra.mxu0 %v147
    %v178 = vpop.f32.mrf.mxu0
    %v179 = vadd.f32 %v135, %v178
    %180 = vmatmul.f32.gmra.mxu0 %v150
    %v181 = vpop.f32.mrf.mxu0
    %v182 = vadd.f32 %v138, %v181
    %183 = vmatmul.f32.gmra.mxu0 %v153
    %v184 = vpop.f32.mrf.mxu0
    %v185 = vadd.f32 %v141, %v184
    %186 = vdwg.mxu0
    %v187 = vld [vmem:[%s0 + $0x4] sm:$0xff]
    %v188 = vld [vmem:[%s0 + $0xc] sm:$0xff]
    %v189 = vld [vmem:[%s0 + $0x1c] sm:$0xff]
    %v190 = vld [vmem:[%s0 + $0x24] sm:$0xff]
    %s191 = scalar_lea.vmem %s1, 128
    %v192 = vld [vmem:[%s191] sm:$0xff]
    %v193 = vld [vmem:[%s191 + $0x8] sm:$0xff]
    %v194 = vld [vmem:[%s191 + $0x10] sm:$0xff]
    %v195 = vld [vmem:[%s191 + $0x18] sm:$0xff]
    %v196 = vld [vmem:[%s191 + $0x20] sm:$0xff]
    %v197 = vld [vmem:[%s191 + $0x28] sm:$0xff]
    %v198 = vld [vmem:[%s191 + $0x30] sm:$0xff]
    %v199 = vld [vmem:[%s191 + $0x38] sm:$0xf]
    %v201 = vsel %vm97, %v187, 0
    %v204 = vsel %vm97, %v188, 0
    %v207 = vsel %vm97, %v189, 0
    %v210 = vsel %vm97, %v190, 0
    %v213 = vsel %vm110, %v199, 0
    %215 = vmatpush.msra.mxu0 0.0
    %216 = vmatpush.msra.mxu0 0.0
    %217 = vmatpush.msra.mxu0 0.0
    %218 = vmatpush.msra.mxu0 0.0
    %219 = vmatpush.msra.mxu0 0.0
    %220 = vmatpush.msra.mxu0 0.0
    %221 = vmatpush.msra.mxu0 0.0
    %222 = vmatpush.msra.mxu0 0.0
    %223 = vmatpush.msra.mxu0 %v213
    %224 = vmatpush.msra.mxu0 %v198
    %225 = vmatpush.msra.mxu0 %v197
    %226 = vmatpush.msra.mxu0 %v196
    %227 = vmatpush.msra.mxu0 %v195
    %228 = vmatpush.msra.mxu0 %v194
    %229 = vmatpush.msra.mxu0 %v193
    %230 = vmatpush.msra.mxu0 %v192
    %231 = vmatmul.f32.gmra.mxu0 %v201
    %v232 = vpop.f32.mrf.mxu0
    %v233 = vadd.f32 0.0, %v232
    %234 = vmatmul.f32.gmra.mxu0 %v204
    %v235 = vpop.f32.mrf.mxu0
    %v236 = vadd.f32 0.0, %v235
    %237 = vmatmul.f32.gmra.mxu0 %v207
    %v238 = vpop.f32.mrf.mxu0
    %v239 = vadd.f32 0.0, %v238
    %240 = vmatmul.f32.gmra.mxu0 %v210
    %v241 = vpop.f32.mrf.mxu0
    %v242 = vadd.f32 0.0, %v241
    %243 = vdwg.mxu0
    %v244 = vadd.f32 %v176, %v233
    %v245 = vadd.f32 %v179, %v236
    %v246 = vadd.f32 %v182, %v239
    %v247 = vadd.f32 %v185, %v242
    %v248 = vld [vmem:[%s2] sm:$0x1]
    %v250 = vperm.slane %v248, 0
    %v252 = vadd.f32 %v244, %v250
    %v253 = vadd.f32 %v245, %v250
    %v254 = vadd.f32 %v246, %v250
    %v255 = vadd.f32 %v247, %v250
    %v256 = vmax.f32 %v252, 0.0
    %v257 = vmax.f32 %v253, 0.0
    %v258 = vmax.f32 %v254, 0.0
    %v259 = vmax.f32 %v255, 0.0
    %vm260 = vcmask 785408
    %261 = vst.msk [vmem:[#allocation2] sm:$0xff] %vm260, %v256
    %262 = vst.msk [vmem:[#allocation2 + $0x8] sm:$0xff] %vm260, %v257
    %263 = vst.msk [vmem:[#allocation2 + $0x10] sm:$0xff] %vm260, %v258
    %264 = vst.msk [vmem:[#allocation2 + $0x18] sm:$0xff] %vm260, %v259
    %v265 = vld [vmem:[#allocation2] sm:$0x1]
    %v266 = vld [vmem:[#allocation2 + $0x10] sm:$0x1]
    %v267 = vld [vmem:[#allocation3] sm:$0xff]
    %v268 = vld [vmem:[#allocation3 + $0x8] sm:$0xff]
    %v269 = vld [vmem:[#allocation3 + $0x10] sm:$0xff]
    %v270 = vld [vmem:[#allocation3 + $0x18] sm:$0xff]
    %v271 = vld [vmem:[#allocation3 + $0x20] sm:$0xff]
    %v272 = vld [vmem:[#allocation3 + $0x28] sm:$0xff]
    %v273 = vld [vmem:[#allocation3 + $0x30] sm:$0xff]
    %v274 = vld [vmem:[#allocation3 + $0x38] sm:$0xff]
    %v275 = vld [vmem:[#allocation3 + $0x40] sm:$0xff]
    %v276 = vld [vmem:[#allocation3 + $0x48] sm:$0xff]
    %v277 = vld [vmem:[#allocation3 + $0x50] sm:$0xff]
    %v278 = vld [vmem:[#allocation3 + $0x58] sm:$0xff]
    %v279 = vld [vmem:[#allocation3 + $0x60] sm:$0xff]
    %v280 = vld [vmem:[#allocation3 + $0x68] sm:$0xff]
    %v281 = vld [vmem:[#allocation3 + $0x70] sm:$0xff]
    %v282 = vld [vmem:[#allocation3 + $0x78] sm:$0xff]
    %v283 = vld [vmem:[#allocation3 + $0x80] sm:$0xff]
    %v284 = vld [vmem:[#allocation3 + $0x88] sm:$0xff]
    %v285 = vld [vmem:[#allocation3 + $0x90] sm:$0xff]
    %v286 = vld [vmem:[#allocation3 + $0x98] sm:$0xff]
    %v287 = vld [vmem:[#allocation3 + $0xa0] sm:$0xff]
    %v288 = vld [vmem:[#allocation3 + $0xa8] sm:$0xff]
    %v289 = vld [vmem:[#allocation3 + $0xb0] sm:$0xff]
    %v290 = vld [vmem:[#allocation3 + $0xb8] sm:$0xff]
    %v291 = vld [vmem:[#allocation2 + $0x2] sm:$0x1]
    %v292 = vld [vmem:[#allocation2 + $0x12] sm:$0x1]
    %s293 = scalar_lea.vmem [#allocation3], 192
    %v294 = vld [vmem:[%s293] sm:$0xff]
    %v295 = vld [vmem:[%s293 + $0x8] sm:$0xff]
    %v296 = vld [vmem:[%s293 + $0x10] sm:$0xff]
    %v297 = vld [vmem:[%s293 + $0x18] sm:$0xff]
    %v298 = vld [vmem:[%s293 + $0x20] sm:$0xff]
    %v299 = vld [vmem:[%s293 + $0x28] sm:$0xff]
    %v300 = vld [vmem:[%s293 + $0x30] sm:$0xff]
    %v301 = vld [vmem:[%s293 + $0x38] sm:$0xff]
    %v302 = vld [vmem:[%s293 + $0x40] sm:$0xff]
    %v303 = vld [vmem:[%s293 + $0x48] sm:$0xff]
    %v304 = vld [vmem:[%s293 + $0x50] sm:$0xff]
    %v305 = vld [vmem:[%s293 + $0x58] sm:$0xff]
    %v306 = vld [vmem:[%s293 + $0x60] sm:$0xff]
    %v307 = vld [vmem:[%s293 + $0x68] sm:$0xff]
    %v308 = vld [vmem:[%s293 + $0x70] sm:$0xff]
    %v309 = vld [vmem:[%s293 + $0x78] sm:$0xff]
    %v310 = vld [vmem:[%s293 + $0x80] sm:$0xff]
    %v311 = vld [vmem:[%s293 + $0x88] sm:$0xff]
    %v312 = vld [vmem:[%s293 + $0x90] sm:$0xff]
    %v313 = vld [vmem:[%s293 + $0x98] sm:$0xff]
    %v314 = vld [vmem:[%s293 + $0xa0] sm:$0xff]
    %v315 = vld [vmem:[%s293 + $0xa8] sm:$0xff]
    %v316 = vld [vmem:[%s293 + $0xb0] sm:$0xff]
    %v317 = vld [vmem:[%s293 + $0xb8] sm:$0xff]
    %v320 = vrot.slane %v292, 7
    %vm321 = vcmask 1041409
    %v322 = vsel %vm321, %v320, %v291
    %v323 = vsel %vm260, %v322, 0
    %325 = vmatpush.msra.mxu0 0.0
    %326 = vmatpush.msra.mxu0 0.0
    %327 = vmatpush.msra.mxu0 0.0
    %328 = vmatpush.msra.mxu0 0.0
    %329 = vmatpush.msra.mxu0 %v316
    %330 = vmatpush.msra.mxu0 %v314
    %331 = vmatpush.msra.mxu0 %v312
    %332 = vmatpush.msra.mxu0 %v310
    %333 = vmatpush.msra.mxu0 %v308
    %334 = vmatpush.msra.mxu0 %v306
    %335 = vmatpush.msra.mxu0 %v304
    %336 = vmatpush.msra.mxu0 %v302
    %337 = vmatpush.msra.mxu0 %v300
    %338 = vmatpush.msra.mxu0 %v298
    %339 = vmatpush.msra.mxu0 %v296
    %340 = vmatpush.msra.mxu0 %v294
    %341 = vmatmul.f32.gmra.mxu0 %v323
    %v342 = vpop.f32.mrf.mxu0
    %v343 = vadd.f32 0.0, %v342
    %344 = vdwg.mxu0
    %345 = vmatpush.msra.mxu0 0.0
    %346 = vmatpush.msra.mxu0 0.0
    %347 = vmatpush.msra.mxu0 0.0
    %348 = vmatpush.msra.mxu0 0.0
    %349 = vmatpush.msra.mxu0 %v317
    %350 = vmatpush.msra.mxu0 %v315
    %351 = vmatpush.msra.mxu0 %v313
    %352 = vmatpush.msra.mxu0 %v311
    %353 = vmatpush.msra.mxu0 %v309
    %354 = vmatpush.msra.mxu0 %v307
    %355 = vmatpush.msra.mxu0 %v305
    %356 = vmatpush.msra.mxu0 %v303
    %357 = vmatpush.msra.mxu0 %v301
    %358 = vmatpush.msra.mxu0 %v299
    %359 = vmatpush.msra.mxu0 %v297
    %360 = vmatpush.msra.mxu0 %v295
    %361 = vmatmul.f32.gmra.mxu0 %v323
    %v362 = vpop.f32.mrf.mxu0
    %v363 = vadd.f32 0.0, %v362
    %364 = vdwg.mxu0
    %v367 = vrot.slane %v266, 7
    %v368 = vsel %vm321, %v367, %v265
    %v369 = vsel %vm260, %v368, 0
    %371 = vmatpush.msra.mxu0 0.0
    %372 = vmatpush.msra.mxu0 0.0
    %373 = vmatpush.msra.mxu0 0.0
    %374 = vmatpush.msra.mxu0 0.0
    %375 = vmatpush.msra.mxu0 %v289
    %376 = vmatpush.msra.mxu0 %v287
    %377 = vmatpush.msra.mxu0 %v285
    %378 = vmatpush.msra.mxu0 %v283
    %379 = vmatpush.msra.mxu0 %v281
    %380 = vmatpush.msra.mxu0 %v279
    %381 = vmatpush.msra.mxu0 %v277
    %382 = vmatpush.msra.mxu0 %v275
    %383 = vmatpush.msra.mxu0 %v273
    %384 = vmatpush.msra.mxu0 %v271
    %385 = vmatpush.msra.mxu0 %v269
    %386 = vmatpush.msra.mxu0 %v267
    %387 = vmatmul.f32.gmra.mxu0 %v369
    %v388 = vpop.f32.mrf.mxu0
    %v389 = vadd.f32 %v343, %v388
    %390 = vdwg.mxu0
    %391 = vmatpush.msra.mxu0 0.0
    %392 = vmatpush.msra.mxu0 0.0
    %393 = vmatpush.msra.mxu0 0.0
    %394 = vmatpush.msra.mxu0 0.0
    %395 = vmatpush.msra.mxu0 %v290
    %396 = vmatpush.msra.mxu0 %v288
    %397 = vmatpush.msra.mxu0 %v286
    %398 = vmatpush.msra.mxu0 %v284
    %399 = vmatpush.msra.mxu0 %v282
    %400 = vmatpush.msra.mxu0 %v280
    %401 = vmatpush.msra.mxu0 %v278
    %402 = vmatpush.msra.mxu0 %v276
    %403 = vmatpush.msra.mxu0 %v274
    %404 = vmatpush.msra.mxu0 %v272
    %405 = vmatpush.msra.mxu0 %v270
    %406 = vmatpush.msra.mxu0 %v268
    %407 = vmatmul.f32.gmra.mxu0 %v369
    %v408 = vpop.f32.mrf.mxu0
    %v409 = vadd.f32 %v363, %v408
    %410 = vdwg.mxu0
    %v411 = vld [vmem:[#allocation2 + $0x4] sm:$0x1]
    %v412 = vld [vmem:[#allocation2 + $0x14] sm:$0x1]
    %s413 = scalar_lea.vmem [#allocation3], 384
    %v414 = vld [vmem:[%s413] sm:$0xff]
    %v415 = vld [vmem:[%s413 + $0x8] sm:$0xff]
    %v416 = vld [vmem:[%s413 + $0x10] sm:$0xff]
    %v417 = vld [vmem:[%s413 + $0x18] sm:$0xff]
    %v418 = vld [vmem:[%s413 + $0x20] sm:$0xff]
    %v419 = vld [vmem:[%s413 + $0x28] sm:$0xff]
    %v420 = vld [vmem:[%s413 + $0x30] sm:$0xff]
    %v421 = vld [vmem:[%s413 + $0x38] sm:$0xff]
    %v422 = vld [vmem:[%s413 + $0x40] sm:$0xff]
    %v423 = vld [vmem:[%s413 + $0x48] sm:$0xff]
    %v424 = vld [vmem:[%s413 + $0x50] sm:$0xff]
    %v425 = vld [vmem:[%s413 + $0x58] sm:$0xff]
    %v426 = vld [vmem:[%s413 + $0x60] sm:$0xff]
    %v427 = vld [vmem:[%s413 + $0x68] sm:$0xff]
    %v428 = vld [vmem:[%s413 + $0x70] sm:$0xff]
    %v429 = vld [vmem:[%s413 + $0x78] sm:$0xff]
    %v430 = vld [vmem:[%s413 + $0x80] sm:$0xff]
    %v431 = vld [vmem:[%s413 + $0x88] sm:$0xff]
    %v432 = vld [vmem:[%s413 + $0x90] sm:$0xff]
    %v433 = vld [vmem:[%s413 + $0x98] sm:$0xff]
    %v434 = vld [vmem:[%s413 + $0xa0] sm:$0xff]
    %v435 = vld [vmem:[%s413 + $0xa8] sm:$0xff]
    %v436 = vld [vmem:[%s413 + $0xb0] sm:$0xff]
    %v437 = vld [vmem:[%s413 + $0xb8] sm:$0xff]
    %v440 = vrot.slane %v412, 7
    %v441 = vsel %vm321, %v440, %v411
    %v442 = vsel %vm260, %v441, 0
    %444 = vmatpush.msra.mxu0 0.0
    %445 = vmatpush.msra.mxu0 0.0
    %446 = vmatpush.msra.mxu0 0.0
    %447 = vmatpush.msra.mxu0 0.0
    %448 = vmatpush.msra.mxu0 %v436
    %449 = vmatpush.msra.mxu0 %v434
    %450 = vmatpush.msra.mxu0 %v432
    %451 = vmatpush.msra.mxu0 %v430
    %452 = vmatpush.msra.mxu0 %v428
    %453 = vmatpush.msra.mxu0 %v426
    %454 = vmatpush.msra.mxu0 %v424
    %455 = vmatpush.msra.mxu0 %v422
    %456 = vmatpush.msra.mxu0 %v420
    %457 = vmatpush.msra.mxu0 %v418
    %458 = vmatpush.msra.mxu0 %v416
    %459 = vmatpush.msra.mxu0 %v414
    %460 = vmatmul.f32.gmra.mxu0 %v442
    %v461 = vpop.f32.mrf.mxu0
    %v462 = vadd.f32 0.0, %v461
    %463 = vdwg.mxu0
    %464 = vmatpush.msra.mxu0 0.0
    %465 = vmatpush.msra.mxu0 0.0
    %466 = vmatpush.msra.mxu0 0.0
    %467 = vmatpush.msra.mxu0 0.0
    %468 = vmatpush.msra.mxu0 %v437
    %469 = vmatpush.msra.mxu0 %v435
    %470 = vmatpush.msra.mxu0 %v433
    %471 = vmatpush.msra.mxu0 %v431
    %472 = vmatpush.msra.mxu0 %v429
    %473 = vmatpush.msra.mxu0 %v427
    %474 = vmatpush.msra.mxu0 %v425
    %475 = vmatpush.msra.mxu0 %v423
    %476 = vmatpush.msra.mxu0 %v421
    %477 = vmatpush.msra.mxu0 %v419
    %478 = vmatpush.msra.mxu0 %v417
    %479 = vmatpush.msra.mxu0 %v415
    %480 = vmatmul.f32.gmra.mxu0 %v442
    %v481 = vpop.f32.mrf.mxu0
    %v482 = vadd.f32 0.0, %v481
    %483 = vdwg.mxu0
    %v484 = vadd.f32 %v389, %v462
    %v485 = vadd.f32 %v409, %v482
    %v486 = vld [vmem:[%s4] sm:$0x3]
    %v488 = vperm.slane %v486, 0
    %v489 = vperm.slane %v486, 1
    %v492 = vadd.f32 %v484, %v488
    %v493 = vadd.f32 %v485, %v489
    %v494 = vmax.f32 %v492, 0.0
    %v495 = vmax.f32 %v493, 0.0
    %v496 = vpack.c.bf16 %v494, %v494
    %v497 = vpack.c.bf16 %v495, %v495
    %v498 = vld [vmem:[#allocation6] sm:$0xf]
    %v499 = vld [vmem:[#allocation6 + $0x4] sm:$0xf]
    %v500 = vld [vmem:[#allocation6 + $0x8] sm:$0xf]
    %v501 = vld [vmem:[#allocation6 + $0xc] sm:$0xf]
    %v502 = vld [vmem:[#allocation6 + $0x10] sm:$0xf]
    %v503 = vld [vmem:[#allocation6 + $0x14] sm:$0xf]
    %v504 = vld [vmem:[#allocation6 + $0x18] sm:$0xf]
    %v505 = vld [vmem:[#allocation6 + $0x1c] sm:$0xf]
    %v506 = vld [vmem:[#allocation6 + $0x20] sm:$0xf]
    %v507 = vld [vmem:[#allocation6 + $0x24] sm:$0xf]
    %v508 = vld [vmem:[#allocation6 + $0x28] sm:$0xf]
    %v509 = vld [vmem:[#allocation6 + $0x2c] sm:$0xf]
    %v510 = vld [vmem:[#allocation6 + $0x30] sm:$0xf]
    %v511 = vld [vmem:[#allocation6 + $0x34] sm:$0xf]
    %v512 = vld [vmem:[#allocation6 + $0x38] sm:$0xf]
    %v513 = vld [vmem:[#allocation6 + $0x3c] sm:$0xf]
    %v514 = vld [vmem:[#allocation6 + $0x40] sm:$0xf]
    %v515 = vld [vmem:[#allocation6 + $0x44] sm:$0xf]
    %v516 = vld [vmem:[#allocation6 + $0x48] sm:$0xf]
    %v517 = vld [vmem:[#allocation6 + $0x4c] sm:$0xf]
    %v518 = vld [vmem:[#allocation6 + $0x50] sm:$0xf]
    %v519 = vld [vmem:[#allocation6 + $0x54] sm:$0xf]
    %v520 = vld [vmem:[#allocation6 + $0x58] sm:$0xf]
    %v521 = vld [vmem:[#allocation6 + $0x5c] sm:$0xf]
    %v522 = vld [vmem:[#allocation2 + $0x1] sm:$0x1]
    %v523 = vld [vmem:[#allocation2 + $0x11] sm:$0x1]
    %v524 = vld [vmem:[#allocation2 + $0x3] sm:$0x1]
    %v525 = vld [vmem:[#allocation2 + $0x13] sm:$0x1]
    %v528 = vrot.slane %v525, 7
    %v529 = vsel %vm321, %v528, %v524
    %v530 = vsel %vm260, %v529, 0
    %532 = vmatpush.msra.mxu0 0.0
    %533 = vmatpush.msra.mxu0 0.0
    %534 = vmatpush.msra.mxu0 0.0
    %535 = vmatpush.msra.mxu0 0.0
    %536 = vmatpush.msra.mxu0 %v316
    %537 = vmatpush.msra.mxu0 %v314
    %538 = vmatpush.msra.mxu0 %v312
    %539 = vmatpush.msra.mxu0 %v310
    %540 = vmatpush.msra.mxu0 %v308
    %541 = vmatpush.msra.mxu0 %v306
    %542 = vmatpush.msra.mxu0 %v304
    %543 = vmatpush.msra.mxu0 %v302
    %544 = vmatpush.msra.mxu0 %v300
    %545 = vmatpush.msra.mxu0 %v298
    %546 = vmatpush.msra.mxu0 %v296
    %547 = vmatpush.msra.mxu0 %v294
    %548 = vmatmul.f32.gmra.mxu0 %v530
    %v549 = vpop.f32.mrf.mxu0
    %v550 = vadd.f32 0.0, %v549
    %551 = vdwg.mxu0
    %552 = vmatpush.msra.mxu0 0.0
    %553 = vmatpush.msra.mxu0 0.0
    %554 = vmatpush.msra.mxu0 0.0
    %555 = vmatpush.msra.mxu0 0.0
    %556 = vmatpush.msra.mxu0 %v317
    %557 = vmatpush.msra.mxu0 %v315
    %558 = vmatpush.msra.mxu0 %v313
    %559 = vmatpush.msra.mxu0 %v311
    %560 = vmatpush.msra.mxu0 %v309
    %561 = vmatpush.msra.mxu0 %v307
    %562 = vmatpush.msra.mxu0 %v305
    %563 = vmatpush.msra.mxu0 %v303
    %564 = vmatpush.msra.mxu0 %v301
    %565 = vmatpush.msra.mxu0 %v299
    %566 = vmatpush.msra.mxu0 %v297
    %567 = vmatpush.msra.mxu0 %v295
    %568 = vmatmul.f32.gmra.mxu0 %v530
    %v569 = vpop.f32.mrf.mxu0
    %v570 = vadd.f32 0.0, %v569
    %571 = vdwg.mxu0
    %v574 = vrot.slane %v523, 7
    %v575 = vsel %vm321, %v574, %v522
    %v576 = vsel %vm260, %v575, 0
    %578 = vmatpush.msra.mxu0 0.0
    %579 = vmatpush.msra.mxu0 0.0
    %580 = vmatpush.msra.mxu0 0.0
    %581 = vmatpush.msra.mxu0 0.0
    %582 = vmatpush.msra.mxu0 %v289
    %583 = vmatpush.msra.mxu0 %v287
    %584 = vmatpush.msra.mxu0 %v285
    %585 = vmatpush.msra.mxu0 %v283
    %586 = vmatpush.msra.mxu0 %v281
    %587 = vmatpush.msra.mxu0 %v279
    %588 = vmatpush.msra.mxu0 %v277
    %589 = vmatpush.msra.mxu0 %v275
    %590 = vmatpush.msra.mxu0 %v273
    %591 = vmatpush.msra.mxu0 %v271
    %592 = vmatpush.msra.mxu0 %v269
    %593 = vmatpush.msra.mxu0 %v267
    %594 = vmatmul.f32.gmra.mxu0 %v576
    %v595 = vpop.f32.mrf.mxu0
    %v596 = vadd.f32 %v550, %v595
    %597 = vdwg.mxu0
    %598 = vmatpush.msra.mxu0 0.0
    %599 = vmatpush.msra.mxu0 0.0
    %600 = vmatpush.msra.mxu0 0.0
    %601 = vmatpush.msra.mxu0 0.0
    %602 = vmatpush.msra.mxu0 %v290
    %603 = vmatpush.msra.mxu0 %v288
    %604 = vmatpush.msra.mxu0 %v286
    %605 = vmatpush.msra.mxu0 %v284
    %606 = vmatpush.msra.mxu0 %v282
    %607 = vmatpush.msra.mxu0 %v280
    %608 = vmatpush.msra.mxu0 %v278
    %609 = vmatpush.msra.mxu0 %v276
    %610 = vmatpush.msra.mxu0 %v274
    %611 = vmatpush.msra.mxu0 %v272
    %612 = vmatpush.msra.mxu0 %v270
    %613 = vmatpush.msra.mxu0 %v268
    %614 = vmatmul.f32.gmra.mxu0 %v576
    %v615 = vpop.f32.mrf.mxu0
    %v616 = vadd.f32 %v570, %v615
    %617 = vdwg.mxu0
    %v618 = vld [vmem:[#allocation2 + $0x5] sm:$0x1]
    %v619 = vld [vmem:[#allocation2 + $0x15] sm:$0x1]
    %v622 = vrot.slane %v619, 7
    %v623 = vsel %vm321, %v622, %v618
    %v624 = vsel %vm260, %v623, 0
    %626 = vmatpush.msra.mxu0 0.0
    %627 = vmatpush.msra.mxu0 0.0
    %628 = vmatpush.msra.mxu0 0.0
    %629 = vmatpush.msra.mxu0 0.0
    %630 = vmatpush.msra.mxu0 %v436
    %631 = vmatpush.msra.mxu0 %v434
    %632 = vmatpush.msra.mxu0 %v432
    %633 = vmatpush.msra.mxu0 %v430
    %634 = vmatpush.msra.mxu0 %v428
    %635 = vmatpush.msra.mxu0 %v426
    %636 = vmatpush.msra.mxu0 %v424
    %637 = vmatpush.msra.mxu0 %v422
    %638 = vmatpush.msra.mxu0 %v420
    %639 = vmatpush.msra.mxu0 %v418
    %640 = vmatpush.msra.mxu0 %v416
    %641 = vmatpush.msra.mxu0 %v414
    %642 = vmatmul.f32.gmra.mxu0 %v624
    %v643 = vpop.f32.mrf.mxu0
    %v644 = vadd.f32 0.0, %v643
    %645 = vdwg.mxu0
    %646 = vmatpush.msra.mxu0 0.0
    %647 = vmatpush.msra.mxu0 0.0
    %648 = vmatpush.msra.mxu0 0.0
    %649 = vmatpush.msra.mxu0 0.0
    %650 = vmatpush.msra.mxu0 %v437
    %651 = vmatpush.msra.mxu0 %v435
    %652 = vmatpush.msra.mxu0 %v433
    %653 = vmatpush.msra.mxu0 %v431
    %654 = vmatpush.msra.mxu0 %v429
    %655 = vmatpush.msra.mxu0 %v427
    %656 = vmatpush.msra.mxu0 %v425
    %657 = vmatpush.msra.mxu0 %v423
    %658 = vmatpush.msra.mxu0 %v421
    %659 = vmatpush.msra.mxu0 %v419
    %660 = vmatpush.msra.mxu0 %v417
    %661 = vmatpush.msra.mxu0 %v415
    %662 = vmatmul.f32.gmra.mxu0 %v624
    %v663 = vpop.f32.mrf.mxu0
    %v664 = vadd.f32 0.0, %v663
    %665 = vdwg.mxu0
    %v666 = vadd.f32 %v596, %v644
    %v667 = vadd.f32 %v616, %v664
    %v668 = vadd.f32 %v666, %v488
    %v669 = vadd.f32 %v667, %v489
    %v670 = vmax.f32 %v668, 0.0
    %v671 = vmax.f32 %v669, 0.0
    %v672 = vpack.c.bf16 %v670, %v670
    %v673 = vpack.c.bf16 %v671, %v671
    %s674 = scalar_lea.vmem [#allocation6], 96
    %v675 = vld [vmem:[%s674] sm:$0xf]
    %v676 = vld [vmem:[%s674 + $0x4] sm:$0xf]
    %v677 = vld [vmem:[%s674 + $0x8] sm:$0xf]
    %v678 = vld [vmem:[%s674 + $0xc] sm:$0xf]
    %v679 = vld [vmem:[%s674 + $0x10] sm:$0xf]
    %v680 = vld [vmem:[%s674 + $0x14] sm:$0xf]
    %v681 = vld [vmem:[%s674 + $0x18] sm:$0xf]
    %v682 = vld [vmem:[%s674 + $0x1c] sm:$0xf]
    %v683 = vld [vmem:[%s674 + $0x20] sm:$0xf]
    %v684 = vld [vmem:[%s674 + $0x24] sm:$0xf]
    %v685 = vld [vmem:[%s674 + $0x28] sm:$0xf]
    %v686 = vld [vmem:[%s674 + $0x2c] sm:$0xf]
    %v687 = vld [vmem:[%s674 + $0x30] sm:$0xf]
    %v688 = vld [vmem:[%s674 + $0x34] sm:$0xf]
    %v689 = vld [vmem:[%s674 + $0x38] sm:$0xf]
    %v690 = vld [vmem:[%s674 + $0x3c] sm:$0xf]
    %v691 = vld [vmem:[%s674 + $0x40] sm:$0xf]
    %v692 = vld [vmem:[%s674 + $0x44] sm:$0xf]
    %v693 = vld [vmem:[%s674 + $0x48] sm:$0xf]
    %v694 = vld [vmem:[%s674 + $0x4c] sm:$0xf]
    %v695 = vld [vmem:[%s674 + $0x50] sm:$0xf]
    %v696 = vld [vmem:[%s674 + $0x54] sm:$0xf]
    %v697 = vld [vmem:[%s674 + $0x58] sm:$0xf]
    %v698 = vld [vmem:[%s674 + $0x5c] sm:$0xf]
    %v723 = vunpack.c.l.b16 %v675
    %v724 = vunpack.c.l.b16 %v676
    %v725 = vunpack.c.l.b16 %v677
    %v726 = vunpack.c.l.b16 %v678
    %v727 = vunpack.c.l.b16 %v679
    %v728 = vunpack.c.l.b16 %v680
    %v729 = vunpack.c.l.b16 %v681
    %v730 = vunpack.c.l.b16 %v682
    %v731 = vunpack.c.l.b16 %v683
    %v732 = vunpack.c.l.b16 %v684
    %v733 = vunpack.c.l.b16 %v685
    %v734 = vunpack.c.l.b16 %v686
    %v735 = vunpack.c.l.b16 %v687
    %v736 = vunpack.c.l.b16 %v688
    %v737 = vunpack.c.l.b16 %v689
    %v738 = vunpack.c.l.b16 %v690
    %v739 = vunpack.c.l.b16 %v691
    %v740 = vunpack.c.l.b16 %v692
    %v741 = vunpack.c.l.b16 %v693
    %v742 = vunpack.c.l.b16 %v694
    %v743 = vunpack.c.l.b16 %v695
    %v744 = vunpack.c.l.b16 %v696
    %v745 = vunpack.c.l.b16 %v697
    %v746 = vunpack.c.l.b16 %v698
    %v747 = vpack.c.b16 %v724, %v723
    %v748 = vpack.c.b16 %v726, %v725
    %v749 = vpack.c.b16 %v728, %v727
    %v750 = vpack.c.b16 %v730, %v729
    %v751 = vpack.c.b16 %v732, %v731
    %v752 = vpack.c.b16 %v734, %v733
    %v753 = vpack.c.b16 %v736, %v735
    %v754 = vpack.c.b16 %v738, %v737
    %v755 = vpack.c.b16 %v740, %v739
    %v756 = vpack.c.b16 %v742, %v741
    %v757 = vpack.c.b16 %v744, %v743
    %v758 = vpack.c.b16 %v746, %v745
    %vm771 = vcmask 523264
    %v773 = vsel %vm771, %v673, 0
    %775 = vmatpush.bf16.msra.mxu0 %v754
    %776 = vmatpush.bf16.msra.mxu0 %v753
    %777 = vmatpush.bf16.msra.mxu0 %v752
    %778 = vmatpush.bf16.msra.mxu0 %v751
    %779 = vmatpush.bf16.msra.mxu0 %v750
    %780 = vmatpush.bf16.msra.mxu0 %v749
    %781 = vmatpush.bf16.msra.mxu0 %v748
    %782 = vmatpush.bf16.msra.mxu0 %v747
    %783 = vmatmul.bf16.gmra.mxu0 %v672
    %v784 = vpop.f32.mrf.mxu0
    %v785 = vadd.f32 0.0, %v784
    %v786 = vpop.f32.mrf.mxu0
    %787 = vdwg.mxu0
    %788 = vmatpush.bf16.msra.mxu0 0
    %789 = vmatpush.bf16.msra.mxu0 0
    %790 = vmatpush.bf16.msra.mxu0 0
    %791 = vmatpush.bf16.msra.mxu0 0
    %792 = vmatpush.bf16.msra.mxu0 %v758
    %793 = vmatpush.bf16.msra.mxu0 %v757
    %794 = vmatpush.bf16.msra.mxu0 %v756
    %795 = vmatpush.bf16.msra.mxu0 %v755
    %796 = vmatmul.bf16.gmra.mxu0 %v773
    %v797 = vpop.f32.mrf.mxu0
    %v798 = vadd.f32 %v785, %v797
    %v799 = vpop.f32.mrf.mxu0
    %800 = vdwg.mxu0
    %v825 = vunpack.c.l.b16 %v498
    %v826 = vunpack.c.l.b16 %v499
    %v827 = vunpack.c.l.b16 %v500
    %v828 = vunpack.c.l.b16 %v501
    %v829 = vunpack.c.l.b16 %v502
    %v830 = vunpack.c.l.b16 %v503
    %v831 = vunpack.c.l.b16 %v504
    %v832 = vunpack.c.l.b16 %v505
    %v833 = vunpack.c.l.b16 %v506
    %v834 = vunpack.c.l.b16 %v507
    %v835 = vunpack.c.l.b16 %v508
    %v836 = vunpack.c.l.b16 %v509
    %v837 = vunpack.c.l.b16 %v510
    %v838 = vunpack.c.l.b16 %v511
    %v839 = vunpack.c.l.b16 %v512
    %v840 = vunpack.c.l.b16 %v513
    %v841 = vunpack.c.l.b16 %v514
    %v842 = vunpack.c.l.b16 %v515
    %v843 = vunpack.c.l.b16 %v516
    %v844 = vunpack.c.l.b16 %v517
    %v845 = vunpack.c.l.b16 %v518
    %v846 = vunpack.c.l.b16 %v519
    %v847 = vunpack.c.l.b16 %v520
    %v848 = vunpack.c.l.b16 %v521
    %v849 = vpack.c.b16 %v826, %v825
    %v850 = vpack.c.b16 %v828, %v827
    %v851 = vpack.c.b16 %v830, %v829
    %v852 = vpack.c.b16 %v832, %v831
    %v853 = vpack.c.b16 %v834, %v833
    %v854 = vpack.c.b16 %v836, %v835
    %v855 = vpack.c.b16 %v838, %v837
    %v856 = vpack.c.b16 %v840, %v839
    %v857 = vpack.c.b16 %v842, %v841
    %v858 = vpack.c.b16 %v844, %v843
    %v859 = vpack.c.b16 %v846, %v845
    %v860 = vpack.c.b16 %v848, %v847
    %v874 = vsel %vm771, %v497, 0
    %876 = vmatpush.bf16.msra.mxu0 %v856
    %877 = vmatpush.bf16.msra.mxu0 %v855
    %878 = vmatpush.bf16.msra.mxu0 %v854
    %879 = vmatpush.bf16.msra.mxu0 %v853
    %880 = vmatpush.bf16.msra.mxu0 %v852
    %881 = vmatpush.bf16.msra.mxu0 %v851
    %882 = vmatpush.bf16.msra.mxu0 %v850
    %883 = vmatpush.bf16.msra.mxu0 %v849
    %884 = vmatmul.bf16.gmra.mxu0 %v496
    %v885 = vpop.f32.mrf.mxu0
    %v886 = vadd.f32 %v798, %v885
    %v887 = vpop.f32.mrf.mxu0
    %888 = vdwg.mxu0
    %889 = vmatpush.bf16.msra.mxu0 0
    %890 = vmatpush.bf16.msra.mxu0 0
    %891 = vmatpush.bf16.msra.mxu0 0
    %892 = vmatpush.bf16.msra.mxu0 0
    %893 = vmatpush.bf16.msra.mxu0 %v860
    %894 = vmatpush.bf16.msra.mxu0 %v859
    %895 = vmatpush.bf16.msra.mxu0 %v858
    %896 = vmatpush.bf16.msra.mxu0 %v857
    %897 = vmatmul.bf16.gmra.mxu0 %v874
    %v898 = vpop.f32.mrf.mxu0
    %v899 = vadd.f32 %v886, %v898
    %v900 = vpop.f32.mrf.mxu0
    %901 = vdwg.mxu0
    %902 = vmatpush.msra.mxu0 0.0
    %903 = vmatpush.msra.mxu0 0.0
    %904 = vmatpush.msra.mxu0 0.0
    %905 = vmatpush.msra.mxu0 0.0
    %906 = vmatpush.msra.mxu0 %v316
    %907 = vmatpush.msra.mxu0 %v314
    %908 = vmatpush.msra.mxu0 %v312
    %909 = vmatpush.msra.mxu0 %v310
    %910 = vmatpush.msra.mxu0 %v308
    %911 = vmatpush.msra.mxu0 %v306
    %912 = vmatpush.msra.mxu0 %v304
    %913 = vmatpush.msra.mxu0 %v302
    %914 = vmatpush.msra.mxu0 %v300
    %915 = vmatpush.msra.mxu0 %v298
    %916 = vmatpush.msra.mxu0 %v296
    %917 = vmatpush.msra.mxu0 %v294
    %918 = vmatmul.f32.gmra.mxu0 %v442
    %v919 = vpop.f32.mrf.mxu0
    %v920 = vadd.f32 0.0, %v919
    %921 = vdwg.mxu0
    %922 = vmatpush.msra.mxu0 0.0
    %923 = vmatpush.msra.mxu0 0.0
    %924 = vmatpush.msra.mxu0 0.0
    %925 = vmatpush.msra.mxu0 0.0
    %926 = vmatpush.msra.mxu0 %v317
    %927 = vmatpush.msra.mxu0 %v315
    %928 = vmatpush.msra.mxu0 %v313
    %929 = vmatpush.msra.mxu0 %v311
    %930 = vmatpush.msra.mxu0 %v309
    %931 = vmatpush.msra.mxu0 %v307
    %932 = vmatpush.msra.mxu0 %v305
    %933 = vmatpush.msra.mxu0 %v303
    %934 = vmatpush.msra.mxu0 %v301
    %935 = vmatpush.msra.mxu0 %v299
    %936 = vmatpush.msra.mxu0 %v297
    %937 = vmatpush.msra.mxu0 %v295
    %938 = vmatmul.f32.gmra.mxu0 %v442
    %v939 = vpop.f32.mrf.mxu0
    %v940 = vadd.f32 0.0, %v939
    %941 = vdwg.mxu0
    %942 = vmatpush.msra.mxu0 0.0
    %943 = vmatpush.msra.mxu0 0.0
    %944 = vmatpush.msra.mxu0 0.0
    %945 = vmatpush.msra.mxu0 0.0
    %946 = vmatpush.msra.mxu0 %v289
    %947 = vmatpush.msra.mxu0 %v287
    %948 = vmatpush.msra.mxu0 %v285
    %949 = vmatpush.msra.mxu0 %v283
    %950 = vmatpush.msra.mxu0 %v281
    %951 = vmatpush.msra.mxu0 %v279
    %952 = vmatpush.msra.mxu0 %v277
    %953 = vmatpush.msra.mxu0 %v275
    %954 = vmatpush.msra.mxu0 %v273
    %955 = vmatpush.msra.mxu0 %v271
    %956 = vmatpush.msra.mxu0 %v269
    %957 = vmatpush.msra.mxu0 %v267
    %958 = vmatmul.f32.gmra.mxu0 %v323
    %v959 = vpop.f32.mrf.mxu0
    %v960 = vadd.f32 %v920, %v959
    %961 = vdwg.mxu0
    %962 = vmatpush.msra.mxu0 0.0
    %963 = vmatpush.msra.mxu0 0.0
    %964 = vmatpush.msra.mxu0 0.0
    %965 = vmatpush.msra.mxu0 0.0
    %966 = vmatpush.msra.mxu0 %v290
    %967 = vmatpush.msra.mxu0 %v288
    %968 = vmatpush.msra.mxu0 %v286
    %969 = vmatpush.msra.mxu0 %v284
    %970 = vmatpush.msra.mxu0 %v282
    %971 = vmatpush.msra.mxu0 %v280
    %972 = vmatpush.msra.mxu0 %v278
    %973 = vmatpush.msra.mxu0 %v276
    %974 = vmatpush.msra.mxu0 %v274
    %975 = vmatpush.msra.mxu0 %v272
    %976 = vmatpush.msra.mxu0 %v270
    %977 = vmatpush.msra.mxu0 %v268
    %978 = vmatmul.f32.gmra.mxu0 %v323
    %v979 = vpop.f32.mrf.mxu0
    %v980 = vadd.f32 %v940, %v979
    %981 = vdwg.mxu0
    %v982 = vld [vmem:[#allocation2 + $0x6] sm:$0x1]
    %v983 = vld [vmem:[#allocation2 + $0x16] sm:$0x1]
    %v986 = vrot.slane %v983, 7
    %v987 = vsel %vm321, %v986, %v982
    %v988 = vsel %vm260, %v987, 0
    %990 = vmatpush.msra.mxu0 0.0
    %991 = vmatpush.msra.mxu0 0.0
    %992 = vmatpush.msra.mxu0 0.0
    %993 = vmatpush.msra.mxu0 0.0
    %994 = vmatpush.msra.mxu0 %v436
    %995 = vmatpush.msra.mxu0 %v434
    %996 = vmatpush.msra.mxu0 %v432
    %997 = vmatpush.msra.mxu0 %v430
    %998 = vmatpush.msra.mxu0 %v428
    %999 = vmatpush.msra.mxu0 %v426
    %1000 = vmatpush.msra.mxu0 %v424
    %1001 = vmatpush.msra.mxu0 %v422
    %1002 = vmatpush.msra.mxu0 %v420
    %1003 = vmatpush.msra.mxu0 %v418
    %1004 = vmatpush.msra.mxu0 %v416
    %1005 = vmatpush.msra.mxu0 %v414
    %1006 = vmatmul.f32.gmra.mxu0 %v988
    %v1007 = vpop.f32.mrf.mxu0
    %v1008 = vadd.f32 0.0, %v1007
    %1009 = vdwg.mxu0
    %1010 = vmatpush.msra.mxu0 0.0
    %1011 = vmatpush.msra.mxu0 0.0
    %1012 = vmatpush.msra.mxu0 0.0
    %1013 = vmatpush.msra.mxu0 0.0
    %1014 = vmatpush.msra.mxu0 %v437
    %1015 = vmatpush.msra.mxu0 %v435
    %1016 = vmatpush.msra.mxu0 %v433
    %1017 = vmatpush.msra.mxu0 %v431
    %1018 = vmatpush.msra.mxu0 %v429
    %1019 = vmatpush.msra.mxu0 %v427
    %1020 = vmatpush.msra.mxu0 %v425
    %1021 = vmatpush.msra.mxu0 %v423
    %1022 = vmatpush.msra.mxu0 %v421
    %1023 = vmatpush.msra.mxu0 %v419
    %1024 = vmatpush.msra.mxu0 %v417
    %1025 = vmatpush.msra.mxu0 %v415
    %1026 = vmatmul.f32.gmra.mxu0 %v988
    %v1027 = vpop.f32.mrf.mxu0
    %v1028 = vadd.f32 0.0, %v1027
    %1029 = vdwg.mxu0
    %v1030 = vadd.f32 %v960, %v1008
    %v1031 = vadd.f32 %v980, %v1028
    %v1032 = vadd.f32 %v1030, %v488
    %v1033 = vadd.f32 %v1031, %v489
    %v1034 = vmax.f32 %v1032, 0.0
    %v1035 = vmax.f32 %v1033, 0.0
    %v1036 = vpack.c.bf16 %v1034, %v1034
    %v1037 = vpack.c.bf16 %v1035, %v1035
    %s1038 = scalar_lea.vmem [#allocation6], 192
    %v1039 = vld [vmem:[%s1038] sm:$0xf]
    %v1040 = vld [vmem:[%s1038 + $0x4] sm:$0xf]
    %v1041 = vld [vmem:[%s1038 + $0x8] sm:$0xf]
    %v1042 = vld [vmem:[%s1038 + $0xc] sm:$0xf]
    %v1043 = vld [vmem:[%s1038 + $0x10] sm:$0xf]
    %v1044 = vld [vmem:[%s1038 + $0x14] sm:$0xf]
    %v1045 = vld [vmem:[%s1038 + $0x18] sm:$0xf]
    %v1046 = vld [vmem:[%s1038 + $0x1c] sm:$0xf]
    %v1047 = vld [vmem:[%s1038 + $0x20] sm:$0xf]
    %v1048 = vld [vmem:[%s1038 + $0x24] sm:$0xf]
    %v1049 = vld [vmem:[%s1038 + $0x28] sm:$0xf]
    %v1050 = vld [vmem:[%s1038 + $0x2c] sm:$0xf]
    %v1051 = vld [vmem:[%s1038 + $0x30] sm:$0xf]
    %v1052 = vld [vmem:[%s1038 + $0x34] sm:$0xf]
    %v1053 = vld [vmem:[%s1038 + $0x38] sm:$0xf]
    %v1054 = vld [vmem:[%s1038 + $0x3c] sm:$0xf]
    %v1055 = vld [vmem:[%s1038 + $0x40] sm:$0xf]
    %v1056 = vld [vmem:[%s1038 + $0x44] sm:$0xf]
    %v1057 = vld [vmem:[%s1038 + $0x48] sm:$0xf]
    %v1058 = vld [vmem:[%s1038 + $0x4c] sm:$0xf]
    %v1059 = vld [vmem:[%s1038 + $0x50] sm:$0xf]
    %v1060 = vld [vmem:[%s1038 + $0x54] sm:$0xf]
    %v1061 = vld [vmem:[%s1038 + $0x58] sm:$0xf]
    %v1062 = vld [vmem:[%s1038 + $0x5c] sm:$0xf]
    %v1087 = vunpack.c.l.b16 %v1039
    %v1088 = vunpack.c.l.b16 %v1040
    %v1089 = vunpack.c.l.b16 %v1041
    %v1090 = vunpack.c.l.b16 %v1042
    %v1091 = vunpack.c.l.b16 %v1043
    %v1092 = vunpack.c.l.b16 %v1044
    %v1093 = vunpack.c.l.b16 %v1045
    %v1094 = vunpack.c.l.b16 %v1046
    %v1095 = vunpack.c.l.b16 %v1047
    %v1096 = vunpack.c.l.b16 %v1048
    %v1097 = vunpack.c.l.b16 %v1049
    %v1098 = vunpack.c.l.b16 %v1050
    %v1099 = vunpack.c.l.b16 %v1051
    %v1100 = vunpack.c.l.b16 %v1052
    %v1101 = vunpack.c.l.b16 %v1053
    %v1102 = vunpack.c.l.b16 %v1054
    %v1103 = vunpack.c.l.b16 %v1055
    %v1104 = vunpack.c.l.b16 %v1056
    %v1105 = vunpack.c.l.b16 %v1057
    %v1106 = vunpack.c.l.b16 %v1058
    %v1107 = vunpack.c.l.b16 %v1059
    %v1108 = vunpack.c.l.b16 %v1060
    %v1109 = vunpack.c.l.b16 %v1061
    %v1110 = vunpack.c.l.b16 %v1062
    %v1111 = vpack.c.b16 %v1088, %v1087
    %v1112 = vpack.c.b16 %v1090, %v1089
    %v1113 = vpack.c.b16 %v1092, %v1091
    %v1114 = vpack.c.b16 %v1094, %v1093
    %v1115 = vpack.c.b16 %v1096, %v1095
    %v1116 = vpack.c.b16 %v1098, %v1097
    %v1117 = vpack.c.b16 %v1100, %v1099
    %v1118 = vpack.c.b16 %v1102, %v1101
    %v1119 = vpack.c.b16 %v1104, %v1103
    %v1120 = vpack.c.b16 %v1106, %v1105
    %v1121 = vpack.c.b16 %v1108, %v1107
    %v1122 = vpack.c.b16 %v1110, %v1109
    %v1136 = vsel %vm771, %v1037, 0
    %1138 = vmatpush.bf16.msra.mxu0 %v1118
    %1139 = vmatpush.bf16.msra.mxu0 %v1117
    %1140 = vmatpush.bf16.msra.mxu0 %v1116
    %1141 = vmatpush.bf16.msra.mxu0 %v1115
    %1142 = vmatpush.bf16.msra.mxu0 %v1114
    %1143 = vmatpush.bf16.msra.mxu0 %v1113
    %1144 = vmatpush.bf16.msra.mxu0 %v1112
    %1145 = vmatpush.bf16.msra.mxu0 %v1111
    %1146 = vmatmul.bf16.gmra.mxu0 %v1036
    %v1147 = vpop.f32.mrf.mxu0
    %v1148 = vadd.f32 0.0, %v1147
    %v1149 = vpop.f32.mrf.mxu0
    %1150 = vdwg.mxu0
    %1151 = vmatpush.bf16.msra.mxu0 0
    %1152 = vmatpush.bf16.msra.mxu0 0
    %1153 = vmatpush.bf16.msra.mxu0 0
    %1154 = vmatpush.bf16.msra.mxu0 0
    %1155 = vmatpush.bf16.msra.mxu0 %v1122
    %1156 = vmatpush.bf16.msra.mxu0 %v1121
    %1157 = vmatpush.bf16.msra.mxu0 %v1120
    %1158 = vmatpush.bf16.msra.mxu0 %v1119
    %1159 = vmatmul.bf16.gmra.mxu0 %v1136
    %v1160 = vpop.f32.mrf.mxu0
    %v1161 = vadd.f32 %v1148, %v1160
    %v1162 = vpop.f32.mrf.mxu0
    %1163 = vdwg.mxu0
    %v1164 = vadd.f32 %v899, %v1161
    %1165 = vmatpush.msra.mxu0 0.0
    %1166 = vmatpush.msra.mxu0 0.0
    %1167 = vmatpush.msra.mxu0 0.0
    %1168 = vmatpush.msra.mxu0 0.0
    %1169 = vmatpush.msra.mxu0 %v316
    %1170 = vmatpush.msra.mxu0 %v314
    %1171 = vmatpush.msra.mxu0 %v312
    %1172 = vmatpush.msra.mxu0 %v310
    %1173 = vmatpush.msra.mxu0 %v308
    %1174 = vmatpush.msra.mxu0 %v306
    %1175 = vmatpush.msra.mxu0 %v304
    %1176 = vmatpush.msra.mxu0 %v302
    %1177 = vmatpush.msra.mxu0 %v300
    %1178 = vmatpush.msra.mxu0 %v298
    %1179 = vmatpush.msra.mxu0 %v296
    %1180 = vmatpush.msra.mxu0 %v294
    %1181 = vmatmul.f32.gmra.mxu0 %v624
    %v1182 = vpop.f32.mrf.mxu0
    %v1183 = vadd.f32 0.0, %v1182
    %1184 = vdwg.mxu0
    %1185 = vmatpush.msra.mxu0 0.0
    %1186 = vmatpush.msra.mxu0 0.0
    %1187 = vmatpush.msra.mxu0 0.0
    %1188 = vmatpush.msra.mxu0 0.0
    %1189 = vmatpush.msra.mxu0 %v317
    %1190 = vmatpush.msra.mxu0 %v315
    %1191 = vmatpush.msra.mxu0 %v313
    %1192 = vmatpush.msra.mxu0 %v311
    %1193 = vmatpush.msra.mxu0 %v309
    %1194 = vmatpush.msra.mxu0 %v307
    %1195 = vmatpush.msra.mxu0 %v305
    %1196 = vmatpush.msra.mxu0 %v303
    %1197 = vmatpush.msra.mxu0 %v301
    %1198 = vmatpush.msra.mxu0 %v299
    %1199 = vmatpush.msra.mxu0 %v297
    %1200 = vmatpush.msra.mxu0 %v295
    %1201 = vmatmul.f32.gmra.mxu0 %v624
    %v1202 = vpop.f32.mrf.mxu0
    %v1203 = vadd.f32 0.0, %v1202
    %1204 = vdwg.mxu0
    %1205 = vmatpush.msra.mxu0 0.0
    %1206 = vmatpush.msra.mxu0 0.0
    %1207 = vmatpush.msra.mxu0 0.0
    %1208 = vmatpush.msra.mxu0 0.0
    %1209 = vmatpush.msra.mxu0 %v289
    %1210 = vmatpush.msra.mxu0 %v287
    %1211 = vmatpush.msra.mxu0 %v285
    %1212 = vmatpush.msra.mxu0 %v283
    %1213 = vmatpush.msra.mxu0 %v281
    %1214 = vmatpush.msra.mxu0 %v279
    %1215 = vmatpush.msra.mxu0 %v277
    %1216 = vmatpush.msra.mxu0 %v275
    %1217 = vmatpush.msra.mxu0 %v273
    %1218 = vmatpush.msra.mxu0 %v271
    %1219 = vmatpush.msra.mxu0 %v269
    %1220 = vmatpush.msra.mxu0 %v267
    %1221 = vmatmul.f32.gmra.mxu0 %v530
    %v1222 = vpop.f32.mrf.mxu0
    %v1223 = vadd.f32 %v1183, %v1222
    %1224 = vdwg.mxu0
    %1225 = vmatpush.msra.mxu0 0.0
    %1226 = vmatpush.msra.mxu0 0.0
    %1227 = vmatpush.msra.mxu0 0.0
    %1228 = vmatpush.msra.mxu0 0.0
    %1229 = vmatpush.msra.mxu0 %v290
    %1230 = vmatpush.msra.mxu0 %v288
    %1231 = vmatpush.msra.mxu0 %v286
    %1232 = vmatpush.msra.mxu0 %v284
    %1233 = vmatpush.msra.mxu0 %v282
    %1234 = vmatpush.msra.mxu0 %v280
    %1235 = vmatpush.msra.mxu0 %v278
    %1236 = vmatpush.msra.mxu0 %v276
    %1237 = vmatpush.msra.mxu0 %v274
    %1238 = vmatpush.msra.mxu0 %v272
    %1239 = vmatpush.msra.mxu0 %v270
    %1240 = vmatpush.msra.mxu0 %v268
    %1241 = vmatmul.f32.gmra.mxu0 %v530
    %v1242 = vpop.f32.mrf.mxu0
    %v1243 = vadd.f32 %v1203, %v1242
    %1244 = vdwg.mxu0
    %v1245 = vld [vmem:[#allocation2 + $0x7] sm:$0x1]
    %v1246 = vld [vmem:[#allocation2 + $0x17] sm:$0x1]
    %v1249 = vrot.slane %v1246, 7
    %v1250 = vsel %vm321, %v1249, %v1245
    %v1251 = vsel %vm260, %v1250, 0
    %1253 = vmatpush.msra.mxu0 0.0
    %1254 = vmatpush.msra.mxu0 0.0
    %1255 = vmatpush.msra.mxu0 0.0
    %1256 = vmatpush.msra.mxu0 0.0
    %1257 = vmatpush.msra.mxu0 %v436
    %1258 = vmatpush.msra.mxu0 %v434
    %1259 = vmatpush.msra.mxu0 %v432
    %1260 = vmatpush.msra.mxu0 %v430
    %1261 = vmatpush.msra.mxu0 %v428
    %1262 = vmatpush.msra.mxu0 %v426
    %1263 = vmatpush.msra.mxu0 %v424
    %1264 = vmatpush.msra.mxu0 %v422
    %1265 = vmatpush.msra.mxu0 %v420
    %1266 = vmatpush.msra.mxu0 %v418
    %1267 = vmatpush.msra.mxu0 %v416
    %1268 = vmatpush.msra.mxu0 %v414
    %1269 = vmatmul.f32.gmra.mxu0 %v1251
    %v1270 = vpop.f32.mrf.mxu0
    %v1271 = vadd.f32 0.0, %v1270
    %1272 = vdwg.mxu0
    %1273 = vmatpush.msra.mxu0 0.0
    %1274 = vmatpush.msra.mxu0 0.0
    %1275 = vmatpush.msra.mxu0 0.0
    %1276 = vmatpush.msra.mxu0 0.0
    %1277 = vmatpush.msra.mxu0 %v437
    %1278 = vmatpush.msra.mxu0 %v435
    %1279 = vmatpush.msra.mxu0 %v433
    %1280 = vmatpush.msra.mxu0 %v431
    %1281 = vmatpush.msra.mxu0 %v429
    %1282 = vmatpush.msra.mxu0 %v427
    %1283 = vmatpush.msra.mxu0 %v425
    %1284 = vmatpush.msra.mxu0 %v423
    %1285 = vmatpush.msra.mxu0 %v421
    %1286 = vmatpush.msra.mxu0 %v419
    %1287 = vmatpush.msra.mxu0 %v417
    %1288 = vmatpush.msra.mxu0 %v415
    %1289 = vmatmul.f32.gmra.mxu0 %v1251
    %v1290 = vpop.f32.mrf.mxu0
    %v1291 = vadd.f32 0.0, %v1290
    %1292 = vdwg.mxu0
    %v1293 = vadd.f32 %v1223, %v1271
    %v1294 = vadd.f32 %v1243, %v1291
    %v1295 = vadd.f32 %v1293, %v488
    %v1296 = vadd.f32 %v1294, %v489
    %v1297 = vmax.f32 %v1295, 0.0
    %v1298 = vmax.f32 %v1296, 0.0
    %v1299 = vpack.c.bf16 %v1297, %v1297
    %v1300 = vpack.c.bf16 %v1298, %v1298
    %s1301 = scalar_lea.vmem [#allocation6], 288
    %v1302 = vld [vmem:[%s1301] sm:$0xf]
    %v1303 = vld [vmem:[%s1301 + $0x4] sm:$0xf]
    %v1304 = vld [vmem:[%s1301 + $0x8] sm:$0xf]
    %v1305 = vld [vmem:[%s1301 + $0xc] sm:$0xf]
    %v1306 = vld [vmem:[%s1301 + $0x10] sm:$0xf]
    %v1307 = vld [vmem:[%s1301 + $0x14] sm:$0xf]
    %v1308 = vld [vmem:[%s1301 + $0x18] sm:$0xf]
    %v1309 = vld [vmem:[%s1301 + $0x1c] sm:$0xf]
    %v1310 = vld [vmem:[%s1301 + $0x20] sm:$0xf]
    %v1311 = vld [vmem:[%s1301 + $0x24] sm:$0xf]
    %v1312 = vld [vmem:[%s1301 + $0x28] sm:$0xf]
    %v1313 = vld [vmem:[%s1301 + $0x2c] sm:$0xf]
    %v1314 = vld [vmem:[%s1301 + $0x30] sm:$0xf]
    %v1315 = vld [vmem:[%s1301 + $0x34] sm:$0xf]
    %v1316 = vld [vmem:[%s1301 + $0x38] sm:$0xf]
    %v1317 = vld [vmem:[%s1301 + $0x3c] sm:$0xf]
    %v1318 = vld [vmem:[%s1301 + $0x40] sm:$0xf]
    %v1319 = vld [vmem:[%s1301 + $0x44] sm:$0xf]
    %v1320 = vld [vmem:[%s1301 + $0x48] sm:$0xf]
    %v1321 = vld [vmem:[%s1301 + $0x4c] sm:$0xf]
    %v1322 = vld [vmem:[%s1301 + $0x50] sm:$0xf]
    %v1323 = vld [vmem:[%s1301 + $0x54] sm:$0xf]
    %v1324 = vld [vmem:[%s1301 + $0x58] sm:$0xf]
    %v1325 = vld [vmem:[%s1301 + $0x5c] sm:$0xf]
    %v1350 = vunpack.c.l.b16 %v1302
    %v1351 = vunpack.c.l.b16 %v1303
    %v1352 = vunpack.c.l.b16 %v1304
    %v1353 = vunpack.c.l.b16 %v1305
    %v1354 = vunpack.c.l.b16 %v1306
    %v1355 = vunpack.c.l.b16 %v1307
    %v1356 = vunpack.c.l.b16 %v1308
    %v1357 = vunpack.c.l.b16 %v1309
    %v1358 = vunpack.c.l.b16 %v1310
    %v1359 = vunpack.c.l.b16 %v1311
    %v1360 = vunpack.c.l.b16 %v1312
    %v1361 = vunpack.c.l.b16 %v1313
    %v1362 = vunpack.c.l.b16 %v1314
    %v1363 = vunpack.c.l.b16 %v1315
    %v1364 = vunpack.c.l.b16 %v1316
    %v1365 = vunpack.c.l.b16 %v1317
    %v1366 = vunpack.c.l.b16 %v1318
    %v1367 = vunpack.c.l.b16 %v1319
    %v1368 = vunpack.c.l.b16 %v1320
    %v1369 = vunpack.c.l.b16 %v1321
    %v1370 = vunpack.c.l.b16 %v1322
    %v1371 = vunpack.c.l.b16 %v1323
    %v1372 = vunpack.c.l.b16 %v1324
    %v1373 = vunpack.c.l.b16 %v1325
    %v1374 = vpack.c.b16 %v1351, %v1350
    %v1375 = vpack.c.b16 %v1353, %v1352
    %v1376 = vpack.c.b16 %v1355, %v1354
    %v1377 = vpack.c.b16 %v1357, %v1356
    %v1378 = vpack.c.b16 %v1359, %v1358
    %v1379 = vpack.c.b16 %v1361, %v1360
    %v1380 = vpack.c.b16 %v1363, %v1362
    %v1381 = vpack.c.b16 %v1365, %v1364
    %v1382 = vpack.c.b16 %v1367, %v1366
    %v1383 = vpack.c.b16 %v1369, %v1368
    %v1384 = vpack.c.b16 %v1371, %v1370
    %v1385 = vpack.c.b16 %v1373, %v1372
    %v1399 = vsel %vm771, %v1300, 0
    %1401 = vmatpush.bf16.msra.mxu0 %v1381
    %1402 = vmatpush.bf16.msra.mxu0 %v1380
    %1403 = vmatpush.bf16.msra.mxu0 %v1379
    %1404 = vmatpush.bf16.msra.mxu0 %v1378
    %1405 = vmatpush.bf16.msra.mxu0 %v1377
    %1406 = vmatpush.bf16.msra.mxu0 %v1376
    %1407 = vmatpush.bf16.msra.mxu0 %v1375
    %1408 = vmatpush.bf16.msra.mxu0 %v1374
    %1409 = vmatmul.bf16.gmra.mxu0 %v1299
    %v1410 = vpop.f32.mrf.mxu0
    %v1411 = vadd.f32 0.0, %v1410
    %v1412 = vpop.f32.mrf.mxu0
    %1413 = vdwg.mxu0
    %1414 = vmatpush.bf16.msra.mxu0 0
    %1415 = vmatpush.bf16.msra.mxu0 0
    %1416 = vmatpush.bf16.msra.mxu0 0
    %1417 = vmatpush.bf16.msra.mxu0 0
    %1418 = vmatpush.bf16.msra.mxu0 %v1385
    %1419 = vmatpush.bf16.msra.mxu0 %v1384
    %1420 = vmatpush.bf16.msra.mxu0 %v1383
    %1421 = vmatpush.bf16.msra.mxu0 %v1382
    %1422 = vmatmul.bf16.gmra.mxu0 %v1399
    %v1423 = vpop.f32.mrf.mxu0
    %v1424 = vadd.f32 %v1411, %v1423
    %v1425 = vpop.f32.mrf.mxu0
    %1426 = vdwg.mxu0
    %v1427 = vadd.f32 %v1164, %v1424
    %1428 = vmatpush.msra.mxu0 0.0
    %1429 = vmatpush.msra.mxu0 0.0
    %1430 = vmatpush.msra.mxu0 0.0
    %1431 = vmatpush.msra.mxu0 0.0
    %1432 = vmatpush.msra.mxu0 %v316
    %1433 = vmatpush.msra.mxu0 %v314
    %1434 = vmatpush.msra.mxu0 %v312
    %1435 = vmatpush.msra.mxu0 %v310
    %1436 = vmatpush.msra.mxu0 %v308
    %1437 = vmatpush.msra.mxu0 %v306
    %1438 = vmatpush.msra.mxu0 %v304
    %1439 = vmatpush.msra.mxu0 %v302
    %1440 = vmatpush.msra.mxu0 %v300
    %1441 = vmatpush.msra.mxu0 %v298
    %1442 = vmatpush.msra.mxu0 %v296
    %1443 = vmatpush.msra.mxu0 %v294
    %1444 = vmatmul.f32.gmra.mxu0 %v988
    %v1445 = vpop.f32.mrf.mxu0
    %v1446 = vadd.f32 0.0, %v1445
    %1447 = vdwg.mxu0
    %1448 = vmatpush.msra.mxu0 0.0
    %1449 = vmatpush.msra.mxu0 0.0
    %1450 = vmatpush.msra.mxu0 0.0
    %1451 = vmatpush.msra.mxu0 0.0
    %1452 = vmatpush.msra.mxu0 %v317
    %1453 = vmatpush.msra.mxu0 %v315
    %1454 = vmatpush.msra.mxu0 %v313
    %1455 = vmatpush.msra.mxu0 %v311
    %1456 = vmatpush.msra.mxu0 %v309
    %1457 = vmatpush.msra.mxu0 %v307
    %1458 = vmatpush.msra.mxu0 %v305
    %1459 = vmatpush.msra.mxu0 %v303
    %1460 = vmatpush.msra.mxu0 %v301
    %1461 = vmatpush.msra.mxu0 %v299
    %1462 = vmatpush.msra.mxu0 %v297
    %1463 = vmatpush.msra.mxu0 %v295
    %1464 = vmatmul.f32.gmra.mxu0 %v988
    %v1465 = vpop.f32.mrf.mxu0
    %v1466 = vadd.f32 0.0, %v1465
    %1467 = vdwg.mxu0
    %1468 = vmatpush.msra.mxu0 0.0
    %1469 = vmatpush.msra.mxu0 0.0
    %1470 = vmatpush.msra.mxu0 0.0
    %1471 = vmatpush.msra.mxu0 0.0
    %1472 = vmatpush.msra.mxu0 %v289
    %1473 = vmatpush.msra.mxu0 %v287
    %1474 = vmatpush.msra.mxu0 %v285
    %1475 = vmatpush.msra.mxu0 %v283
    %1476 = vmatpush.msra.mxu0 %v281
    %1477 = vmatpush.msra.mxu0 %v279
    %1478 = vmatpush.msra.mxu0 %v277
    %1479 = vmatpush.msra.mxu0 %v275
    %1480 = vmatpush.msra.mxu0 %v273
    %1481 = vmatpush.msra.mxu0 %v271
    %1482 = vmatpush.msra.mxu0 %v269
    %1483 = vmatpush.msra.mxu0 %v267
    %1484 = vmatmul.f32.gmra.mxu0 %v442
    %v1485 = vpop.f32.mrf.mxu0
    %v1486 = vadd.f32 %v1446, %v1485
    %1487 = vdwg.mxu0
    %1488 = vmatpush.msra.mxu0 0.0
    %1489 = vmatpush.msra.mxu0 0.0
    %1490 = vmatpush.msra.mxu0 0.0
    %1491 = vmatpush.msra.mxu0 0.0
    %1492 = vmatpush.msra.mxu0 %v290
    %1493 = vmatpush.msra.mxu0 %v288
    %1494 = vmatpush.msra.mxu0 %v286
    %1495 = vmatpush.msra.mxu0 %v284
    %1496 = vmatpush.msra.mxu0 %v282
    %1497 = vmatpush.msra.mxu0 %v280
    %1498 = vmatpush.msra.mxu0 %v278
    %1499 = vmatpush.msra.mxu0 %v276
    %1500 = vmatpush.msra.mxu0 %v274
    %1501 = vmatpush.msra.mxu0 %v272
    %1502 = vmatpush.msra.mxu0 %v270
    %1503 = vmatpush.msra.mxu0 %v268
    %1504 = vmatmul.f32.gmra.mxu0 %v442
    %v1505 = vpop.f32.mrf.mxu0
    %v1506 = vadd.f32 %v1466, %v1505
    %1507 = vdwg.mxu0
    %v1508 = vld [vmem:[#allocation2 + $0x8] sm:$0x1]
    %v1509 = vld [vmem:[#allocation2 + $0x18] sm:$0x1]
    %v1512 = vrot.slane %v1509, 7
    %v1513 = vsel %vm321, %v1512, %v1508
    %v1514 = vsel %vm260, %v1513, 0
    %1516 = vmatpush.msra.mxu0 0.0
    %1517 = vmatpush.msra.mxu0 0.0
    %1518 = vmatpush.msra.mxu0 0.0
    %1519 = vmatpush.msra.mxu0 0.0
    %1520 = vmatpush.msra.mxu0 %v436
    %1521 = vmatpush.msra.mxu0 %v434
    %1522 = vmatpush.msra.mxu0 %v432
    %1523 = vmatpush.msra.mxu0 %v430
    %1524 = vmatpush.msra.mxu0 %v428
    %1525 = vmatpush.msra.mxu0 %v426
    %1526 = vmatpush.msra.mxu0 %v424
    %1527 = vmatpush.msra.mxu0 %v422
    %1528 = vmatpush.msra.mxu0 %v420
    %1529 = vmatpush.msra.mxu0 %v418
    %1530 = vmatpush.msra.mxu0 %v416
    %1531 = vmatpush.msra.mxu0 %v414
    %1532 = vmatmul.f32.gmra.mxu0 %v1514
    %v1533 = vpop.f32.mrf.mxu0
    %v1534 = vadd.f32 0.0, %v1533
    %1535 = vdwg.mxu0
    %1536 = vmatpush.msra.mxu0 0.0
    %1537 = vmatpush.msra.mxu0 0.0
    %1538 = vmatpush.msra.mxu0 0.0
    %1539 = vmatpush.msra.mxu0 0.0
    %1540 = vmatpush.msra.mxu0 %v437
    %1541 = vmatpush.msra.mxu0 %v435
    %1542 = vmatpush.msra.mxu0 %v433
    %1543 = vmatpush.msra.mxu0 %v431
    %1544 = vmatpush.msra.mxu0 %v429
    %1545 = vmatpush.msra.mxu0 %v427
    %1546 = vmatpush.msra.mxu0 %v425
    %1547 = vmatpush.msra.mxu0 %v423
    %1548 = vmatpush.msra.mxu0 %v421
    %1549 = vmatpush.msra.mxu0 %v419
    %1550 = vmatpush.msra.mxu0 %v417
    %1551 = vmatpush.msra.mxu0 %v415
    %1552 = vmatmul.f32.gmra.mxu0 %v1514
    %v1553 = vpop.f32.mrf.mxu0
    %v1554 = vadd.f32 0.0, %v1553
    %1555 = vdwg.mxu0
    %v1556 = vadd.f32 %v1486, %v1534
    %v1557 = vadd.f32 %v1506, %v1554
    %v1558 = vadd.f32 %v1556, %v488
    %v1559 = vadd.f32 %v1557, %v489
    %v1560 = vmax.f32 %v1558, 0.0
    %v1561 = vmax.f32 %v1559, 0.0
    %v1562 = vpack.c.bf16 %v1560, %v1560
    %v1563 = vpack.c.bf16 %v1561, %v1561
    %s1564 = scalar_lea.vmem [#allocation6], 384
    %v1565 = vld [vmem:[%s1564] sm:$0xf]
    %v1566 = vld [vmem:[%s1564 + $0x4] sm:$0xf]
    %v1567 = vld [vmem:[%s1564 + $0x8] sm:$0xf]
    %v1568 = vld [vmem:[%s1564 + $0xc] sm:$0xf]
    %v1569 = vld [vmem:[%s1564 + $0x10] sm:$0xf]
    %v1570 = vld [vmem:[%s1564 + $0x14] sm:$0xf]
    %v1571 = vld [vmem:[%s1564 + $0x18] sm:$0xf]
    %v1572 = vld [vmem:[%s1564 + $0x1c] sm:$0xf]
    %v1573 = vld [vmem:[%s1564 + $0x20] sm:$0xf]
    %v1574 = vld [vmem:[%s1564 + $0x24] sm:$0xf]
    %v1575 = vld [vmem:[%s1564 + $0x28] sm:$0xf]
    %v1576 = vld [vmem:[%s1564 + $0x2c] sm:$0xf]
    %v1577 = vld [vmem:[%s1564 + $0x30] sm:$0xf]
    %v1578 = vld [vmem:[%s1564 + $0x34] sm:$0xf]
    %v1579 = vld [vmem:[%s1564 + $0x38] sm:$0xf]
    %v1580 = vld [vmem:[%s1564 + $0x3c] sm:$0xf]
    %v1581 = vld [vmem:[%s1564 + $0x40] sm:$0xf]
    %v1582 = vld [vmem:[%s1564 + $0x44] sm:$0xf]
    %v1583 = vld [vmem:[%s1564 + $0x48] sm:$0xf]
    %v1584 = vld [vmem:[%s1564 + $0x4c] sm:$0xf]
    %v1585 = vld [vmem:[%s1564 + $0x50] sm:$0xf]
    %v1586 = vld [vmem:[%s1564 + $0x54] sm:$0xf]
    %v1587 = vld [vmem:[%s1564 + $0x58] sm:$0xf]
    %v1588 = vld [vmem:[%s1564 + $0x5c] sm:$0xf]
    %v1613 = vunpack.c.l.b16 %v1565
    %v1614 = vunpack.c.l.b16 %v1566
    %v1615 = vunpack.c.l.b16 %v1567
    %v1616 = vunpack.c.l.b16 %v1568
    %v1617 = vunpack.c.l.b16 %v1569
    %v1618 = vunpack.c.l.b16 %v1570
    %v1619 = vunpack.c.l.b16 %v1571
    %v1620 = vunpack.c.l.b16 %v1572
    %v1621 = vunpack.c.l.b16 %v1573
    %v1622 = vunpack.c.l.b16 %v1574
    %v1623 = vunpack.c.l.b16 %v1575
    %v1624 = vunpack.c.l.b16 %v1576
    %v1625 = vunpack.c.l.b16 %v1577
    %v1626 = vunpack.c.l.b16 %v1578
    %v1627 = vunpack.c.l.b16 %v1579
    %v1628 = vunpack.c.l.b16 %v1580
    %v1629 = vunpack.c.l.b16 %v1581
    %v1630 = vunpack.c.l.b16 %v1582
    %v1631 = vunpack.c.l.b16 %v1583
    %v1632 = vunpack.c.l.b16 %v1584
    %v1633 = vunpack.c.l.b16 %v1585
    %v1634 = vunpack.c.l.b16 %v1586
    %v1635 = vunpack.c.l.b16 %v1587
    %v1636 = vunpack.c.l.b16 %v1588
    %v1637 = vpack.c.b16 %v1614, %v1613
    %v1638 = vpack.c.b16 %v1616, %v1615
    %v1639 = vpack.c.b16 %v1618, %v1617
    %v1640 = vpack.c.b16 %v1620, %v1619
    %v1641 = vpack.c.b16 %v1622, %v1621
    %v1642 = vpack.c.b16 %v1624, %v1623
    %v1643 = vpack.c.b16 %v1626, %v1625
    %v1644 = vpack.c.b16 %v1628, %v1627
    %v1645 = vpack.c.b16 %v1630, %v1629
    %v1646 = vpack.c.b16 %v1632, %v1631
    %v1647 = vpack.c.b16 %v1634, %v1633
    %v1648 = vpack.c.b16 %v1636, %v1635
    %v1662 = vsel %vm771, %v1563, 0
    %1664 = vmatpush.bf16.msra.mxu0 %v1644
    %1665 = vmatpush.bf16.msra.mxu0 %v1643
    %1666 = vmatpush.bf16.msra.mxu0 %v1642
    %1667 = vmatpush.bf16.msra.mxu0 %v1641
    %1668 = vmatpush.bf16.msra.mxu0 %v1640
    %1669 = vmatpush.bf16.msra.mxu0 %v1639
    %1670 = vmatpush.bf16.msra.mxu0 %v1638
    %1671 = vmatpush.bf16.msra.mxu0 %v1637
    %1672 = vmatmul.bf16.gmra.mxu0 %v1562
    %v1673 = vpop.f32.mrf.mxu0
    %v1674 = vadd.f32 0.0, %v1673
    %v1675 = vpop.f32.mrf.mxu0
    %1676 = vdwg.mxu0
    %1677 = vmatpush.bf16.msra.mxu0 0
    %1678 = vmatpush.bf16.msra.mxu0 0
    %1679 = vmatpush.bf16.msra.mxu0 0
    %1680 = vmatpush.bf16.msra.mxu0 0
    %1681 = vmatpush.bf16.msra.mxu0 %v1648
    %1682 = vmatpush.bf16.msra.mxu0 %v1647
    %1683 = vmatpush.bf16.msra.mxu0 %v1646
    %1684 = vmatpush.bf16.msra.mxu0 %v1645
    %1685 = vmatmul.bf16.gmra.mxu0 %v1662
    %v1686 = vpop.f32.mrf.mxu0
    %v1687 = vadd.f32 %v1674, %v1686
    %v1688 = vpop.f32.mrf.mxu0
    %1689 = vdwg.mxu0
    %v1690 = vadd.f32 %v1427, %v1687
    %1691 = vmatpush.msra.mxu0 0.0
    %1692 = vmatpush.msra.mxu0 0.0
    %1693 = vmatpush.msra.mxu0 0.0
    %1694 = vmatpush.msra.mxu0 0.0
    %1695 = vmatpush.msra.mxu0 %v316
    %1696 = vmatpush.msra.mxu0 %v314
    %1697 = vmatpush.msra.mxu0 %v312
    %1698 = vmatpush.msra.mxu0 %v310
    %1699 = vmatpush.msra.mxu0 %v308
    %1700 = vmatpush.msra.mxu0 %v306
    %1701 = vmatpush.msra.mxu0 %v304
    %1702 = vmatpush.msra.mxu0 %v302
    %1703 = vmatpush.msra.mxu0 %v300
    %1704 = vmatpush.msra.mxu0 %v298
    %1705 = vmatpush.msra.mxu0 %v296
    %1706 = vmatpush.msra.mxu0 %v294
    %1707 = vmatmul.f32.gmra.mxu0 %v1251
    %v1708 = vpop.f32.mrf.mxu0
    %v1709 = vadd.f32 0.0, %v1708
    %1710 = vdwg.mxu0
    %1711 = vmatpush.msra.mxu0 0.0
    %1712 = vmatpush.msra.mxu0 0.0
    %1713 = vmatpush.msra.mxu0 0.0
    %1714 = vmatpush.msra.mxu0 0.0
    %1715 = vmatpush.msra.mxu0 %v317
    %1716 = vmatpush.msra.mxu0 %v315
    %1717 = vmatpush.msra.mxu0 %v313
    %1718 = vmatpush.msra.mxu0 %v311
    %1719 = vmatpush.msra.mxu0 %v309
    %1720 = vmatpush.msra.mxu0 %v307
    %1721 = vmatpush.msra.mxu0 %v305
    %1722 = vmatpush.msra.mxu0 %v303
    %1723 = vmatpush.msra.mxu0 %v301
    %1724 = vmatpush.msra.mxu0 %v299
    %1725 = vmatpush.msra.mxu0 %v297
    %1726 = vmatpush.msra.mxu0 %v295
    %1727 = vmatmul.f32.gmra.mxu0 %v1251
    %v1728 = vpop.f32.mrf.mxu0
    %v1729 = vadd.f32 0.0, %v1728
    %1730 = vdwg.mxu0
    %1731 = vmatpush.msra.mxu0 0.0
    %1732 = vmatpush.msra.mxu0 0.0
    %1733 = vmatpush.msra.mxu0 0.0
    %1734 = vmatpush.msra.mxu0 0.0
    %1735 = vmatpush.msra.mxu0 %v289
    %1736 = vmatpush.msra.mxu0 %v287
    %1737 = vmatpush.msra.mxu0 %v285
    %1738 = vmatpush.msra.mxu0 %v283
    %1739 = vmatpush.msra.mxu0 %v281
    %1740 = vmatpush.msra.mxu0 %v279
    %1741 = vmatpush.msra.mxu0 %v277
    %1742 = vmatpush.msra.mxu0 %v275
    %1743 = vmatpush.msra.mxu0 %v273
    %1744 = vmatpush.msra.mxu0 %v271
    %1745 = vmatpush.msra.mxu0 %v269
    %1746 = vmatpush.msra.mxu0 %v267
    %1747 = vmatmul.f32.gmra.mxu0 %v624
    %v1748 = vpop.f32.mrf.mxu0
    %v1749 = vadd.f32 %v1709, %v1748
    %1750 = vdwg.mxu0
    %1751 = vmatpush.msra.mxu0 0.0
    %1752 = vmatpush.msra.mxu0 0.0
    %1753 = vmatpush.msra.mxu0 0.0
    %1754 = vmatpush.msra.mxu0 0.0
    %1755 = vmatpush.msra.mxu0 %v290
    %1756 = vmatpush.msra.mxu0 %v288
    %1757 = vmatpush.msra.mxu0 %v286
    %1758 = vmatpush.msra.mxu0 %v284
    %1759 = vmatpush.msra.mxu0 %v282
    %1760 = vmatpush.msra.mxu0 %v280
    %1761 = vmatpush.msra.mxu0 %v278
    %1762 = vmatpush.msra.mxu0 %v276
    %1763 = vmatpush.msra.mxu0 %v274
    %1764 = vmatpush.msra.mxu0 %v272
    %1765 = vmatpush.msra.mxu0 %v270
    %1766 = vmatpush.msra.mxu0 %v268
    %1767 = vmatmul.f32.gmra.mxu0 %v624
    %v1768 = vpop.f32.mrf.mxu0
    %v1769 = vadd.f32 %v1729, %v1768
    %1770 = vdwg.mxu0
    %v1771 = vld [vmem:[#allocation2 + $0x9] sm:$0x1]
    %v1772 = vld [vmem:[#allocation2 + $0x19] sm:$0x1]
    %v1775 = vrot.slane %v1772, 7
    %v1776 = vsel %vm321, %v1775, %v1771
    %v1777 = vsel %vm260, %v1776, 0
    %1779 = vmatpush.msra.mxu0 0.0
    %1780 = vmatpush.msra.mxu0 0.0
    %1781 = vmatpush.msra.mxu0 0.0
    %1782 = vmatpush.msra.mxu0 0.0
    %1783 = vmatpush.msra.mxu0 %v436
    %1784 = vmatpush.msra.mxu0 %v434
    %1785 = vmatpush.msra.mxu0 %v432
    %1786 = vmatpush.msra.mxu0 %v430
    %1787 = vmatpush.msra.mxu0 %v428
    %1788 = vmatpush.msra.mxu0 %v426
    %1789 = vmatpush.msra.mxu0 %v424
    %1790 = vmatpush.msra.mxu0 %v422
    %1791 = vmatpush.msra.mxu0 %v420
    %1792 = vmatpush.msra.mxu0 %v418
    %1793 = vmatpush.msra.mxu0 %v416
    %1794 = vmatpush.msra.mxu0 %v414
    %1795 = vmatmul.f32.gmra.mxu0 %v1777
    %v1796 = vpop.f32.mrf.mxu0
    %v1797 = vadd.f32 0.0, %v1796
    %1798 = vdwg.mxu0
    %1799 = vmatpush.msra.mxu0 0.0
    %1800 = vmatpush.msra.mxu0 0.0
    %1801 = vmatpush.msra.mxu0 0.0
    %1802 = vmatpush.msra.mxu0 0.0
    %1803 = vmatpush.msra.mxu0 %v437
    %1804 = vmatpush.msra.mxu0 %v435
    %1805 = vmatpush.msra.mxu0 %v433
    %1806 = vmatpush.msra.mxu0 %v431
    %1807 = vmatpush.msra.mxu0 %v429
    %1808 = vmatpush.msra.mxu0 %v427
    %1809 = vmatpush.msra.mxu0 %v425
    %1810 = vmatpush.msra.mxu0 %v423
    %1811 = vmatpush.msra.mxu0 %v421
    %1812 = vmatpush.msra.mxu0 %v419
    %1813 = vmatpush.msra.mxu0 %v417
    %1814 = vmatpush.msra.mxu0 %v415
    %1815 = vmatmul.f32.gmra.mxu0 %v1777
    %v1816 = vpop.f32.mrf.mxu0
    %v1817 = vadd.f32 0.0, %v1816
    %1818 = vdwg.mxu0
    %v1819 = vadd.f32 %v1749, %v1797
    %v1820 = vadd.f32 %v1769, %v1817
    %v1821 = vadd.f32 %v1819, %v488
    %v1822 = vadd.f32 %v1820, %v489
    %v1823 = vmax.f32 %v1821, 0.0
    %v1824 = vmax.f32 %v1822, 0.0
    %v1825 = vpack.c.bf16 %v1823, %v1823
    %v1826 = vpack.c.bf16 %v1824, %v1824
    %s1827 = scalar_lea.vmem [#allocation6], 480
    %v1828 = vld [vmem:[%s1827] sm:$0xf]
    %v1829 = vld [vmem:[%s1827 + $0x4] sm:$0xf]
    %v1830 = vld [vmem:[%s1827 + $0x8] sm:$0xf]
    %v1831 = vld [vmem:[%s1827 + $0xc] sm:$0xf]
    %v1832 = vld [vmem:[%s1827 + $0x10] sm:$0xf]
    %v1833 = vld [vmem:[%s1827 + $0x14] sm:$0xf]
    %v1834 = vld [vmem:[%s1827 + $0x18] sm:$0xf]
    %v1835 = vld [vmem:[%s1827 + $0x1c] sm:$0xf]
    %v1836 = vld [vmem:[%s1827 + $0x20] sm:$0xf]
    %v1837 = vld [vmem:[%s1827 + $0x24] sm:$0xf]
    %v1838 = vld [vmem:[%s1827 + $0x28] sm:$0xf]
    %v1839 = vld [vmem:[%s1827 + $0x2c] sm:$0xf]
    %v1840 = vld [vmem:[%s1827 + $0x30] sm:$0xf]
    %v1841 = vld [vmem:[%s1827 + $0x34] sm:$0xf]
    %v1842 = vld [vmem:[%s1827 + $0x38] sm:$0xf]
    %v1843 = vld [vmem:[%s1827 + $0x3c] sm:$0xf]
    %v1844 = vld [vmem:[%s1827 + $0x40] sm:$0xf]
    %v1845 = vld [vmem:[%s1827 + $0x44] sm:$0xf]
    %v1846 = vld [vmem:[%s1827 + $0x48] sm:$0xf]
    %v1847 = vld [vmem:[%s1827 + $0x4c] sm:$0xf]
    %v1848 = vld [vmem:[%s1827 + $0x50] sm:$0xf]
    %v1849 = vld [vmem:[%s1827 + $0x54] sm:$0xf]
    %v1850 = vld [vmem:[%s1827 + $0x58] sm:$0xf]
    %v1851 = vld [vmem:[%s1827 + $0x5c] sm:$0xf]
    %v1876 = vunpack.c.l.b16 %v1828
    %v1877 = vunpack.c.l.b16 %v1829
    %v1878 = vunpack.c.l.b16 %v1830
    %v1879 = vunpack.c.l.b16 %v1831
    %v1880 = vunpack.c.l.b16 %v1832
    %v1881 = vunpack.c.l.b16 %v1833
    %v1882 = vunpack.c.l.b16 %v1834
    %v1883 = vunpack.c.l.b16 %v1835
    %v1884 = vunpack.c.l.b16 %v1836
    %v1885 = vunpack.c.l.b16 %v1837
    %v1886 = vunpack.c.l.b16 %v1838
    %v1887 = vunpack.c.l.b16 %v1839
    %v1888 = vunpack.c.l.b16 %v1840
    %v1889 = vunpack.c.l.b16 %v1841
    %v1890 = vunpack.c.l.b16 %v1842
    %v1891 = vunpack.c.l.b16 %v1843
    %v1892 = vunpack.c.l.b16 %v1844
    %v1893 = vunpack.c.l.b16 %v1845
    %v1894 = vunpack.c.l.b16 %v1846
    %v1895 = vunpack.c.l.b16 %v1847
    %v1896 = vunpack.c.l.b16 %v1848
    %v1897 = vunpack.c.l.b16 %v1849
    %v1898 = vunpack.c.l.b16 %v1850
    %v1899 = vunpack.c.l.b16 %v1851
    %v1900 = vpack.c.b16 %v1877, %v1876
    %v1901 = vpack.c.b16 %v1879, %v1878
    %v1902 = vpack.c.b16 %v1881, %v1880
    %v1903 = vpack.c.b16 %v1883, %v1882
    %v1904 = vpack.c.b16 %v1885, %v1884
    %v1905 = vpack.c.b16 %v1887, %v1886
    %v1906 = vpack.c.b16 %v1889, %v1888
    %v1907 = vpack.c.b16 %v1891, %v1890
    %v1908 = vpack.c.b16 %v1893, %v1892
    %v1909 = vpack.c.b16 %v1895, %v1894
    %v1910 = vpack.c.b16 %v1897, %v1896
    %v1911 = vpack.c.b16 %v1899, %v1898
    %v1925 = vsel %vm771, %v1826, 0
    %1927 = vmatpush.bf16.msra.mxu0 %v1907
    %1928 = vmatpush.bf16.msra.mxu0 %v1906
    %1929 = vmatpush.bf16.msra.mxu0 %v1905
    %1930 = vmatpush.bf16.msra.mxu0 %v1904
    %1931 = vmatpush.bf16.msra.mxu0 %v1903
    %1932 = vmatpush.bf16.msra.mxu0 %v1902
    %1933 = vmatpush.bf16.msra.mxu0 %v1901
    %1934 = vmatpush.bf16.msra.mxu0 %v1900
    %1935 = vmatmul.bf16.gmra.mxu0 %v1825
    %v1936 = vpop.f32.mrf.mxu0
    %v1937 = vadd.f32 0.0, %v1936
    %v1938 = vpop.f32.mrf.mxu0
    %1939 = vdwg.mxu0
    %1940 = vmatpush.bf16.msra.mxu0 0
    %1941 = vmatpush.bf16.msra.mxu0 0
    %1942 = vmatpush.bf16.msra.mxu0 0
    %1943 = vmatpush.bf16.msra.mxu0 0
    %1944 = vmatpush.bf16.msra.mxu0 %v1911
    %1945 = vmatpush.bf16.msra.mxu0 %v1910
    %1946 = vmatpush.bf16.msra.mxu0 %v1909
    %1947 = vmatpush.bf16.msra.mxu0 %v1908
    %1948 = vmatmul.bf16.gmra.mxu0 %v1925
    %v1949 = vpop.f32.mrf.mxu0
    %v1950 = vadd.f32 %v1937, %v1949
    %v1951 = vpop.f32.mrf.mxu0
    %1952 = vdwg.mxu0
    %v1953 = vadd.f32 %v1690, %v1950
    %1954 = vmatpush.msra.mxu0 0.0
    %1955 = vmatpush.msra.mxu0 0.0
    %1956 = vmatpush.msra.mxu0 0.0
    %1957 = vmatpush.msra.mxu0 0.0
    %1958 = vmatpush.msra.mxu0 %v316
    %1959 = vmatpush.msra.mxu0 %v314
    %1960 = vmatpush.msra.mxu0 %v312
    %1961 = vmatpush.msra.mxu0 %v310
    %1962 = vmatpush.msra.mxu0 %v308
    %1963 = vmatpush.msra.mxu0 %v306
    %1964 = vmatpush.msra.mxu0 %v304
    %1965 = vmatpush.msra.mxu0 %v302
    %1966 = vmatpush.msra.mxu0 %v300
    %1967 = vmatpush.msra.mxu0 %v298
    %1968 = vmatpush.msra.mxu0 %v296
    %1969 = vmatpush.msra.mxu0 %v294
    %1970 = vmatmul.f32.gmra.mxu0 %v1514
    %v1971 = vpop.f32.mrf.mxu0
    %v1972 = vadd.f32 0.0, %v1971
    %1973 = vdwg.mxu0
    %1974 = vmatpush.msra.mxu0 0.0
    %1975 = vmatpush.msra.mxu0 0.0
    %1976 = vmatpush.msra.mxu0 0.0
    %1977 = vmatpush.msra.mxu0 0.0
    %1978 = vmatpush.msra.mxu0 %v317
    %1979 = vmatpush.msra.mxu0 %v315
    %1980 = vmatpush.msra.mxu0 %v313
    %1981 = vmatpush.msra.mxu0 %v311
    %1982 = vmatpush.msra.mxu0 %v309
    %1983 = vmatpush.msra.mxu0 %v307
    %1984 = vmatpush.msra.mxu0 %v305
    %1985 = vmatpush.msra.mxu0 %v303
    %1986 = vmatpush.msra.mxu0 %v301
    %1987 = vmatpush.msra.mxu0 %v299
    %1988 = vmatpush.msra.mxu0 %v297
    %1989 = vmatpush.msra.mxu0 %v295
    %1990 = vmatmul.f32.gmra.mxu0 %v1514
    %v1991 = vpop.f32.mrf.mxu0
    %v1992 = vadd.f32 0.0, %v1991
    %1993 = vdwg.mxu0
    %1994 = vmatpush.msra.mxu0 0.0
    %1995 = vmatpush.msra.mxu0 0.0
    %1996 = vmatpush.msra.mxu0 0.0
    %1997 = vmatpush.msra.mxu0 0.0
    %1998 = vmatpush.msra.mxu0 %v289
    %1999 = vmatpush.msra.mxu0 %v287
    %2000 = vmatpush.msra.mxu0 %v285
    %2001 = vmatpush.msra.mxu0 %v283
    %2002 = vmatpush.msra.mxu0 %v281
    %2003 = vmatpush.msra.mxu0 %v279
    %2004 = vmatpush.msra.mxu0 %v277
    %2005 = vmatpush.msra.mxu0 %v275
    %2006 = vmatpush.msra.mxu0 %v273
    %2007 = vmatpush.msra.mxu0 %v271
    %2008 = vmatpush.msra.mxu0 %v269
    %2009 = vmatpush.msra.mxu0 %v267
    %2010 = vmatmul.f32.gmra.mxu0 %v988
    %v2011 = vpop.f32.mrf.mxu0
    %v2012 = vadd.f32 %v1972, %v2011
    %2013 = vdwg.mxu0
    %2014 = vmatpush.msra.mxu0 0.0
    %2015 = vmatpush.msra.mxu0 0.0
    %2016 = vmatpush.msra.mxu0 0.0
    %2017 = vmatpush.msra.mxu0 0.0
    %2018 = vmatpush.msra.mxu0 %v290
    %2019 = vmatpush.msra.mxu0 %v288
    %2020 = vmatpush.msra.mxu0 %v286
    %2021 = vmatpush.msra.mxu0 %v284
    %2022 = vmatpush.msra.mxu0 %v282
    %2023 = vmatpush.msra.mxu0 %v280
    %2024 = vmatpush.msra.mxu0 %v278
    %2025 = vmatpush.msra.mxu0 %v276
    %2026 = vmatpush.msra.mxu0 %v274
    %2027 = vmatpush.msra.mxu0 %v272
    %2028 = vmatpush.msra.mxu0 %v270
    %2029 = vmatpush.msra.mxu0 %v268
    %2030 = vmatmul.f32.gmra.mxu0 %v988
    %v2031 = vpop.f32.mrf.mxu0
    %v2032 = vadd.f32 %v1992, %v2031
    %2033 = vdwg.mxu0
    %v2034 = vld [vmem:[#allocation2 + $0xa] sm:$0x1]
    %v2035 = vld [vmem:[#allocation2 + $0x1a] sm:$0x1]
    %v2038 = vrot.slane %v2035, 7
    %v2039 = vsel %vm321, %v2038, %v2034
    %v2040 = vsel %vm260, %v2039, 0
    %2042 = vmatpush.msra.mxu0 0.0
    %2043 = vmatpush.msra.mxu0 0.0
    %2044 = vmatpush.msra.mxu0 0.0
    %2045 = vmatpush.msra.mxu0 0.0
    %2046 = vmatpush.msra.mxu0 %v436
    %2047 = vmatpush.msra.mxu0 %v434
    %2048 = vmatpush.msra.mxu0 %v432
    %2049 = vmatpush.msra.mxu0 %v430
    %2050 = vmatpush.msra.mxu0 %v428
    %2051 = vmatpush.msra.mxu0 %v426
    %2052 = vmatpush.msra.mxu0 %v424
    %2053 = vmatpush.msra.mxu0 %v422
    %2054 = vmatpush.msra.mxu0 %v420
    %2055 = vmatpush.msra.mxu0 %v418
    %2056 = vmatpush.msra.mxu0 %v416
    %2057 = vmatpush.msra.mxu0 %v414
    %2058 = vmatmul.f32.gmra.mxu0 %v2040
    %v2059 = vpop.f32.mrf.mxu0
    %v2060 = vadd.f32 0.0, %v2059
    %2061 = vdwg.mxu0
    %2062 = vmatpush.msra.mxu0 0.0
    %2063 = vmatpush.msra.mxu0 0.0
    %2064 = vmatpush.msra.mxu0 0.0
    %2065 = vmatpush.msra.mxu0 0.0
    %2066 = vmatpush.msra.mxu0 %v437
    %2067 = vmatpush.msra.mxu0 %v435
    %2068 = vmatpush.msra.mxu0 %v433
    %2069 = vmatpush.msra.mxu0 %v431
    %2070 = vmatpush.msra.mxu0 %v429
    %2071 = vmatpush.msra.mxu0 %v427
    %2072 = vmatpush.msra.mxu0 %v425
    %2073 = vmatpush.msra.mxu0 %v423
    %2074 = vmatpush.msra.mxu0 %v421
    %2075 = vmatpush.msra.mxu0 %v419
    %2076 = vmatpush.msra.mxu0 %v417
    %2077 = vmatpush.msra.mxu0 %v415
    %2078 = vmatmul.f32.gmra.mxu0 %v2040
    %v2079 = vpop.f32.mrf.mxu0
    %v2080 = vadd.f32 0.0, %v2079
    %2081 = vdwg.mxu0
    %v2082 = vadd.f32 %v2012, %v2060
    %v2083 = vadd.f32 %v2032, %v2080
    %v2084 = vadd.f32 %v2082, %v488
    %v2085 = vadd.f32 %v2083, %v489
    %v2086 = vmax.f32 %v2084, 0.0
    %v2087 = vmax.f32 %v2085, 0.0
    %v2088 = vpack.c.bf16 %v2086, %v2086
    %v2089 = vpack.c.bf16 %v2087, %v2087
    %s2090 = scalar_lea.vmem [#allocation6], 576
    %v2091 = vld [vmem:[%s2090] sm:$0xf]
    %v2092 = vld [vmem:[%s2090 + $0x4] sm:$0xf]
    %v2093 = vld [vmem:[%s2090 + $0x8] sm:$0xf]
    %v2094 = vld [vmem:[%s2090 + $0xc] sm:$0xf]
    %v2095 = vld [vmem:[%s2090 + $0x10] sm:$0xf]
    %v2096 = vld [vmem:[%s2090 + $0x14] sm:$0xf]
    %v2097 = vld [vmem:[%s2090 + $0x18] sm:$0xf]
    %v2098 = vld [vmem:[%s2090 + $0x1c] sm:$0xf]
    %v2099 = vld [vmem:[%s2090 + $0x20] sm:$0xf]
    %v2100 = vld [vmem:[%s2090 + $0x24] sm:$0xf]
    %v2101 = vld [vmem:[%s2090 + $0x28] sm:$0xf]
    %v2102 = vld [vmem:[%s2090 + $0x2c] sm:$0xf]
    %v2103 = vld [vmem:[%s2090 + $0x30] sm:$0xf]
    %v2104 = vld [vmem:[%s2090 + $0x34] sm:$0xf]
    %v2105 = vld [vmem:[%s2090 + $0x38] sm:$0xf]
    %v2106 = vld [vmem:[%s2090 + $0x3c] sm:$0xf]
    %v2107 = vld [vmem:[%s2090 + $0x40] sm:$0xf]
    %v2108 = vld [vmem:[%s2090 + $0x44] sm:$0xf]
    %v2109 = vld [vmem:[%s2090 + $0x48] sm:$0xf]
    %v2110 = vld [vmem:[%s2090 + $0x4c] sm:$0xf]
    %v2111 = vld [vmem:[%s2090 + $0x50] sm:$0xf]
    %v2112 = vld [vmem:[%s2090 + $0x54] sm:$0xf]
    %v2113 = vld [vmem:[%s2090 + $0x58] sm:$0xf]
    %v2114 = vld [vmem:[%s2090 + $0x5c] sm:$0xf]
    %v2139 = vunpack.c.l.b16 %v2091
    %v2140 = vunpack.c.l.b16 %v2092
    %v2141 = vunpack.c.l.b16 %v2093
    %v2142 = vunpack.c.l.b16 %v2094
    %v2143 = vunpack.c.l.b16 %v2095
    %v2144 = vunpack.c.l.b16 %v2096
    %v2145 = vunpack.c.l.b16 %v2097
    %v2146 = vunpack.c.l.b16 %v2098
    %v2147 = vunpack.c.l.b16 %v2099
    %v2148 = vunpack.c.l.b16 %v2100
    %v2149 = vunpack.c.l.b16 %v2101
    %v2150 = vunpack.c.l.b16 %v2102
    %v2151 = vunpack.c.l.b16 %v2103
    %v2152 = vunpack.c.l.b16 %v2104
    %v2153 = vunpack.c.l.b16 %v2105
    %v2154 = vunpack.c.l.b16 %v2106
    %v2155 = vunpack.c.l.b16 %v2107
    %v2156 = vunpack.c.l.b16 %v2108
    %v2157 = vunpack.c.l.b16 %v2109
    %v2158 = vunpack.c.l.b16 %v2110
    %v2159 = vunpack.c.l.b16 %v2111
    %v2160 = vunpack.c.l.b16 %v2112
    %v2161 = vunpack.c.l.b16 %v2113
    %v2162 = vunpack.c.l.b16 %v2114
    %v2163 = vpack.c.b16 %v2140, %v2139
    %v2164 = vpack.c.b16 %v2142, %v2141
    %v2165 = vpack.c.b16 %v2144, %v2143
    %v2166 = vpack.c.b16 %v2146, %v2145
    %v2167 = vpack.c.b16 %v2148, %v2147
    %v2168 = vpack.c.b16 %v2150, %v2149
    %v2169 = vpack.c.b16 %v2152, %v2151
    %v2170 = vpack.c.b16 %v2154, %v2153
    %v2171 = vpack.c.b16 %v2156, %v2155
    %v2172 = vpack.c.b16 %v2158, %v2157
    %v2173 = vpack.c.b16 %v2160, %v2159
    %v2174 = vpack.c.b16 %v2162, %v2161
    %v2188 = vsel %vm771, %v2089, 0
    %2190 = vmatpush.bf16.msra.mxu0 %v2170
    %2191 = vmatpush.bf16.msra.mxu0 %v2169
    %2192 = vmatpush.bf16.msra.mxu0 %v2168
    %2193 = vmatpush.bf16.msra.mxu0 %v2167
    %2194 = vmatpush.bf16.msra.mxu0 %v2166
    %2195 = vmatpush.bf16.msra.mxu0 %v2165
    %2196 = vmatpush.bf16.msra.mxu0 %v2164
    %2197 = vmatpush.bf16.msra.mxu0 %v2163
    %2198 = vmatmul.bf16.gmra.mxu0 %v2088
    %v2199 = vpop.f32.mrf.mxu0
    %v2200 = vadd.f32 0.0, %v2199
    %v2201 = vpop.f32.mrf.mxu0
    %2202 = vdwg.mxu0
    %2203 = vmatpush.bf16.msra.mxu0 0
    %2204 = vmatpush.bf16.msra.mxu0 0
    %2205 = vmatpush.bf16.msra.mxu0 0
    %2206 = vmatpush.bf16.msra.mxu0 0
    %2207 = vmatpush.bf16.msra.mxu0 %v2174
    %2208 = vmatpush.bf16.msra.mxu0 %v2173
    %2209 = vmatpush.bf16.msra.mxu0 %v2172
    %2210 = vmatpush.bf16.msra.mxu0 %v2171
    %2211 = vmatmul.bf16.gmra.mxu0 %v2188
    %v2212 = vpop.f32.mrf.mxu0
    %v2213 = vadd.f32 %v2200, %v2212
    %v2214 = vpop.f32.mrf.mxu0
    %2215 = vdwg.mxu0
    %v2216 = vadd.f32 %v1953, %v2213
    %2217 = vmatpush.msra.mxu0 0.0
    %2218 = vmatpush.msra.mxu0 0.0
    %2219 = vmatpush.msra.mxu0 0.0
    %2220 = vmatpush.msra.mxu0 0.0
    %2221 = vmatpush.msra.mxu0 %v316
    %2222 = vmatpush.msra.mxu0 %v314
    %2223 = vmatpush.msra.mxu0 %v312
    %2224 = vmatpush.msra.mxu0 %v310
    %2225 = vmatpush.msra.mxu0 %v308
    %2226 = vmatpush.msra.mxu0 %v306
    %2227 = vmatpush.msra.mxu0 %v304
    %2228 = vmatpush.msra.mxu0 %v302
    %2229 = vmatpush.msra.mxu0 %v300
    %2230 = vmatpush.msra.mxu0 %v298
    %2231 = vmatpush.msra.mxu0 %v296
    %2232 = vmatpush.msra.mxu0 %v294
    %2233 = vmatmul.f32.gmra.mxu0 %v1777
    %v2234 = vpop.f32.mrf.mxu0
    %v2235 = vadd.f32 0.0, %v2234
    %2236 = vdwg.mxu0
    %2237 = vmatpush.msra.mxu0 0.0
    %2238 = vmatpush.msra.mxu0 0.0
    %2239 = vmatpush.msra.mxu0 0.0
    %2240 = vmatpush.msra.mxu0 0.0
    %2241 = vmatpush.msra.mxu0 %v317
    %2242 = vmatpush.msra.mxu0 %v315
    %2243 = vmatpush.msra.mxu0 %v313
    %2244 = vmatpush.msra.mxu0 %v311
    %2245 = vmatpush.msra.mxu0 %v309
    %2246 = vmatpush.msra.mxu0 %v307
    %2247 = vmatpush.msra.mxu0 %v305
    %2248 = vmatpush.msra.mxu0 %v303
    %2249 = vmatpush.msra.mxu0 %v301
    %2250 = vmatpush.msra.mxu0 %v299
    %2251 = vmatpush.msra.mxu0 %v297
    %2252 = vmatpush.msra.mxu0 %v295
    %2253 = vmatmul.f32.gmra.mxu0 %v1777
    %v2254 = vpop.f32.mrf.mxu0
    %v2255 = vadd.f32 0.0, %v2254
    %2256 = vdwg.mxu0
    %2257 = vmatpush.msra.mxu0 0.0
    %2258 = vmatpush.msra.mxu0 0.0
    %2259 = vmatpush.msra.mxu0 0.0
    %2260 = vmatpush.msra.mxu0 0.0
    %2261 = vmatpush.msra.mxu0 %v289
    %2262 = vmatpush.msra.mxu0 %v287
    %2263 = vmatpush.msra.mxu0 %v285
    %2264 = vmatpush.msra.mxu0 %v283
    %2265 = vmatpush.msra.mxu0 %v281
    %2266 = vmatpush.msra.mxu0 %v279
    %2267 = vmatpush.msra.mxu0 %v277
    %2268 = vmatpush.msra.mxu0 %v275
    %2269 = vmatpush.msra.mxu0 %v273
    %2270 = vmatpush.msra.mxu0 %v271
    %2271 = vmatpush.msra.mxu0 %v269
    %2272 = vmatpush.msra.mxu0 %v267
    %2273 = vmatmul.f32.gmra.mxu0 %v1251
    %v2274 = vpop.f32.mrf.mxu0
    %v2275 = vadd.f32 %v2235, %v2274
    %2276 = vdwg.mxu0
    %2277 = vmatpush.msra.mxu0 0.0
    %2278 = vmatpush.msra.mxu0 0.0
    %2279 = vmatpush.msra.mxu0 0.0
    %2280 = vmatpush.msra.mxu0 0.0
    %2281 = vmatpush.msra.mxu0 %v290
    %2282 = vmatpush.msra.mxu0 %v288
    %2283 = vmatpush.msra.mxu0 %v286
    %2284 = vmatpush.msra.mxu0 %v284
    %2285 = vmatpush.msra.mxu0 %v282
    %2286 = vmatpush.msra.mxu0 %v280
    %2287 = vmatpush.msra.mxu0 %v278
    %2288 = vmatpush.msra.mxu0 %v276
    %2289 = vmatpush.msra.mxu0 %v274
    %2290 = vmatpush.msra.mxu0 %v272
    %2291 = vmatpush.msra.mxu0 %v270
    %2292 = vmatpush.msra.mxu0 %v268
    %2293 = vmatmul.f32.gmra.mxu0 %v1251
    %v2294 = vpop.f32.mrf.mxu0
    %v2295 = vadd.f32 %v2255, %v2294
    %2296 = vdwg.mxu0
    %v2297 = vld [vmem:[#allocation2 + $0xb] sm:$0x1]
    %v2298 = vld [vmem:[#allocation2 + $0x1b] sm:$0x1]
    %v2301 = vrot.slane %v2298, 7
    %v2302 = vsel %vm321, %v2301, %v2297
    %v2303 = vsel %vm260, %v2302, 0
    %2305 = vmatpush.msra.mxu0 0.0
    %2306 = vmatpush.msra.mxu0 0.0
    %2307 = vmatpush.msra.mxu0 0.0
    %2308 = vmatpush.msra.mxu0 0.0
    %2309 = vmatpush.msra.mxu0 %v436
    %2310 = vmatpush.msra.mxu0 %v434
    %2311 = vmatpush.msra.mxu0 %v432
    %2312 = vmatpush.msra.mxu0 %v430
    %2313 = vmatpush.msra.mxu0 %v428
    %2314 = vmatpush.msra.mxu0 %v426
    %2315 = vmatpush.msra.mxu0 %v424
    %2316 = vmatpush.msra.mxu0 %v422
    %2317 = vmatpush.msra.mxu0 %v420
    %2318 = vmatpush.msra.mxu0 %v418
    %2319 = vmatpush.msra.mxu0 %v416
    %2320 = vmatpush.msra.mxu0 %v414
    %2321 = vmatmul.f32.gmra.mxu0 %v2303
    %v2322 = vpop.f32.mrf.mxu0
    %v2323 = vadd.f32 0.0, %v2322
    %2324 = vdwg.mxu0
    %2325 = vmatpush.msra.mxu0 0.0
    %2326 = vmatpush.msra.mxu0 0.0
    %2327 = vmatpush.msra.mxu0 0.0
    %2328 = vmatpush.msra.mxu0 0.0
    %2329 = vmatpush.msra.mxu0 %v437
    %2330 = vmatpush.msra.mxu0 %v435
    %2331 = vmatpush.msra.mxu0 %v433
    %2332 = vmatpush.msra.mxu0 %v431
    %2333 = vmatpush.msra.mxu0 %v429
    %2334 = vmatpush.msra.mxu0 %v427
    %2335 = vmatpush.msra.mxu0 %v425
    %2336 = vmatpush.msra.mxu0 %v423
    %2337 = vmatpush.msra.mxu0 %v421
    %2338 = vmatpush.msra.mxu0 %v419
    %2339 = vmatpush.msra.mxu0 %v417
    %2340 = vmatpush.msra.mxu0 %v415
    %2341 = vmatmul.f32.gmra.mxu0 %v2303
    %v2342 = vpop.f32.mrf.mxu0
    %v2343 = vadd.f32 0.0, %v2342
    %2344 = vdwg.mxu0
    %v2345 = vadd.f32 %v2275, %v2323
    %v2346 = vadd.f32 %v2295, %v2343
    %v2347 = vadd.f32 %v2345, %v488
    %v2348 = vadd.f32 %v2346, %v489
    %v2349 = vmax.f32 %v2347, 0.0
    %v2350 = vmax.f32 %v2348, 0.0
    %v2351 = vpack.c.bf16 %v2349, %v2349
    %v2352 = vpack.c.bf16 %v2350, %v2350
    %s2353 = scalar_lea.vmem [#allocation6], 672
    %v2354 = vld [vmem:[%s2353] sm:$0xf]
    %v2355 = vld [vmem:[%s2353 + $0x4] sm:$0xf]
    %v2356 = vld [vmem:[%s2353 + $0x8] sm:$0xf]
    %v2357 = vld [vmem:[%s2353 + $0xc] sm:$0xf]
    %v2358 = vld [vmem:[%s2353 + $0x10] sm:$0xf]
    %v2359 = vld [vmem:[%s2353 + $0x14] sm:$0xf]
    %v2360 = vld [vmem:[%s2353 + $0x18] sm:$0xf]
    %v2361 = vld [vmem:[%s2353 + $0x1c] sm:$0xf]
    %v2362 = vld [vmem:[%s2353 + $0x20] sm:$0xf]
    %v2363 = vld [vmem:[%s2353 + $0x24] sm:$0xf]
    %v2364 = vld [vmem:[%s2353 + $0x28] sm:$0xf]
    %v2365 = vld [vmem:[%s2353 + $0x2c] sm:$0xf]
    %v2366 = vld [vmem:[%s2353 + $0x30] sm:$0xf]
    %v2367 = vld [vmem:[%s2353 + $0x34] sm:$0xf]
    %v2368 = vld [vmem:[%s2353 + $0x38] sm:$0xf]
    %v2369 = vld [vmem:[%s2353 + $0x3c] sm:$0xf]
    %v2370 = vld [vmem:[%s2353 + $0x40] sm:$0xf]
    %v2371 = vld [vmem:[%s2353 + $0x44] sm:$0xf]
    %v2372 = vld [vmem:[%s2353 + $0x48] sm:$0xf]
    %v2373 = vld [vmem:[%s2353 + $0x4c] sm:$0xf]
    %v2374 = vld [vmem:[%s2353 + $0x50] sm:$0xf]
    %v2375 = vld [vmem:[%s2353 + $0x54] sm:$0xf]
    %v2376 = vld [vmem:[%s2353 + $0x58] sm:$0xf]
    %v2377 = vld [vmem:[%s2353 + $0x5c] sm:$0xf]
    %v2402 = vunpack.c.l.b16 %v2354
    %v2403 = vunpack.c.l.b16 %v2355
    %v2404 = vunpack.c.l.b16 %v2356
    %v2405 = vunpack.c.l.b16 %v2357
    %v2406 = vunpack.c.l.b16 %v2358
    %v2407 = vunpack.c.l.b16 %v2359
    %v2408 = vunpack.c.l.b16 %v2360
    %v2409 = vunpack.c.l.b16 %v2361
    %v2410 = vunpack.c.l.b16 %v2362
    %v2411 = vunpack.c.l.b16 %v2363
    %v2412 = vunpack.c.l.b16 %v2364
    %v2413 = vunpack.c.l.b16 %v2365
    %v2414 = vunpack.c.l.b16 %v2366
    %v2415 = vunpack.c.l.b16 %v2367
    %v2416 = vunpack.c.l.b16 %v2368
    %v2417 = vunpack.c.l.b16 %v2369
    %v2418 = vunpack.c.l.b16 %v2370
    %v2419 = vunpack.c.l.b16 %v2371
    %v2420 = vunpack.c.l.b16 %v2372
    %v2421 = vunpack.c.l.b16 %v2373
    %v2422 = vunpack.c.l.b16 %v2374
    %v2423 = vunpack.c.l.b16 %v2375
    %v2424 = vunpack.c.l.b16 %v2376
    %v2425 = vunpack.c.l.b16 %v2377
    %v2426 = vpack.c.b16 %v2403, %v2402
    %v2427 = vpack.c.b16 %v2405, %v2404
    %v2428 = vpack.c.b16 %v2407, %v2406
    %v2429 = vpack.c.b16 %v2409, %v2408
    %v2430 = vpack.c.b16 %v2411, %v2410
    %v2431 = vpack.c.b16 %v2413, %v2412
    %v2432 = vpack.c.b16 %v2415, %v2414
    %v2433 = vpack.c.b16 %v2417, %v2416
    %v2434 = vpack.c.b16 %v2419, %v2418
    %v2435 = vpack.c.b16 %v2421, %v2420
    %v2436 = vpack.c.b16 %v2423, %v2422
    %v2437 = vpack.c.b16 %v2425, %v2424
    %v2451 = vsel %vm771, %v2352, 0
    %2453 = vmatpush.bf16.msra.mxu0 %v2433
    %2454 = vmatpush.bf16.msra.mxu0 %v2432
    %2455 = vmatpush.bf16.msra.mxu0 %v2431
    %2456 = vmatpush.bf16.msra.mxu0 %v2430
    %2457 = vmatpush.bf16.msra.mxu0 %v2429
    %2458 = vmatpush.bf16.msra.mxu0 %v2428
    %2459 = vmatpush.bf16.msra.mxu0 %v2427
    %2460 = vmatpush.bf16.msra.mxu0 %v2426
    %2461 = vmatmul.bf16.gmra.mxu0 %v2351
    %v2462 = vpop.f32.mrf.mxu0
    %v2463 = vadd.f32 0.0, %v2462
    %v2464 = vpop.f32.mrf.mxu0
    %2465 = vdwg.mxu0
    %2466 = vmatpush.bf16.msra.mxu0 0
    %2467 = vmatpush.bf16.msra.mxu0 0
    %2468 = vmatpush.bf16.msra.mxu0 0
    %2469 = vmatpush.bf16.msra.mxu0 0
    %2470 = vmatpush.bf16.msra.mxu0 %v2437
    %2471 = vmatpush.bf16.msra.mxu0 %v2436
    %2472 = vmatpush.bf16.msra.mxu0 %v2435
    %2473 = vmatpush.bf16.msra.mxu0 %v2434
    %2474 = vmatmul.bf16.gmra.mxu0 %v2451
    %v2475 = vpop.f32.mrf.mxu0
    %v2476 = vadd.f32 %v2463, %v2475
    %v2477 = vpop.f32.mrf.mxu0
    %2478 = vdwg.mxu0
    %v2479 = vadd.f32 %v2216, %v2476
    %2480 = vmatpush.msra.mxu0 0.0
    %2481 = vmatpush.msra.mxu0 0.0
    %2482 = vmatpush.msra.mxu0 0.0
    %2483 = vmatpush.msra.mxu0 0.0
    %2484 = vmatpush.msra.mxu0 %v316
    %2485 = vmatpush.msra.mxu0 %v314
    %2486 = vmatpush.msra.mxu0 %v312
    %2487 = vmatpush.msra.mxu0 %v310
    %2488 = vmatpush.msra.mxu0 %v308
    %2489 = vmatpush.msra.mxu0 %v306
    %2490 = vmatpush.msra.mxu0 %v304
    %2491 = vmatpush.msra.mxu0 %v302
    %2492 = vmatpush.msra.mxu0 %v300
    %2493 = vmatpush.msra.mxu0 %v298
    %2494 = vmatpush.msra.mxu0 %v296
    %2495 = vmatpush.msra.mxu0 %v294
    %2496 = vmatmul.f32.gmra.mxu0 %v2040
    %v2497 = vpop.f32.mrf.mxu0
    %v2498 = vadd.f32 0.0, %v2497
    %2499 = vdwg.mxu0
    %2500 = vmatpush.msra.mxu0 0.0
    %2501 = vmatpush.msra.mxu0 0.0
    %2502 = vmatpush.msra.mxu0 0.0
    %2503 = vmatpush.msra.mxu0 0.0
    %2504 = vmatpush.msra.mxu0 %v317
    %2505 = vmatpush.msra.mxu0 %v315
    %2506 = vmatpush.msra.mxu0 %v313
    %2507 = vmatpush.msra.mxu0 %v311
    %2508 = vmatpush.msra.mxu0 %v309
    %2509 = vmatpush.msra.mxu0 %v307
    %2510 = vmatpush.msra.mxu0 %v305
    %2511 = vmatpush.msra.mxu0 %v303
    %2512 = vmatpush.msra.mxu0 %v301
    %2513 = vmatpush.msra.mxu0 %v299
    %2514 = vmatpush.msra.mxu0 %v297
    %2515 = vmatpush.msra.mxu0 %v295
    %2516 = vmatmul.f32.gmra.mxu0 %v2040
    %v2517 = vpop.f32.mrf.mxu0
    %v2518 = vadd.f32 0.0, %v2517
    %2519 = vdwg.mxu0
    %2520 = vmatpush.msra.mxu0 0.0
    %2521 = vmatpush.msra.mxu0 0.0
    %2522 = vmatpush.msra.mxu0 0.0
    %2523 = vmatpush.msra.mxu0 0.0
    %2524 = vmatpush.msra.mxu0 %v289
    %2525 = vmatpush.msra.mxu0 %v287
    %2526 = vmatpush.msra.mxu0 %v285
    %2527 = vmatpush.msra.mxu0 %v283
    %2528 = vmatpush.msra.mxu0 %v281
    %2529 = vmatpush.msra.mxu0 %v279
    %2530 = vmatpush.msra.mxu0 %v277
    %2531 = vmatpush.msra.mxu0 %v275
    %2532 = vmatpush.msra.mxu0 %v273
    %2533 = vmatpush.msra.mxu0 %v271
    %2534 = vmatpush.msra.mxu0 %v269
    %2535 = vmatpush.msra.mxu0 %v267
    %2536 = vmatmul.f32.gmra.mxu0 %v1514
    %v2537 = vpop.f32.mrf.mxu0
    %v2538 = vadd.f32 %v2498, %v2537
    %2539 = vdwg.mxu0
    %2540 = vmatpush.msra.mxu0 0.0
    %2541 = vmatpush.msra.mxu0 0.0
    %2542 = vmatpush.msra.mxu0 0.0
    %2543 = vmatpush.msra.mxu0 0.0
    %2544 = vmatpush.msra.mxu0 %v290
    %2545 = vmatpush.msra.mxu0 %v288
    %2546 = vmatpush.msra.mxu0 %v286
    %2547 = vmatpush.msra.mxu0 %v284
    %2548 = vmatpush.msra.mxu0 %v282
    %2549 = vmatpush.msra.mxu0 %v280
    %2550 = vmatpush.msra.mxu0 %v278
    %2551 = vmatpush.msra.mxu0 %v276
    %2552 = vmatpush.msra.mxu0 %v274
    %2553 = vmatpush.msra.mxu0 %v272
    %2554 = vmatpush.msra.mxu0 %v270
    %2555 = vmatpush.msra.mxu0 %v268
    %2556 = vmatmul.f32.gmra.mxu0 %v1514
    %v2557 = vpop.f32.mrf.mxu0
    %v2558 = vadd.f32 %v2518, %v2557
    %2559 = vdwg.mxu0
    %v2560 = vld [vmem:[#allocation2 + $0xc] sm:$0x1]
    %v2561 = vld [vmem:[#allocation2 + $0x1c] sm:$0x1]
    %v2564 = vrot.slane %v2561, 7
    %v2565 = vsel %vm321, %v2564, %v2560
    %v2566 = vsel %vm260, %v2565, 0
    %2568 = vmatpush.msra.mxu0 0.0
    %2569 = vmatpush.msra.mxu0 0.0
    %2570 = vmatpush.msra.mxu0 0.0
    %2571 = vmatpush.msra.mxu0 0.0
    %2572 = vmatpush.msra.mxu0 %v436
    %2573 = vmatpush.msra.mxu0 %v434
    %2574 = vmatpush.msra.mxu0 %v432
    %2575 = vmatpush.msra.mxu0 %v430
    %2576 = vmatpush.msra.mxu0 %v428
    %2577 = vmatpush.msra.mxu0 %v426
    %2578 = vmatpush.msra.mxu0 %v424
    %2579 = vmatpush.msra.mxu0 %v422
    %2580 = vmatpush.msra.mxu0 %v420
    %2581 = vmatpush.msra.mxu0 %v418
    %2582 = vmatpush.msra.mxu0 %v416
    %2583 = vmatpush.msra.mxu0 %v414
    %2584 = vmatmul.f32.gmra.mxu0 %v2566
    %v2585 = vpop.f32.mrf.mxu0
    %v2586 = vadd.f32 0.0, %v2585
    %2587 = vdwg.mxu0
    %2588 = vmatpush.msra.mxu0 0.0
    %2589 = vmatpush.msra.mxu0 0.0
    %2590 = vmatpush.msra.mxu0 0.0
    %2591 = vmatpush.msra.mxu0 0.0
    %2592 = vmatpush.msra.mxu0 %v437
    %2593 = vmatpush.msra.mxu0 %v435
    %2594 = vmatpush.msra.mxu0 %v433
    %2595 = vmatpush.msra.mxu0 %v431
    %2596 = vmatpush.msra.mxu0 %v429
    %2597 = vmatpush.msra.mxu0 %v427
    %2598 = vmatpush.msra.mxu0 %v425
    %2599 = vmatpush.msra.mxu0 %v423
    %2600 = vmatpush.msra.mxu0 %v421
    %2601 = vmatpush.msra.mxu0 %v419
    %2602 = vmatpush.msra.mxu0 %v417
    %2603 = vmatpush.msra.mxu0 %v415
    %2604 = vmatmul.f32.gmra.mxu0 %v2566
    %v2605 = vpop.f32.mrf.mxu0
    %v2606 = vadd.f32 0.0, %v2605
    %2607 = vdwg.mxu0
    %v2608 = vadd.f32 %v2538, %v2586
    %v2609 = vadd.f32 %v2558, %v2606
    %v2610 = vadd.f32 %v2608, %v488
    %v2611 = vadd.f32 %v2609, %v489
    %v2612 = vmax.f32 %v2610, 0.0
    %v2613 = vmax.f32 %v2611, 0.0
    %v2614 = vpack.c.bf16 %v2612, %v2612
    %v2615 = vpack.c.bf16 %v2613, %v2613
    %s2616 = scalar_lea.vmem [#allocation6], 768
    %v2617 = vld [vmem:[%s2616] sm:$0xf]
    %v2618 = vld [vmem:[%s2616 + $0x4] sm:$0xf]
    %v2619 = vld [vmem:[%s2616 + $0x8] sm:$0xf]
    %v2620 = vld [vmem:[%s2616 + $0xc] sm:$0xf]
    %v2621 = vld [vmem:[%s2616 + $0x10] sm:$0xf]
    %v2622 = vld [vmem:[%s2616 + $0x14] sm:$0xf]
    %v2623 = vld [vmem:[%s2616 + $0x18] sm:$0xf]
    %v2624 = vld [vmem:[%s2616 + $0x1c] sm:$0xf]
    %v2625 = vld [vmem:[%s2616 + $0x20] sm:$0xf]
    %v2626 = vld [vmem:[%s2616 + $0x24] sm:$0xf]
    %v2627 = vld [vmem:[%s2616 + $0x28] sm:$0xf]
    %v2628 = vld [vmem:[%s2616 + $0x2c] sm:$0xf]
    %v2629 = vld [vmem:[%s2616 + $0x30] sm:$0xf]
    %v2630 = vld [vmem:[%s2616 + $0x34] sm:$0xf]
    %v2631 = vld [vmem:[%s2616 + $0x38] sm:$0xf]
    %v2632 = vld [vmem:[%s2616 + $0x3c] sm:$0xf]
    %v2633 = vld [vmem:[%s2616 + $0x40] sm:$0xf]
    %v2634 = vld [vmem:[%s2616 + $0x44] sm:$0xf]
    %v2635 = vld [vmem:[%s2616 + $0x48] sm:$0xf]
    %v2636 = vld [vmem:[%s2616 + $0x4c] sm:$0xf]
    %v2637 = vld [vmem:[%s2616 + $0x50] sm:$0xf]
    %v2638 = vld [vmem:[%s2616 + $0x54] sm:$0xf]
    %v2639 = vld [vmem:[%s2616 + $0x58] sm:$0xf]
    %v2640 = vld [vmem:[%s2616 + $0x5c] sm:$0xf]
    %v2665 = vunpack.c.l.b16 %v2617
    %v2666 = vunpack.c.l.b16 %v2618
    %v2667 = vunpack.c.l.b16 %v2619
    %v2668 = vunpack.c.l.b16 %v2620
    %v2669 = vunpack.c.l.b16 %v2621
    %v2670 = vunpack.c.l.b16 %v2622
    %v2671 = vunpack.c.l.b16 %v2623
    %v2672 = vunpack.c.l.b16 %v2624
    %v2673 = vunpack.c.l.b16 %v2625
    %v2674 = vunpack.c.l.b16 %v2626
    %v2675 = vunpack.c.l.b16 %v2627
    %v2676 = vunpack.c.l.b16 %v2628
    %v2677 = vunpack.c.l.b16 %v2629
    %v2678 = vunpack.c.l.b16 %v2630
    %v2679 = vunpack.c.l.b16 %v2631
    %v2680 = vunpack.c.l.b16 %v2632
    %v2681 = vunpack.c.l.b16 %v2633
    %v2682 = vunpack.c.l.b16 %v2634
    %v2683 = vunpack.c.l.b16 %v2635
    %v2684 = vunpack.c.l.b16 %v2636
    %v2685 = vunpack.c.l.b16 %v2637
    %v2686 = vunpack.c.l.b16 %v2638
    %v2687 = vunpack.c.l.b16 %v2639
    %v2688 = vunpack.c.l.b16 %v2640
    %v2689 = vpack.c.b16 %v2666, %v2665
    %v2690 = vpack.c.b16 %v2668, %v2667
    %v2691 = vpack.c.b16 %v2670, %v2669
    %v2692 = vpack.c.b16 %v2672, %v2671
    %v2693 = vpack.c.b16 %v2674, %v2673
    %v2694 = vpack.c.b16 %v2676, %v2675
    %v2695 = vpack.c.b16 %v2678, %v2677
    %v2696 = vpack.c.b16 %v2680, %v2679
    %v2697 = vpack.c.b16 %v2682, %v2681
    %v2698 = vpack.c.b16 %v2684, %v2683
    %v2699 = vpack.c.b16 %v2686, %v2685
    %v2700 = vpack.c.b16 %v2688, %v2687
    %v2714 = vsel %vm771, %v2615, 0
    %2716 = vmatpush.bf16.msra.mxu0 %v2696
    %2717 = vmatpush.bf16.msra.mxu0 %v2695
    %2718 = vmatpush.bf16.msra.mxu0 %v2694
    %2719 = vmatpush.bf16.msra.mxu0 %v2693
    %2720 = vmatpush.bf16.msra.mxu0 %v2692
    %2721 = vmatpush.bf16.msra.mxu0 %v2691
    %2722 = vmatpush.bf16.msra.mxu0 %v2690
    %2723 = vmatpush.bf16.msra.mxu0 %v2689
    %2724 = vmatmul.bf16.gmra.mxu0 %v2614
    %v2725 = vpop.f32.mrf.mxu0
    %v2726 = vadd.f32 0.0, %v2725
    %v2727 = vpop.f32.mrf.mxu0
    %2728 = vdwg.mxu0
    %2729 = vmatpush.bf16.msra.mxu0 0
    %2730 = vmatpush.bf16.msra.mxu0 0
    %2731 = vmatpush.bf16.msra.mxu0 0
    %2732 = vmatpush.bf16.msra.mxu0 0
    %2733 = vmatpush.bf16.msra.mxu0 %v2700
    %2734 = vmatpush.bf16.msra.mxu0 %v2699
    %2735 = vmatpush.bf16.msra.mxu0 %v2698
    %2736 = vmatpush.bf16.msra.mxu0 %v2697
    %2737 = vmatmul.bf16.gmra.mxu0 %v2714
    %v2738 = vpop.f32.mrf.mxu0
    %v2739 = vadd.f32 %v2726, %v2738
    %v2740 = vpop.f32.mrf.mxu0
    %2741 = vdwg.mxu0
    %v2742 = vadd.f32 %v2479, %v2739
    %2743 = vmatpush.msra.mxu0 0.0
    %2744 = vmatpush.msra.mxu0 0.0
    %2745 = vmatpush.msra.mxu0 0.0
    %2746 = vmatpush.msra.mxu0 0.0
    %2747 = vmatpush.msra.mxu0 %v316
    %2748 = vmatpush.msra.mxu0 %v314
    %2749 = vmatpush.msra.mxu0 %v312
    %2750 = vmatpush.msra.mxu0 %v310
    %2751 = vmatpush.msra.mxu0 %v308
    %2752 = vmatpush.msra.mxu0 %v306
    %2753 = vmatpush.msra.mxu0 %v304
    %2754 = vmatpush.msra.mxu0 %v302
    %2755 = vmatpush.msra.mxu0 %v300
    %2756 = vmatpush.msra.mxu0 %v298
    %2757 = vmatpush.msra.mxu0 %v296
    %2758 = vmatpush.msra.mxu0 %v294
    %2759 = vmatmul.f32.gmra.mxu0 %v2303
    %v2760 = vpop.f32.mrf.mxu0
    %v2761 = vadd.f32 0.0, %v2760
    %2762 = vdwg.mxu0
    %2763 = vmatpush.msra.mxu0 0.0
    %2764 = vmatpush.msra.mxu0 0.0
    %2765 = vmatpush.msra.mxu0 0.0
    %2766 = vmatpush.msra.mxu0 0.0
    %2767 = vmatpush.msra.mxu0 %v317
    %2768 = vmatpush.msra.mxu0 %v315
    %2769 = vmatpush.msra.mxu0 %v313
    %2770 = vmatpush.msra.mxu0 %v311
    %2771 = vmatpush.msra.mxu0 %v309
    %2772 = vmatpush.msra.mxu0 %v307
    %2773 = vmatpush.msra.mxu0 %v305
    %2774 = vmatpush.msra.mxu0 %v303
    %2775 = vmatpush.msra.mxu0 %v301
    %2776 = vmatpush.msra.mxu0 %v299
    %2777 = vmatpush.msra.mxu0 %v297
    %2778 = vmatpush.msra.mxu0 %v295
    %2779 = vmatmul.f32.gmra.mxu0 %v2303
    %v2780 = vpop.f32.mrf.mxu0
    %v2781 = vadd.f32 0.0, %v2780
    %2782 = vdwg.mxu0
    %2783 = vmatpush.msra.mxu0 0.0
    %2784 = vmatpush.msra.mxu0 0.0
    %2785 = vmatpush.msra.mxu0 0.0
    %2786 = vmatpush.msra.mxu0 0.0
    %2787 = vmatpush.msra.mxu0 %v289
    %2788 = vmatpush.msra.mxu0 %v287
    %2789 = vmatpush.msra.mxu0 %v285
    %2790 = vmatpush.msra.mxu0 %v283
    %2791 = vmatpush.msra.mxu0 %v281
    %2792 = vmatpush.msra.mxu0 %v279
    %2793 = vmatpush.msra.mxu0 %v277
    %2794 = vmatpush.msra.mxu0 %v275
    %2795 = vmatpush.msra.mxu0 %v273
    %2796 = vmatpush.msra.mxu0 %v271
    %2797 = vmatpush.msra.mxu0 %v269
    %2798 = vmatpush.msra.mxu0 %v267
    %2799 = vmatmul.f32.gmra.mxu0 %v1777
    %v2800 = vpop.f32.mrf.mxu0
    %v2801 = vadd.f32 %v2761, %v2800
    %2802 = vdwg.mxu0
    %2803 = vmatpush.msra.mxu0 0.0
    %2804 = vmatpush.msra.mxu0 0.0
    %2805 = vmatpush.msra.mxu0 0.0
    %2806 = vmatpush.msra.mxu0 0.0
    %2807 = vmatpush.msra.mxu0 %v290
    %2808 = vmatpush.msra.mxu0 %v288
    %2809 = vmatpush.msra.mxu0 %v286
    %2810 = vmatpush.msra.mxu0 %v284
    %2811 = vmatpush.msra.mxu0 %v282
    %2812 = vmatpush.msra.mxu0 %v280
    %2813 = vmatpush.msra.mxu0 %v278
    %2814 = vmatpush.msra.mxu0 %v276
    %2815 = vmatpush.msra.mxu0 %v274
    %2816 = vmatpush.msra.mxu0 %v272
    %2817 = vmatpush.msra.mxu0 %v270
    %2818 = vmatpush.msra.mxu0 %v268
    %2819 = vmatmul.f32.gmra.mxu0 %v1777
    %v2820 = vpop.f32.mrf.mxu0
    %v2821 = vadd.f32 %v2781, %v2820
    %2822 = vdwg.mxu0
    %v2823 = vld [vmem:[#allocation2 + $0xd] sm:$0x1]
    %v2824 = vld [vmem:[#allocation2 + $0x1d] sm:$0x1]
    %v2827 = vrot.slane %v2824, 7
    %v2828 = vsel %vm321, %v2827, %v2823
    %v2829 = vsel %vm260, %v2828, 0
    %2831 = vmatpush.msra.mxu0 0.0
    %2832 = vmatpush.msra.mxu0 0.0
    %2833 = vmatpush.msra.mxu0 0.0
    %2834 = vmatpush.msra.mxu0 0.0
    %2835 = vmatpush.msra.mxu0 %v436
    %2836 = vmatpush.msra.mxu0 %v434
    %2837 = vmatpush.msra.mxu0 %v432
    %2838 = vmatpush.msra.mxu0 %v430
    %2839 = vmatpush.msra.mxu0 %v428
    %2840 = vmatpush.msra.mxu0 %v426
    %2841 = vmatpush.msra.mxu0 %v424
    %2842 = vmatpush.msra.mxu0 %v422
    %2843 = vmatpush.msra.mxu0 %v420
    %2844 = vmatpush.msra.mxu0 %v418
    %2845 = vmatpush.msra.mxu0 %v416
    %2846 = vmatpush.msra.mxu0 %v414
    %2847 = vmatmul.f32.gmra.mxu0 %v2829
    %v2848 = vpop.f32.mrf.mxu0
    %v2849 = vadd.f32 0.0, %v2848
    %2850 = vdwg.mxu0
    %2851 = vmatpush.msra.mxu0 0.0
    %2852 = vmatpush.msra.mxu0 0.0
    %2853 = vmatpush.msra.mxu0 0.0
    %2854 = vmatpush.msra.mxu0 0.0
    %2855 = vmatpush.msra.mxu0 %v437
    %2856 = vmatpush.msra.mxu0 %v435
    %2857 = vmatpush.msra.mxu0 %v433
    %2858 = vmatpush.msra.mxu0 %v431
    %2859 = vmatpush.msra.mxu0 %v429
    %2860 = vmatpush.msra.mxu0 %v427
    %2861 = vmatpush.msra.mxu0 %v425
    %2862 = vmatpush.msra.mxu0 %v423
    %2863 = vmatpush.msra.mxu0 %v421
    %2864 = vmatpush.msra.mxu0 %v419
    %2865 = vmatpush.msra.mxu0 %v417
    %2866 = vmatpush.msra.mxu0 %v415
    %2867 = vmatmul.f32.gmra.mxu0 %v2829
    %v2868 = vpop.f32.mrf.mxu0
    %v2869 = vadd.f32 0.0, %v2868
    %2870 = vdwg.mxu0
    %v2871 = vadd.f32 %v2801, %v2849
    %v2872 = vadd.f32 %v2821, %v2869
    %v2873 = vadd.f32 %v2871, %v488
    %v2874 = vadd.f32 %v2872, %v489
    %v2875 = vmax.f32 %v2873, 0.0
    %v2876 = vmax.f32 %v2874, 0.0
    %v2877 = vpack.c.bf16 %v2875, %v2875
    %v2878 = vpack.c.bf16 %v2876, %v2876
    %s2879 = scalar_lea.vmem [#allocation6], 864
    %v2880 = vld [vmem:[%s2879] sm:$0xf]
    %v2881 = vld [vmem:[%s2879 + $0x4] sm:$0xf]
    %v2882 = vld [vmem:[%s2879 + $0x8] sm:$0xf]
    %v2883 = vld [vmem:[%s2879 + $0xc] sm:$0xf]
    %v2884 = vld [vmem:[%s2879 + $0x10] sm:$0xf]
    %v2885 = vld [vmem:[%s2879 + $0x14] sm:$0xf]
    %v2886 = vld [vmem:[%s2879 + $0x18] sm:$0xf]
    %v2887 = vld [vmem:[%s2879 + $0x1c] sm:$0xf]
    %v2888 = vld [vmem:[%s2879 + $0x20] sm:$0xf]
    %v2889 = vld [vmem:[%s2879 + $0x24] sm:$0xf]
    %v2890 = vld [vmem:[%s2879 + $0x28] sm:$0xf]
    %v2891 = vld [vmem:[%s2879 + $0x2c] sm:$0xf]
    %v2892 = vld [vmem:[%s2879 + $0x30] sm:$0xf]
    %v2893 = vld [vmem:[%s2879 + $0x34] sm:$0xf]
    %v2894 = vld [vmem:[%s2879 + $0x38] sm:$0xf]
    %v2895 = vld [vmem:[%s2879 + $0x3c] sm:$0xf]
    %v2896 = vld [vmem:[%s2879 + $0x40] sm:$0xf]
    %v2897 = vld [vmem:[%s2879 + $0x44] sm:$0xf]
    %v2898 = vld [vmem:[%s2879 + $0x48] sm:$0xf]
    %v2899 = vld [vmem:[%s2879 + $0x4c] sm:$0xf]
    %v2900 = vld [vmem:[%s2879 + $0x50] sm:$0xf]
    %v2901 = vld [vmem:[%s2879 + $0x54] sm:$0xf]
    %v2902 = vld [vmem:[%s2879 + $0x58] sm:$0xf]
    %v2903 = vld [vmem:[%s2879 + $0x5c] sm:$0xf]
    %v2928 = vunpack.c.l.b16 %v2880
    %v2929 = vunpack.c.l.b16 %v2881
    %v2930 = vunpack.c.l.b16 %v2882
    %v2931 = vunpack.c.l.b16 %v2883
    %v2932 = vunpack.c.l.b16 %v2884
    %v2933 = vunpack.c.l.b16 %v2885
    %v2934 = vunpack.c.l.b16 %v2886
    %v2935 = vunpack.c.l.b16 %v2887
    %v2936 = vunpack.c.l.b16 %v2888
    %v2937 = vunpack.c.l.b16 %v2889
    %v2938 = vunpack.c.l.b16 %v2890
    %v2939 = vunpack.c.l.b16 %v2891
    %v2940 = vunpack.c.l.b16 %v2892
    %v2941 = vunpack.c.l.b16 %v2893
    %v2942 = vunpack.c.l.b16 %v2894
    %v2943 = vunpack.c.l.b16 %v2895
    %v2944 = vunpack.c.l.b16 %v2896
    %v2945 = vunpack.c.l.b16 %v2897
    %v2946 = vunpack.c.l.b16 %v2898
    %v2947 = vunpack.c.l.b16 %v2899
    %v2948 = vunpack.c.l.b16 %v2900
    %v2949 = vunpack.c.l.b16 %v2901
    %v2950 = vunpack.c.l.b16 %v2902
    %v2951 = vunpack.c.l.b16 %v2903
    %v2952 = vpack.c.b16 %v2929, %v2928
    %v2953 = vpack.c.b16 %v2931, %v2930
    %v2954 = vpack.c.b16 %v2933, %v2932
    %v2955 = vpack.c.b16 %v2935, %v2934
    %v2956 = vpack.c.b16 %v2937, %v2936
    %v2957 = vpack.c.b16 %v2939, %v2938
    %v2958 = vpack.c.b16 %v2941, %v2940
    %v2959 = vpack.c.b16 %v2943, %v2942
    %v2960 = vpack.c.b16 %v2945, %v2944
    %v2961 = vpack.c.b16 %v2947, %v2946
    %v2962 = vpack.c.b16 %v2949, %v2948
    %v2963 = vpack.c.b16 %v2951, %v2950
    %v2977 = vsel %vm771, %v2878, 0
    %2979 = vmatpush.bf16.msra.mxu0 %v2959
    %2980 = vmatpush.bf16.msra.mxu0 %v2958
    %2981 = vmatpush.bf16.msra.mxu0 %v2957
    %2982 = vmatpush.bf16.msra.mxu0 %v2956
    %2983 = vmatpush.bf16.msra.mxu0 %v2955
    %2984 = vmatpush.bf16.msra.mxu0 %v2954
    %2985 = vmatpush.bf16.msra.mxu0 %v2953
    %2986 = vmatpush.bf16.msra.mxu0 %v2952
    %2987 = vmatmul.bf16.gmra.mxu0 %v2877
    %v2988 = vpop.f32.mrf.mxu0
    %v2989 = vadd.f32 0.0, %v2988
    %v2990 = vpop.f32.mrf.mxu0
    %2991 = vdwg.mxu0
    %2992 = vmatpush.bf16.msra.mxu0 0
    %2993 = vmatpush.bf16.msra.mxu0 0
    %2994 = vmatpush.bf16.msra.mxu0 0
    %2995 = vmatpush.bf16.msra.mxu0 0
    %2996 = vmatpush.bf16.msra.mxu0 %v2963
    %2997 = vmatpush.bf16.msra.mxu0 %v2962
    %2998 = vmatpush.bf16.msra.mxu0 %v2961
    %2999 = vmatpush.bf16.msra.mxu0 %v2960
    %3000 = vmatmul.bf16.gmra.mxu0 %v2977
    %v3001 = vpop.f32.mrf.mxu0
    %v3002 = vadd.f32 %v2989, %v3001
    %v3003 = vpop.f32.mrf.mxu0
    %3004 = vdwg.mxu0
    %v3005 = vadd.f32 %v2742, %v3002
    %3006 = vmatpush.msra.mxu0 0.0
    %3007 = vmatpush.msra.mxu0 0.0
    %3008 = vmatpush.msra.mxu0 0.0
    %3009 = vmatpush.msra.mxu0 0.0
    %3010 = vmatpush.msra.mxu0 %v316
    %3011 = vmatpush.msra.mxu0 %v314
    %3012 = vmatpush.msra.mxu0 %v312
    %3013 = vmatpush.msra.mxu0 %v310
    %3014 = vmatpush.msra.mxu0 %v308
    %3015 = vmatpush.msra.mxu0 %v306
    %3016 = vmatpush.msra.mxu0 %v304
    %3017 = vmatpush.msra.mxu0 %v302
    %3018 = vmatpush.msra.mxu0 %v300
    %3019 = vmatpush.msra.mxu0 %v298
    %3020 = vmatpush.msra.mxu0 %v296
    %3021 = vmatpush.msra.mxu0 %v294
    %3022 = vmatmul.f32.gmra.mxu0 %v2566
    %v3023 = vpop.f32.mrf.mxu0
    %v3024 = vadd.f32 0.0, %v3023
    %3025 = vdwg.mxu0
    %3026 = vmatpush.msra.mxu0 0.0
    %3027 = vmatpush.msra.mxu0 0.0
    %3028 = vmatpush.msra.mxu0 0.0
    %3029 = vmatpush.msra.mxu0 0.0
    %3030 = vmatpush.msra.mxu0 %v317
    %3031 = vmatpush.msra.mxu0 %v315
    %3032 = vmatpush.msra.mxu0 %v313
    %3033 = vmatpush.msra.mxu0 %v311
    %3034 = vmatpush.msra.mxu0 %v309
    %3035 = vmatpush.msra.mxu0 %v307
    %3036 = vmatpush.msra.mxu0 %v305
    %3037 = vmatpush.msra.mxu0 %v303
    %3038 = vmatpush.msra.mxu0 %v301
    %3039 = vmatpush.msra.mxu0 %v299
    %3040 = vmatpush.msra.mxu0 %v297
    %3041 = vmatpush.msra.mxu0 %v295
    %3042 = vmatmul.f32.gmra.mxu0 %v2566
    %v3043 = vpop.f32.mrf.mxu0
    %v3044 = vadd.f32 0.0, %v3043
    %3045 = vdwg.mxu0
    %3046 = vmatpush.msra.mxu0 0.0
    %3047 = vmatpush.msra.mxu0 0.0
    %3048 = vmatpush.msra.mxu0 0.0
    %3049 = vmatpush.msra.mxu0 0.0
    %3050 = vmatpush.msra.mxu0 %v289
    %3051 = vmatpush.msra.mxu0 %v287
    %3052 = vmatpush.msra.mxu0 %v285
    %3053 = vmatpush.msra.mxu0 %v283
    %3054 = vmatpush.msra.mxu0 %v281
    %3055 = vmatpush.msra.mxu0 %v279
    %3056 = vmatpush.msra.mxu0 %v277
    %3057 = vmatpush.msra.mxu0 %v275
    %3058 = vmatpush.msra.mxu0 %v273
    %3059 = vmatpush.msra.mxu0 %v271
    %3060 = vmatpush.msra.mxu0 %v269
    %3061 = vmatpush.msra.mxu0 %v267
    %3062 = vmatmul.f32.gmra.mxu0 %v2040
    %v3063 = vpop.f32.mrf.mxu0
    %v3064 = vadd.f32 %v3024, %v3063
    %3065 = vdwg.mxu0
    %3066 = vmatpush.msra.mxu0 0.0
    %3067 = vmatpush.msra.mxu0 0.0
    %3068 = vmatpush.msra.mxu0 0.0
    %3069 = vmatpush.msra.mxu0 0.0
    %3070 = vmatpush.msra.mxu0 %v290
    %3071 = vmatpush.msra.mxu0 %v288
    %3072 = vmatpush.msra.mxu0 %v286
    %3073 = vmatpush.msra.mxu0 %v284
    %3074 = vmatpush.msra.mxu0 %v282
    %3075 = vmatpush.msra.mxu0 %v280
    %3076 = vmatpush.msra.mxu0 %v278
    %3077 = vmatpush.msra.mxu0 %v276
    %3078 = vmatpush.msra.mxu0 %v274
    %3079 = vmatpush.msra.mxu0 %v272
    %3080 = vmatpush.msra.mxu0 %v270
    %3081 = vmatpush.msra.mxu0 %v268
    %3082 = vmatmul.f32.gmra.mxu0 %v2040
    %v3083 = vpop.f32.mrf.mxu0
    %v3084 = vadd.f32 %v3044, %v3083
    %3085 = vdwg.mxu0
    %v3086 = vld [vmem:[#allocation2 + $0xe] sm:$0x1]
    %v3087 = vld [vmem:[#allocation2 + $0x1e] sm:$0x1]
    %v3090 = vrot.slane %v3087, 7
    %v3091 = vsel %vm321, %v3090, %v3086
    %v3092 = vsel %vm260, %v3091, 0
    %3094 = vmatpush.msra.mxu0 0.0
    %3095 = vmatpush.msra.mxu0 0.0
    %3096 = vmatpush.msra.mxu0 0.0
    %3097 = vmatpush.msra.mxu0 0.0
    %3098 = vmatpush.msra.mxu0 %v436
    %3099 = vmatpush.msra.mxu0 %v434
    %3100 = vmatpush.msra.mxu0 %v432
    %3101 = vmatpush.msra.mxu0 %v430
    %3102 = vmatpush.msra.mxu0 %v428
    %3103 = vmatpush.msra.mxu0 %v426
    %3104 = vmatpush.msra.mxu0 %v424
    %3105 = vmatpush.msra.mxu0 %v422
    %3106 = vmatpush.msra.mxu0 %v420
    %3107 = vmatpush.msra.mxu0 %v418
    %3108 = vmatpush.msra.mxu0 %v416
    %3109 = vmatpush.msra.mxu0 %v414
    %3110 = vmatmul.f32.gmra.mxu0 %v3092
    %v3111 = vpop.f32.mrf.mxu0
    %v3112 = vadd.f32 0.0, %v3111
    %3113 = vdwg.mxu0
    %3114 = vmatpush.msra.mxu0 0.0
    %3115 = vmatpush.msra.mxu0 0.0
    %3116 = vmatpush.msra.mxu0 0.0
    %3117 = vmatpush.msra.mxu0 0.0
    %3118 = vmatpush.msra.mxu0 %v437
    %3119 = vmatpush.msra.mxu0 %v435
    %3120 = vmatpush.msra.mxu0 %v433
    %3121 = vmatpush.msra.mxu0 %v431
    %3122 = vmatpush.msra.mxu0 %v429
    %3123 = vmatpush.msra.mxu0 %v427
    %3124 = vmatpush.msra.mxu0 %v425
    %3125 = vmatpush.msra.mxu0 %v423
    %3126 = vmatpush.msra.mxu0 %v421
    %3127 = vmatpush.msra.mxu0 %v419
    %3128 = vmatpush.msra.mxu0 %v417
    %3129 = vmatpush.msra.mxu0 %v415
    %3130 = vmatmul.f32.gmra.mxu0 %v3092
    %v3131 = vpop.f32.mrf.mxu0
    %v3132 = vadd.f32 0.0, %v3131
    %3133 = vdwg.mxu0
    %v3134 = vadd.f32 %v3064, %v3112
    %v3135 = vadd.f32 %v3084, %v3132
    %v3136 = vadd.f32 %v3134, %v488
    %v3137 = vadd.f32 %v3135, %v489
    %v3138 = vmax.f32 %v3136, 0.0
    %v3139 = vmax.f32 %v3137, 0.0
    %v3140 = vpack.c.bf16 %v3138, %v3138
    %v3141 = vpack.c.bf16 %v3139, %v3139
    %s3142 = scalar_lea.vmem [#allocation6], 960
    %v3143 = vld [vmem:[%s3142] sm:$0xf]
    %v3144 = vld [vmem:[%s3142 + $0x4] sm:$0xf]
    %v3145 = vld [vmem:[%s3142 + $0x8] sm:$0xf]
    %v3146 = vld [vmem:[%s3142 + $0xc] sm:$0xf]
    %v3147 = vld [vmem:[%s3142 + $0x10] sm:$0xf]
    %v3148 = vld [vmem:[%s3142 + $0x14] sm:$0xf]
    %v3149 = vld [vmem:[%s3142 + $0x18] sm:$0xf]
    %v3150 = vld [vmem:[%s3142 + $0x1c] sm:$0xf]
    %v3151 = vld [vmem:[%s3142 + $0x20] sm:$0xf]
    %v3152 = vld [vmem:[%s3142 + $0x24] sm:$0xf]
    %v3153 = vld [vmem:[%s3142 + $0x28] sm:$0xf]
    %v3154 = vld [vmem:[%s3142 + $0x2c] sm:$0xf]
    %v3155 = vld [vmem:[%s3142 + $0x30] sm:$0xf]
    %v3156 = vld [vmem:[%s3142 + $0x34] sm:$0xf]
    %v3157 = vld [vmem:[%s3142 + $0x38] sm:$0xf]
    %v3158 = vld [vmem:[%s3142 + $0x3c] sm:$0xf]
    %v3159 = vld [vmem:[%s3142 + $0x40] sm:$0xf]
    %v3160 = vld [vmem:[%s3142 + $0x44] sm:$0xf]
    %v3161 = vld [vmem:[%s3142 + $0x48] sm:$0xf]
    %v3162 = vld [vmem:[%s3142 + $0x4c] sm:$0xf]
    %v3163 = vld [vmem:[%s3142 + $0x50] sm:$0xf]
    %v3164 = vld [vmem:[%s3142 + $0x54] sm:$0xf]
    %v3165 = vld [vmem:[%s3142 + $0x58] sm:$0xf]
    %v3166 = vld [vmem:[%s3142 + $0x5c] sm:$0xf]
    %v3191 = vunpack.c.l.b16 %v3143
    %v3192 = vunpack.c.l.b16 %v3144
    %v3193 = vunpack.c.l.b16 %v3145
    %v3194 = vunpack.c.l.b16 %v3146
    %v3195 = vunpack.c.l.b16 %v3147
    %v3196 = vunpack.c.l.b16 %v3148
    %v3197 = vunpack.c.l.b16 %v3149
    %v3198 = vunpack.c.l.b16 %v3150
    %v3199 = vunpack.c.l.b16 %v3151
    %v3200 = vunpack.c.l.b16 %v3152
    %v3201 = vunpack.c.l.b16 %v3153
    %v3202 = vunpack.c.l.b16 %v3154
    %v3203 = vunpack.c.l.b16 %v3155
    %v3204 = vunpack.c.l.b16 %v3156
    %v3205 = vunpack.c.l.b16 %v3157
    %v3206 = vunpack.c.l.b16 %v3158
    %v3207 = vunpack.c.l.b16 %v3159
    %v3208 = vunpack.c.l.b16 %v3160
    %v3209 = vunpack.c.l.b16 %v3161
    %v3210 = vunpack.c.l.b16 %v3162
    %v3211 = vunpack.c.l.b16 %v3163
    %v3212 = vunpack.c.l.b16 %v3164
    %v3213 = vunpack.c.l.b16 %v3165
    %v3214 = vunpack.c.l.b16 %v3166
    %v3215 = vpack.c.b16 %v3192, %v3191
    %v3216 = vpack.c.b16 %v3194, %v3193
    %v3217 = vpack.c.b16 %v3196, %v3195
    %v3218 = vpack.c.b16 %v3198, %v3197
    %v3219 = vpack.c.b16 %v3200, %v3199
    %v3220 = vpack.c.b16 %v3202, %v3201
    %v3221 = vpack.c.b16 %v3204, %v3203
    %v3222 = vpack.c.b16 %v3206, %v3205
    %v3223 = vpack.c.b16 %v3208, %v3207
    %v3224 = vpack.c.b16 %v3210, %v3209
    %v3225 = vpack.c.b16 %v3212, %v3211
    %v3226 = vpack.c.b16 %v3214, %v3213
    %v3240 = vsel %vm771, %v3141, 0
    %3242 = vmatpush.bf16.msra.mxu0 %v3222
    %3243 = vmatpush.bf16.msra.mxu0 %v3221
    %3244 = vmatpush.bf16.msra.mxu0 %v3220
    %3245 = vmatpush.bf16.msra.mxu0 %v3219
    %3246 = vmatpush.bf16.msra.mxu0 %v3218
    %3247 = vmatpush.bf16.msra.mxu0 %v3217
    %3248 = vmatpush.bf16.msra.mxu0 %v3216
    %3249 = vmatpush.bf16.msra.mxu0 %v3215
    %3250 = vmatmul.bf16.gmra.mxu0 %v3140
    %v3251 = vpop.f32.mrf.mxu0
    %v3252 = vadd.f32 0.0, %v3251
    %v3253 = vpop.f32.mrf.mxu0
    %3254 = vdwg.mxu0
    %3255 = vmatpush.bf16.msra.mxu0 0
    %3256 = vmatpush.bf16.msra.mxu0 0
    %3257 = vmatpush.bf16.msra.mxu0 0
    %3258 = vmatpush.bf16.msra.mxu0 0
    %3259 = vmatpush.bf16.msra.mxu0 %v3226
    %3260 = vmatpush.bf16.msra.mxu0 %v3225
    %3261 = vmatpush.bf16.msra.mxu0 %v3224
    %3262 = vmatpush.bf16.msra.mxu0 %v3223
    %3263 = vmatmul.bf16.gmra.mxu0 %v3240
    %v3264 = vpop.f32.mrf.mxu0
    %v3265 = vadd.f32 %v3252, %v3264
    %v3266 = vpop.f32.mrf.mxu0
    %3267 = vdwg.mxu0
    %v3268 = vadd.f32 %v3005, %v3265
    %3269 = vmatpush.msra.mxu0 0.0
    %3270 = vmatpush.msra.mxu0 0.0
    %3271 = vmatpush.msra.mxu0 0.0
    %3272 = vmatpush.msra.mxu0 0.0
    %3273 = vmatpush.msra.mxu0 %v316
    %3274 = vmatpush.msra.mxu0 %v314
    %3275 = vmatpush.msra.mxu0 %v312
    %3276 = vmatpush.msra.mxu0 %v310
    %3277 = vmatpush.msra.mxu0 %v308
    %3278 = vmatpush.msra.mxu0 %v306
    %3279 = vmatpush.msra.mxu0 %v304
    %3280 = vmatpush.msra.mxu0 %v302
    %3281 = vmatpush.msra.mxu0 %v300
    %3282 = vmatpush.msra.mxu0 %v298
    %3283 = vmatpush.msra.mxu0 %v296
    %3284 = vmatpush.msra.mxu0 %v294
    %3285 = vmatmul.f32.gmra.mxu0 %v2829
    %v3286 = vpop.f32.mrf.mxu0
    %v3287 = vadd.f32 0.0, %v3286
    %3288 = vdwg.mxu0
    %3289 = vmatpush.msra.mxu0 0.0
    %3290 = vmatpush.msra.mxu0 0.0
    %3291 = vmatpush.msra.mxu0 0.0
    %3292 = vmatpush.msra.mxu0 0.0
    %3293 = vmatpush.msra.mxu0 %v317
    %3294 = vmatpush.msra.mxu0 %v315
    %3295 = vmatpush.msra.mxu0 %v313
    %3296 = vmatpush.msra.mxu0 %v311
    %3297 = vmatpush.msra.mxu0 %v309
    %3298 = vmatpush.msra.mxu0 %v307
    %3299 = vmatpush.msra.mxu0 %v305
    %3300 = vmatpush.msra.mxu0 %v303
    %3301 = vmatpush.msra.mxu0 %v301
    %3302 = vmatpush.msra.mxu0 %v299
    %3303 = vmatpush.msra.mxu0 %v297
    %3304 = vmatpush.msra.mxu0 %v295
    %3305 = vmatmul.f32.gmra.mxu0 %v2829
    %v3306 = vpop.f32.mrf.mxu0
    %v3307 = vadd.f32 0.0, %v3306
    %3308 = vdwg.mxu0
    %3309 = vmatpush.msra.mxu0 0.0
    %3310 = vmatpush.msra.mxu0 0.0
    %3311 = vmatpush.msra.mxu0 0.0
    %3312 = vmatpush.msra.mxu0 0.0
    %3313 = vmatpush.msra.mxu0 %v289
    %3314 = vmatpush.msra.mxu0 %v287
    %3315 = vmatpush.msra.mxu0 %v285
    %3316 = vmatpush.msra.mxu0 %v283
    %3317 = vmatpush.msra.mxu0 %v281
    %3318 = vmatpush.msra.mxu0 %v279
    %3319 = vmatpush.msra.mxu0 %v277
    %3320 = vmatpush.msra.mxu0 %v275
    %3321 = vmatpush.msra.mxu0 %v273
    %3322 = vmatpush.msra.mxu0 %v271
    %3323 = vmatpush.msra.mxu0 %v269
    %3324 = vmatpush.msra.mxu0 %v267
    %3325 = vmatmul.f32.gmra.mxu0 %v2303
    %v3326 = vpop.f32.mrf.mxu0
    %v3327 = vadd.f32 %v3287, %v3326
    %3328 = vdwg.mxu0
    %3329 = vmatpush.msra.mxu0 0.0
    %3330 = vmatpush.msra.mxu0 0.0
    %3331 = vmatpush.msra.mxu0 0.0
    %3332 = vmatpush.msra.mxu0 0.0
    %3333 = vmatpush.msra.mxu0 %v290
    %3334 = vmatpush.msra.mxu0 %v288
    %3335 = vmatpush.msra.mxu0 %v286
    %3336 = vmatpush.msra.mxu0 %v284
    %3337 = vmatpush.msra.mxu0 %v282
    %3338 = vmatpush.msra.mxu0 %v280
    %3339 = vmatpush.msra.mxu0 %v278
    %3340 = vmatpush.msra.mxu0 %v276
    %3341 = vmatpush.msra.mxu0 %v274
    %3342 = vmatpush.msra.mxu0 %v272
    %3343 = vmatpush.msra.mxu0 %v270
    %3344 = vmatpush.msra.mxu0 %v268
    %3345 = vmatmul.f32.gmra.mxu0 %v2303
    %v3346 = vpop.f32.mrf.mxu0
    %v3347 = vadd.f32 %v3307, %v3346
    %3348 = vdwg.mxu0
    %v3349 = vld [vmem:[#allocation2 + $0xf] sm:$0x1]
    %v3350 = vld [vmem:[#allocation2 + $0x1f] sm:$0x1]
    %v3353 = vrot.slane %v3350, 7
    %v3354 = vsel %vm321, %v3353, %v3349
    %v3355 = vsel %vm260, %v3354, 0
    %3357 = vmatpush.msra.mxu0 0.0
    %3358 = vmatpush.msra.mxu0 0.0
    %3359 = vmatpush.msra.mxu0 0.0
    %3360 = vmatpush.msra.mxu0 0.0
    %3361 = vmatpush.msra.mxu0 %v436
    %3362 = vmatpush.msra.mxu0 %v434
    %3363 = vmatpush.msra.mxu0 %v432
    %3364 = vmatpush.msra.mxu0 %v430
    %3365 = vmatpush.msra.mxu0 %v428
    %3366 = vmatpush.msra.mxu0 %v426
    %3367 = vmatpush.msra.mxu0 %v424
    %3368 = vmatpush.msra.mxu0 %v422
    %3369 = vmatpush.msra.mxu0 %v420
    %3370 = vmatpush.msra.mxu0 %v418
    %3371 = vmatpush.msra.mxu0 %v416
    %3372 = vmatpush.msra.mxu0 %v414
    %3373 = vmatmul.f32.gmra.mxu0 %v3355
    %v3374 = vpop.f32.mrf.mxu0
    %v3375 = vadd.f32 0.0, %v3374
    %3376 = vdwg.mxu0
    %3377 = vmatpush.msra.mxu0 0.0
    %3378 = vmatpush.msra.mxu0 0.0
    %3379 = vmatpush.msra.mxu0 0.0
    %3380 = vmatpush.msra.mxu0 0.0
    %3381 = vmatpush.msra.mxu0 %v437
    %3382 = vmatpush.msra.mxu0 %v435
    %3383 = vmatpush.msra.mxu0 %v433
    %3384 = vmatpush.msra.mxu0 %v431
    %3385 = vmatpush.msra.mxu0 %v429
    %3386 = vmatpush.msra.mxu0 %v427
    %3387 = vmatpush.msra.mxu0 %v425
    %3388 = vmatpush.msra.mxu0 %v423
    %3389 = vmatpush.msra.mxu0 %v421
    %3390 = vmatpush.msra.mxu0 %v419
    %3391 = vmatpush.msra.mxu0 %v417
    %3392 = vmatpush.msra.mxu0 %v415
    %3393 = vmatmul.f32.gmra.mxu0 %v3355
    %v3394 = vpop.f32.mrf.mxu0
    %v3395 = vadd.f32 0.0, %v3394
    %3396 = vdwg.mxu0
    %v3397 = vadd.f32 %v3327, %v3375
    %v3398 = vadd.f32 %v3347, %v3395
    %v3399 = vadd.f32 %v3397, %v488
    %v3400 = vadd.f32 %v3398, %v489
    %v3401 = vmax.f32 %v3399, 0.0
    %v3402 = vmax.f32 %v3400, 0.0
    %v3403 = vpack.c.bf16 %v3401, %v3401
    %v3404 = vpack.c.bf16 %v3402, %v3402
    %s3405 = scalar_lea.vmem [#allocation6], 1056
    %v3406 = vld [vmem:[%s3405] sm:$0xf]
    %v3407 = vld [vmem:[%s3405 + $0x4] sm:$0xf]
    %v3408 = vld [vmem:[%s3405 + $0x8] sm:$0xf]
    %v3409 = vld [vmem:[%s3405 + $0xc] sm:$0xf]
    %v3410 = vld [vmem:[%s3405 + $0x10] sm:$0xf]
    %v3411 = vld [vmem:[%s3405 + $0x14] sm:$0xf]
    %v3412 = vld [vmem:[%s3405 + $0x18] sm:$0xf]
    %v3413 = vld [vmem:[%s3405 + $0x1c] sm:$0xf]
    %v3414 = vld [vmem:[%s3405 + $0x20] sm:$0xf]
    %v3415 = vld [vmem:[%s3405 + $0x24] sm:$0xf]
    %v3416 = vld [vmem:[%s3405 + $0x28] sm:$0xf]
    %v3417 = vld [vmem:[%s3405 + $0x2c] sm:$0xf]
    %v3418 = vld [vmem:[%s3405 + $0x30] sm:$0xf]
    %v3419 = vld [vmem:[%s3405 + $0x34] sm:$0xf]
    %v3420 = vld [vmem:[%s3405 + $0x38] sm:$0xf]
    %v3421 = vld [vmem:[%s3405 + $0x3c] sm:$0xf]
    %v3422 = vld [vmem:[%s3405 + $0x40] sm:$0xf]
    %v3423 = vld [vmem:[%s3405 + $0x44] sm:$0xf]
    %v3424 = vld [vmem:[%s3405 + $0x48] sm:$0xf]
    %v3425 = vld [vmem:[%s3405 + $0x4c] sm:$0xf]
    %v3426 = vld [vmem:[%s3405 + $0x50] sm:$0xf]
    %v3427 = vld [vmem:[%s3405 + $0x54] sm:$0xf]
    %v3428 = vld [vmem:[%s3405 + $0x58] sm:$0xf]
    %v3429 = vld [vmem:[%s3405 + $0x5c] sm:$0xf]
    %v3454 = vunpack.c.l.b16 %v3406
    %v3455 = vunpack.c.l.b16 %v3407
    %v3456 = vunpack.c.l.b16 %v3408
    %v3457 = vunpack.c.l.b16 %v3409
    %v3458 = vunpack.c.l.b16 %v3410
    %v3459 = vunpack.c.l.b16 %v3411
    %v3460 = vunpack.c.l.b16 %v3412
    %v3461 = vunpack.c.l.b16 %v3413
    %v3462 = vunpack.c.l.b16 %v3414
    %v3463 = vunpack.c.l.b16 %v3415
    %v3464 = vunpack.c.l.b16 %v3416
    %v3465 = vunpack.c.l.b16 %v3417
    %v3466 = vunpack.c.l.b16 %v3418
    %v3467 = vunpack.c.l.b16 %v3419
    %v3468 = vunpack.c.l.b16 %v3420
    %v3469 = vunpack.c.l.b16 %v3421
    %v3470 = vunpack.c.l.b16 %v3422
    %v3471 = vunpack.c.l.b16 %v3423
    %v3472 = vunpack.c.l.b16 %v3424
    %v3473 = vunpack.c.l.b16 %v3425
    %v3474 = vunpack.c.l.b16 %v3426
    %v3475 = vunpack.c.l.b16 %v3427
    %v3476 = vunpack.c.l.b16 %v3428
    %v3477 = vunpack.c.l.b16 %v3429
    %v3478 = vpack.c.b16 %v3455, %v3454
    %v3479 = vpack.c.b16 %v3457, %v3456
    %v3480 = vpack.c.b16 %v3459, %v3458
    %v3481 = vpack.c.b16 %v3461, %v3460
    %v3482 = vpack.c.b16 %v3463, %v3462
    %v3483 = vpack.c.b16 %v3465, %v3464
    %v3484 = vpack.c.b16 %v3467, %v3466
    %v3485 = vpack.c.b16 %v3469, %v3468
    %v3486 = vpack.c.b16 %v3471, %v3470
    %v3487 = vpack.c.b16 %v3473, %v3472
    %v3488 = vpack.c.b16 %v3475, %v3474
    %v3489 = vpack.c.b16 %v3477, %v3476
    %v3503 = vsel %vm771, %v3404, 0
    %3505 = vmatpush.bf16.msra.mxu0 %v3485
    %3506 = vmatpush.bf16.msra.mxu0 %v3484
    %3507 = vmatpush.bf16.msra.mxu0 %v3483
    %3508 = vmatpush.bf16.msra.mxu0 %v3482
    %3509 = vmatpush.bf16.msra.mxu0 %v3481
    %3510 = vmatpush.bf16.msra.mxu0 %v3480
    %3511 = vmatpush.bf16.msra.mxu0 %v3479
    %3512 = vmatpush.bf16.msra.mxu0 %v3478
    %3513 = vmatmul.bf16.gmra.mxu0 %v3403
    %v3514 = vpop.f32.mrf.mxu0
    %v3515 = vadd.f32 0.0, %v3514
    %v3516 = vpop.f32.mrf.mxu0
    %3517 = vdwg.mxu0
    %3518 = vmatpush.bf16.msra.mxu0 0
    %3519 = vmatpush.bf16.msra.mxu0 0
    %3520 = vmatpush.bf16.msra.mxu0 0
    %3521 = vmatpush.bf16.msra.mxu0 0
    %3522 = vmatpush.bf16.msra.mxu0 %v3489
    %3523 = vmatpush.bf16.msra.mxu0 %v3488
    %3524 = vmatpush.bf16.msra.mxu0 %v3487
    %3525 = vmatpush.bf16.msra.mxu0 %v3486
    %3526 = vmatmul.bf16.gmra.mxu0 %v3503
    %v3527 = vpop.f32.mrf.mxu0
    %v3528 = vadd.f32 %v3515, %v3527
    %v3529 = vpop.f32.mrf.mxu0
    %3530 = vdwg.mxu0
    %v3531 = vadd.f32 %v3268, %v3528
    %v3532 = vld [vmem:[%s6] sm:$0x1]
    %v3534 = vperm.slane %v3532, 0
    %v3536 = vadd.f32 %v3531, %v3534
    %v3537 = vmax.f32 %v3536, 0.0
    %v3538 = vpack.c.bf16 %v3537, %v3537
    %v3539 = vld [vmem:[%s7] sm:$0xf]
    %v3540 = vld [vmem:[%s7 + $0x4] sm:$0xf]
    %v3541 = vld [vmem:[%s7 + $0x8] sm:$0xf]
    %v3542 = vld [vmem:[%s7 + $0xc] sm:$0xf]
    %v3543 = vld [vmem:[%s7 + $0x10] sm:$0xf]
    %v3544 = vld [vmem:[%s7 + $0x14] sm:$0xf]
    %v3545 = vld [vmem:[%s7 + $0x18] sm:$0xf]
    %v3546 = vld [vmem:[%s7 + $0x1c] sm:$0xf]
    %v3547 = vld [vmem:[%s7 + $0x20] sm:$0xf]
    %v3548 = vld [vmem:[%s7 + $0x24] sm:$0xf]
    %v3549 = vld [vmem:[%s7 + $0x28] sm:$0xf]
    %v3550 = vld [vmem:[%s7 + $0x2c] sm:$0xf]
    %v3551 = vld [vmem:[%s7 + $0x30] sm:$0xf]
    %v3552 = vld [vmem:[%s7 + $0x34] sm:$0xf]
    %v3553 = vld [vmem:[%s7 + $0x38] sm:$0xf]
    %v3554 = vld [vmem:[%s7 + $0x3c] sm:$0xf]
    %v3555 = vld [vmem:[%s8] sm:$0x1]
    %v3557 = vperm.slane %v3555, 0
    %v3575 = vunpack.c.l.b16 %v3539
    %v3576 = vunpack.c.l.b16 %v3540
    %v3577 = vunpack.c.l.b16 %v3541
    %v3578 = vunpack.c.l.b16 %v3542
    %v3579 = vunpack.c.l.b16 %v3543
    %v3580 = vunpack.c.l.b16 %v3544
    %v3581 = vunpack.c.l.b16 %v3545
    %v3582 = vunpack.c.l.b16 %v3546
    %v3583 = vunpack.c.l.b16 %v3547
    %v3584 = vunpack.c.l.b16 %v3548
    %v3585 = vunpack.c.l.b16 %v3549
    %v3586 = vunpack.c.l.b16 %v3550
    %v3587 = vunpack.c.l.b16 %v3551
    %v3588 = vunpack.c.l.b16 %v3552
    %v3589 = vunpack.c.l.b16 %v3553
    %v3590 = vunpack.c.l.b16 %v3554
    %v3591 = vpack.c.b16 %v3576, %v3575
    %v3592 = vpack.c.b16 %v3578, %v3577
    %v3593 = vpack.c.b16 %v3580, %v3579
    %v3594 = vpack.c.b16 %v3582, %v3581
    %v3595 = vpack.c.b16 %v3584, %v3583
    %v3596 = vpack.c.b16 %v3586, %v3585
    %v3597 = vpack.c.b16 %v3588, %v3587
    %v3598 = vpack.c.b16 %v3590, %v3589
    %3607 = vmatpush.bf16.msra.mxu0 %v3598
    %3608 = vmatpush.bf16.msra.mxu0 %v3597
    %3609 = vmatpush.bf16.msra.mxu0 %v3596
    %3610 = vmatpush.bf16.msra.mxu0 %v3595
    %3611 = vmatpush.bf16.msra.mxu0 %v3594
    %3612 = vmatpush.bf16.msra.mxu0 %v3593
    %3613 = vmatpush.bf16.msra.mxu0 %v3592
    %3614 = vmatpush.bf16.msra.mxu0 %v3591
    %3615 = vmatmul.bf16.gmra.mxu0 %v3538
    %v3616 = vpop.f32.mrf.mxu0
    %v3617 = vadd.f32 %v3557, %v3616
    %v3618 = vpop.f32.mrf.mxu0
    %3619 = vdwg.mxu0
    %v3620 = vmax.f32 %v3617, 0.0
    %v3621 = vpack.c.bf16 %v3620, %v3620
    %v3622 = vld [vmem:[%s9] sm:$0xf]
    %v3623 = vld [vmem:[%s9 + $0x4] sm:$0xf]
    %v3624 = vld [vmem:[%s9 + $0x8] sm:$0xf]
    %v3625 = vld [vmem:[%s9 + $0xc] sm:$0xf]
    %v3626 = vld [vmem:[%s9 + $0x10] sm:$0xf]
    %v3627 = vld [vmem:[%s9 + $0x14] sm:$0xf]
    %v3628 = vld [vmem:[%s9 + $0x18] sm:$0xf]
    %v3629 = vld [vmem:[%s9 + $0x1c] sm:$0xf]
    %v3630 = vld [vmem:[%s9 + $0x20] sm:$0xf]
    %v3631 = vld [vmem:[%s9 + $0x24] sm:$0xf]
    %v3632 = vld [vmem:[%s9 + $0x28] sm:$0xf]
    %v3633 = vld [vmem:[%s9 + $0x2c] sm:$0xf]
    %v3634 = vld [vmem:[%s9 + $0x30] sm:$0xf]
    %v3635 = vld [vmem:[%s9 + $0x34] sm:$0xf]
    %v3636 = vld [vmem:[%s9 + $0x38] sm:$0xf]
    %v3637 = vld [vmem:[%s9 + $0x3c] sm:$0xf]
    %v3638 = vld [vmem:[%s10] sm:$0x1]
    %v3640 = vperm.slane %v3638, 0
    %v3658 = vunpack.c.l.b16 %v3622
    %v3659 = vunpack.c.l.b16 %v3623
    %v3660 = vunpack.c.l.b16 %v3624
    %v3661 = vunpack.c.l.b16 %v3625
    %v3662 = vunpack.c.l.b16 %v3626
    %v3663 = vunpack.c.l.b16 %v3627
    %v3664 = vunpack.c.l.b16 %v3628
    %v3665 = vunpack.c.l.b16 %v3629
    %v3666 = vunpack.c.l.b16 %v3630
    %v3667 = vunpack.c.l.b16 %v3631
    %v3668 = vunpack.c.l.b16 %v3632
    %v3669 = vunpack.c.l.b16 %v3633
    %v3670 = vunpack.c.l.b16 %v3634
    %v3671 = vunpack.c.l.b16 %v3635
    %v3672 = vunpack.c.l.b16 %v3636
    %v3673 = vunpack.c.l.b16 %v3637
    %v3674 = vpack.c.b16 %v3659, %v3658
    %v3675 = vpack.c.b16 %v3661, %v3660
    %v3676 = vpack.c.b16 %v3663, %v3662
    %v3677 = vpack.c.b16 %v3665, %v3664
    %v3678 = vpack.c.b16 %v3667, %v3666
    %v3679 = vpack.c.b16 %v3669, %v3668
    %v3680 = vpack.c.b16 %v3671, %v3670
    %v3681 = vpack.c.b16 %v3673, %v3672
    %3690 = vmatpush.bf16.msra.mxu0 %v3681
    %3691 = vmatpush.bf16.msra.mxu0 %v3680
    %3692 = vmatpush.bf16.msra.mxu0 %v3679
    %3693 = vmatpush.bf16.msra.mxu0 %v3678
    %3694 = vmatpush.bf16.msra.mxu0 %v3677
    %3695 = vmatpush.bf16.msra.mxu0 %v3676
    %3696 = vmatpush.bf16.msra.mxu0 %v3675
    %3697 = vmatpush.bf16.msra.mxu0 %v3674
    %3698 = vmatmul.bf16.gmra.mxu0 %v3621
    %v3699 = vpop.f32.mrf.mxu0
    %v3700 = vadd.f32 %v3640, %v3699
    %v3701 = vpop.f32.mrf.mxu0
    %3702 = vdwg.mxu0
    %3703 = vst [vmem:[#allocation8] sm:$0x3] %v3700
    // Predicated region
    $region54: #{dilated_cnn_forward.1} parent=1 // pred_check
      _
    $region55: #{dilated_cnn_forward.1} parent=1 // pred_check_branch
      %3705 = sbr.rel (0) target = $region57
    $region56: #{dilated_cnn_forward.1} parent=1 // pred_region
      %3707 = vsyncadd [#allocation5], 0
      %s3709 = sshll.u32 [#allocation8], 4
      %s3710 = int_to_ptr.vmem [resolvable:$true] %s3709
      %s3711 = sshll.u32 %s11, 4
      %s3712 = int_to_ptr.hbm [resolvable:$true] %s3711
      %3714 = dma.vmem_to_hbm [thread:$0]  %s3710, 32, %s3712, [#allocation5]
    $region57: #{dilated_cnn_forward.1} parent=1 // pred_fallthru
      _
    // Predicated region
    $region58: #{dilated_cnn_forward.1} parent=1 // pred_check
      _
    $region59: #{dilated_cnn_forward.1} parent=1 // pred_check_branch
      %3716 = sbr.rel (0) target = $region61
    $region60: #{dilated_cnn_forward.1} parent=1 // pred_region
      %3718 = dma.done [#allocation5], 32
    $region61: #{dilated_cnn_forward.1} parent=1 // pred_fallthru
      _
    %3719 = vsyncpa [#allocation4], 1
    %3720 = vsyncpa [#allocation7], 1
    %3721 = vsyncpa [#allocation5], 1

</llo_original>
